<compile_context>
chip_gen: v5e
topology: v5e:2x2
jax: 0.10.0
libtpu: 0.0.40
codegen_flags: <defaults>
</compile_context>

<pallas_src>
import functools

import numpy as np
import jax
import jax.numpy as jnp
from jax.experimental import pallas as pl
from jax.experimental.pallas import tpu as pltpu


# ----------------------------------------------------------------------------
# Config (synthetic, shapes implied by the module)
# ----------------------------------------------------------------------------
ORD_NUM = 8
BETA = 80.0
GAMMA = 1.0

C_STEM = 32
C_P = (32, 64, 128, 128)   # p0..p3 channels
C_TOP = 64

VMEM_LIMIT = 32 * 1024 * 1024   # explicit scoped-VMEM budget (fits v5e/v6e/v7x)


# ----------------------------------------------------------------------------
# Tiling helpers
# ----------------------------------------------------------------------------
def _lane_tile(M):
    """Pixel (lane) tile: multiple of 128, and >=2 grid steps at realistic M so
    both v7x TensorCores get work.  Tiny pyramid levels collapse to one block
    (block dim == full dim is always legal)."""
    if M < 128:
        return M
    for t in (512, 256, 128):
        if M >= 2 * t:
            return t
    return 128


def _full_spec(arr):
    """Whole-array block with a constant index -> stays resident across grid."""
    nd = arr.ndim
    return pl.BlockSpec(arr.shape, lambda i: (0,) * nd)


# ----------------------------------------------------------------------------
# Kernel 1: fused stem (3x3 conv via im2col GEMM) + bb0 (1x1 conv) + level-0
#           top projection.  Layout: (C, pixels) -> lane-dense outputs.
# ----------------------------------------------------------------------------
def _stem_bb0_kernel(xp_ref, sw_ref, sb_ref, b0w_ref, b0b_ref, z0w_ref,
                     p0_ref, z0_ref):
    f32 = jnp.float32
    # stem: (C_STEM, 27) @ (27, tm) -> (C_STEM, tm)
    h = jnp.dot(sw_ref[...], xp_ref[...], preferred_element_type=f32)
    h = jnp.maximum(h + sb_ref[...], 0.0).astype(jnp.bfloat16)
    # bb0: (C0, C_STEM) @ (C_STEM, tm)
    p0 = jnp.dot(b0w_ref[...], h, preferred_element_type=f32)
    p0 = jnp.maximum(p0 + b0b_ref[...], 0.0).astype(jnp.bfloat16)
    p0_ref[...] = p0
    # level-0 slice of the top 1x1 conv: (C_TOP, C0) @ (C0, tm)
    z0 = jnp.dot(z0w_ref[...], p0, preferred_element_type=f32)
    z0_ref[...] = z0.astype(jnp.bfloat16)


def stem_bb0_z0(patches_t, sw_t, sb, b0w_t, b0b, z0w_t):
    K, M = patches_t.shape
    c0, ct = b0w_t.shape[0], z0w_t.shape[0]
    tm = _lane_tile(M)
    grid = (pl.cdiv(M, tm),)
    return pl.pallas_call(
        _stem_bb0_kernel,
        out_shape=(jax.ShapeDtypeStruct((c0, M), jnp.bfloat16),
                   jax.ShapeDtypeStruct((ct, M), jnp.bfloat16)),
        grid_spec=pltpu.PrefetchScalarGridSpec(
            num_scalar_prefetch=0, grid=grid,
            in_specs=[pl.BlockSpec((K, tm), lambda i: (0, i)),
                      _full_spec(sw_t), _full_spec(sb),
                      _full_spec(b0w_t), _full_spec(b0b),
                      _full_spec(z0w_t)],
            out_specs=[pl.BlockSpec((c0, tm), lambda i: (0, i)),
                       pl.BlockSpec((ct, tm), lambda i: (0, i))]),
        compiler_params=pltpu.CompilerParams(
            dimension_semantics=("parallel",),
            vmem_limit_bytes=VMEM_LIMIT),
    )(patches_t, sw_t, sb, b0w_t, b0b, z0w_t)


# ----------------------------------------------------------------------------
# Kernel 2: backbone level k (1x1 conv + ReLU) fused with its level-k slice of
#           the top 1x1 conv (the z_k projection).  Runs once per level, at
#           that level's coarse resolution.
# ----------------------------------------------------------------------------
def _bb_level_kernel(x_ref, w_ref, b_ref, zw_ref, p_ref, z_ref):
    f32 = jnp.float32
    p = jnp.dot(w_ref[...], x_ref[...], preferred_element_type=f32)
    p = jnp.maximum(p + b_ref[...], 0.0).astype(jnp.bfloat16)
    p_ref[...] = p
    z = jnp.dot(zw_ref[...], p, preferred_element_type=f32)
    z_ref[...] = z.astype(jnp.bfloat16)


def bb_level(x_t, w_t, b, zw_t):
    cin, M = x_t.shape
    cout, ct = w_t.shape[0], zw_t.shape[0]
    tm = _lane_tile(M)
    grid = (pl.cdiv(M, tm),)
    return pl.pallas_call(
        _bb_level_kernel,
        out_shape=(jax.ShapeDtypeStruct((cout, M), jnp.bfloat16),
                   jax.ShapeDtypeStruct((ct, M), jnp.bfloat16)),
        grid_spec=pltpu.PrefetchScalarGridSpec(
            num_scalar_prefetch=0, grid=grid,
            in_specs=[pl.BlockSpec((cin, tm), lambda i: (0, i)),
                      _full_spec(w_t), _full_spec(b), _full_spec(zw_t)],
            out_specs=[pl.BlockSpec((cout, tm), lambda i: (0, i)),
                       pl.BlockSpec((ct, tm), lambda i: (0, i))]),
        compiler_params=pltpu.CompilerParams(
            dimension_semantics=("parallel",),
            vmem_limit_bytes=VMEM_LIMIT),
    )(x_t, w_t, b, zw_t)


# ----------------------------------------------------------------------------
# Kernel 3: fused TOP (sum of per-level projections + bias + ReLU) + HEAD
#           (1x1 conv -> paired ordinal logits -> prob / label / SID depth).
#           Pixels sit on lanes for every output -> lane-dense vst.
# ----------------------------------------------------------------------------
def _top_head_kernel(z0_ref, z1_ref, z2_ref, z3_ref, tb_ref, hw_ref, hb_ref,
                     prob_ref, label_ref, depth_ref,
                     *, ord_num, log_beta, gamma):
    f32 = jnp.float32
    feat = (z0_ref[...].astype(f32) + z1_ref[...].astype(f32)
            + z2_ref[...].astype(f32) + z3_ref[...].astype(f32) + tb_ref[...])
    feat = jnp.maximum(feat, 0.0).astype(jnp.bfloat16)          # (C_TOP, tm)

    # head logits, transposed: (2*ord, C_TOP) @ (C_TOP, tm) -> (2*ord, tm)
    logits = jnp.dot(hw_ref[...], feat, preferred_element_type=f32) + hb_ref[...]
    x0 = logits[:ord_num, :]
    x1 = logits[ord_num:, :]
    d = x1 - x0

    # numerically-stable sigmoid; reciprocal on the EUP slot
    ed = jnp.exp(-jnp.abs(d))
    r = pl.reciprocal(1.0 + ed, approx=True)
    prob = jnp.where(d >= 0.0, r, ed * r)
    prob_ref[...] = jnp.minimum(prob, 1.0)                      # guard approx rcp

    # prob_k > 0.5  <=>  d_k > 0
    label_f = jnp.sum(jnp.where(d > 0.0, 1.0, 0.0), axis=0, keepdims=True)
    label_ref[...] = label_f.astype(jnp.int32)

    # SID discretization
    t0 = jnp.exp(log_beta * label_f / ord_num)
    t1 = jnp.exp(log_beta * (label_f + 1.0) / ord_num)
    depth_ref[...] = (t0 + t1) * 0.5 - gamma


def top_head_fused(z0, z1, z2, z3, top_b, head_w_t, head_b,
                   *, ord_num, beta, gamma):
    ct, M = z0.shape
    tm = _lane_tile(M)
    grid = (pl.cdiv(M, tm),)
    kernel = functools.partial(_top_head_kernel, ord_num=int(ord_num),
                               log_beta=float(np.log(beta)), gamma=float(gamma))
    z_spec = pl.BlockSpec((ct, tm), lambda i: (0, i))
    return pl.pallas_call(
        kernel,
        out_shape=(jax.ShapeDtypeStruct((ord_num, M), jnp.float32),
                   jax.ShapeDtypeStruct((1, M), jnp.int32),
                   jax.ShapeDtypeStruct((1, M), jnp.float32)),
        grid_spec=pltpu.PrefetchScalarGridSpec(
            num_scalar_prefetch=0, grid=grid,
            in_specs=[z_spec, z_spec, z_spec, z_spec,
                      _full_spec(top_b), _full_spec(head_w_t), _full_spec(head_b)],
            out_specs=[pl.BlockSpec((ord_num, tm), lambda i: (0, i)),
                       pl.BlockSpec((1, tm), lambda i: (0, i)),
                       pl.BlockSpec((1, tm), lambda i: (0, i))]),
        compiler_params=pltpu.CompilerParams(
            dimension_semantics=("parallel",),
            vmem_limit_bytes=VMEM_LIMIT),
    )(z0, z1, z2, z3, top_b, head_w_t, head_b)


# ----------------------------------------------------------------------------
# Thin XLA glue (layout plumbing only; no GEMMs)
# ----------------------------------------------------------------------------
def im2col_3x3_t(x_nchw):
    """(N,3,H,W) -> (27, N*H*W) patches, 'same' zero padding, channels-first.
    TODO(synk): fuse im2col into the stem kernel with haloed row tiles so the
    9x patch tensor never hits HBM."""
    N, C, H, W = x_nchw.shape
    xp = jnp.pad(x_nchw, ((0, 0), (0, 0), (1, 1), (1, 1)))
    slices = [xp[:, :, dh:dh + H, dw:dw + W] for dh in range(3) for dw in range(3)]
    pat = jnp.stack(slices, axis=0)                 # (9, N, C, H, W)
    pat = jnp.transpose(pat, (0, 2, 1, 3, 4))       # (9, C, N, H, W)
    return pat.reshape(9 * C, N * H * W)


def downsample2_t(x_t, N, H, W):
    """Stride-2 nearest downsample on (C, N*H*W).
    TODO(synk): fold into the consuming backbone kernel's index_map instead of
    this XLA strided slice between pallas_calls."""
    C = x_t.shape[0]
    return x_t.reshape(C, N, H, W)[:, :, ::2, ::2].reshape(C, -1)


def upsample_nearest_t(z, N, Hk, Wk, s):
    """Nearest upsample by s on (C, N*Hk*Wk) -> (C, N*(Hk*s)*(Wk*s)); pure
    reshape/broadcast (no gathers, no one-hot matmuls)."""
    C = z.shape[0]
    z = z.reshape(C, N, Hk, 1, Wk, 1)
    z = jnp.broadcast_to(z, (C, N, Hk, s, Wk, s))
    return z.reshape(C, N * Hk * s * Wk * s)


# ----------------------------------------------------------------------------
# Model: deterministic synthetic parameters (shapes implied by the module).
# Weights are stored transposed (Cout, Cin) to match the (C, pixels) layout.
# ----------------------------------------------------------------------------
def init_params(key):
    ks = jax.random.split(key, 10)

    def w(k, cout, cin):
        return jax.random.normal(k, (cout, cin), jnp.float32) / np.sqrt(cin)

    p = {}
    p["stem_w_t"] = w(ks[0], C_STEM, 9 * 3)                 # 3x3 conv 3 -> C_STEM
    p["stem_b"] = jnp.zeros((C_STEM, 1), jnp.float32)
    cin = C_STEM
    for i, cout in enumerate(C_P):                          # backbone 1x1 convs
        p[f"bb{i}_w_t"] = w(ks[1 + i], cout, cin)
        p[f"bb{i}_b"] = jnp.zeros((cout, 1), jnp.float32)
        p[f"lvl{i}_w_t"] = w(ks[5 + i], C_TOP, cout)        # level-k slice of top conv
        cin = cout
    p["top_b"] = jnp.zeros((C_TOP, 1), jnp.float32)
    p["head_w_t"] = w(ks[9], 2 * ORD_NUM, C_TOP)            # DORN ordinal layer
    p["head_b"] = jnp.zeros((2 * ORD_NUM, 1), jnp.float32)
    return p


def base_model_forward(params, image_nchw):
    """image: (N, 3, H, W) f32.  Eval path of BaseModel.forward: returns
    {"target": depth (N,H,W), "prob": (N,ORD,H,W), "label": (N,H,W) int32}."""
    N, Cin, H, W = image_nchw.shape
    assert Cin == 3 and H % 8 == 0 and W % 8 == 0, "needs 3 stride-2 levels"
    bf16 = jnp.bfloat16

    def wb(name):  # bf16 cast of matmul operands (accumulation stays f32)
        return params[name].astype(bf16)

    # ---- bottom + backbone level 0 + level-0 projection (one fused call) ----
    patches_t = im2col_3x3_t(image_nchw).astype(bf16)        # (27, M)
    p_prev, z0 = stem_bb0_z0(
        patches_t, wb("stem_w_t"), params["stem_b"],
        wb("bb0_w_t"), params["bb0_b"], wb("lvl0_w_t"))

    # ---- backbone levels 1..3 (coarse 1x1 conv + level-k projection) ----
    zs = [z0]
    h, w = H, W
    for i in range(1, 4):
        p_prev = downsample2_t(p_prev, N, h, w)
        h, w = h // 2, w // 2
        p_prev, z = bb_level(p_prev, wb(f"bb{i}_w_t"), params[f"bb{i}_b"],
                             wb(f"lvl{i}_w_t"))
        zs.append(z)

    # ---- nearest-upsample of the already-projected coarse levels (wrapper) ----
    z1u = upsample_nearest_t(zs[1], N, H // 2, W // 2, 2)
    z2u = upsample_nearest_t(zs[2], N, H // 4, W // 4, 4)
    z3u = upsample_nearest_t(zs[3], N, H // 8, W // 8, 8)

    # ---- fused top (sum + bias + ReLU) + head (DORN) ----
    prob_t, label_t, depth_t = top_head_fused(
        zs[0], z1u, z2u, z3u, params["top_b"],
        wb("head_w_t"), params["head_b"],
        ord_num=ORD_NUM, beta=BETA, gamma=GAMMA)

    prob = jnp.transpose(prob_t.reshape(ORD_NUM, N, H, W), (1, 0, 2, 3))
    label = label_t.reshape(N, H, W)
    depth = depth_t.reshape(N, H, W)
    return {"target": depth, "prob": prob, "label": label}


if __name__ == "__main__":
    key = jax.random.PRNGKey(0)
    pkey, xkey = jax.random.split(key)
    params = init_params(pkey)

    # RGB image, N x 3 x H x W (PyTorch convention)
    image = jax.random.uniform(xkey, (2, 3, 16, 16), jnp.float32)

    out = jax.jit(base_model_forward)(params, image)
    out = jax.block_until_ready(out)

    assert out["target"].shape == (2, 16, 16)
    assert out["prob"].shape == (2, ORD_NUM, 16, 16)
    assert out["label"].shape == (2, 16, 16)
    assert out["label"].dtype == jnp.int32
    assert bool(jnp.all(jnp.isfinite(out["target"])))
    assert bool(jnp.all((out["prob"] >= 0.0) & (out["prob"] <= 1.0)))
    assert bool(jnp.all((out["label"] >= 0) & (out["label"] <= ORD_NUM)))

    # SID consistency: depth recomputed from the predicted label must match.
    lab = out["label"].astype(jnp.float32)
    t0 = jnp.exp(np.log(BETA) * lab / ORD_NUM)
    t1 = jnp.exp(np.log(BETA) * (lab + 1.0) / ORD_NUM)
    ref_depth = (t0 + t1) * 0.5 - GAMMA
    assert bool(jnp.allclose(out["target"], ref_depth, rtol=1e-3, atol=1e-3))

    print("KERNEL_OK")
</pallas_src>

<mosaic_0001>
module attributes {stable_mosaic.version = 11 : i64} {
  func.func @_stem_bb0_kernel(%arg0: i32, %arg1: memref<27x256xbf16, #tpu.memory_space<vmem>>, %arg2: memref<32x27xbf16, #tpu.memory_space<vmem>>, %arg3: memref<32x1xf32, #tpu.memory_space<vmem>>, %arg4: memref<32x32xbf16, #tpu.memory_space<vmem>>, %arg5: memref<32x1xf32, #tpu.memory_space<vmem>>, %arg6: memref<64x32xbf16, #tpu.memory_space<vmem>>, %arg7: memref<32x256xbf16, #tpu.memory_space<vmem>>, %arg8: memref<64x256xbf16, #tpu.memory_space<vmem>>) attributes {dimension_semantics = [#tpu.dimension_semantics<parallel>], iteration_bounds = array<i64: 2>, scalar_prefetch = 0 : i64, scratch_operands = 0 : i64, tpu.core_type = #tpu.core_type<tc>, window_params = [{transform_indices = @transform_0, window_bounds = array<i64: 27, 256>}, {pipeline_mode = #tpu.pipeline_mode<synchronous>, transform_indices = @transform_1, window_bounds = array<i64: 32, 27>}, {pipeline_mode = #tpu.pipeline_mode<synchronous>, transform_indices = @transform_2, window_bounds = array<i64: 32, 1>}, {pipeline_mode = #tpu.pipeline_mode<synchronous>, transform_indices = @transform_3, window_bounds = array<i64: 32, 32>}, {pipeline_mode = #tpu.pipeline_mode<synchronous>, transform_indices = @transform_4, window_bounds = array<i64: 32, 1>}, {pipeline_mode = #tpu.pipeline_mode<synchronous>, transform_indices = @transform_5, window_bounds = array<i64: 64, 32>}, {transform_indices = @transform_6, window_bounds = array<i64: 32, 256>}, {transform_indices = @transform_7, window_bounds = array<i64: 64, 256>}]} {
    %c0 = arith.constant 0 : index
    %c0_0 = arith.constant 0 : index
    %0 = vector.load %arg2[%c0, %c0_0] : memref<32x27xbf16, #tpu.memory_space<vmem>>, vector<32x27xbf16>
    %c0_1 = arith.constant 0 : index
    %c0_2 = arith.constant 0 : index
    %1 = vector.load %arg1[%c0_1, %c0_2] : memref<27x256xbf16, #tpu.memory_space<vmem>>, vector<27x256xbf16>
    %cst = arith.constant dense<0.000000e+00> : vector<32x256xf32>
    %2 = tpu.matmul %0, %1, %cst {dimension_numbers = #tpu.dot_dimension_numbers<[1], [0], [0], [1], [0, 0, 1, 1], [], []>} : vector<32x27xbf16>, vector<27x256xbf16>, vector<32x256xf32> -> vector<32x256xf32>
    %c0_3 = arith.constant 0 : index
    %c0_4 = arith.constant 0 : index
    %3 = vector.load %arg3[%c0_3, %c0_4] : memref<32x1xf32, #tpu.memory_space<vmem>>, vector<32x1xf32>
    %4 = vector.broadcast %3 : vector<32x1xf32> to vector<32x256xf32>
    %5 = arith.addf %2, %4 : vector<32x256xf32>
    %cst_5 = arith.constant 0.000000e+00 : f32
    %6 = vector.broadcast %cst_5 : f32 to vector<32x256xf32>
    %7 = arith.maximumf %5, %6 : vector<32x256xf32>
    %8 = arith.truncf %7 : vector<32x256xf32> to vector<32x256xbf16>
    %c0_6 = arith.constant 0 : index
    %c0_7 = arith.constant 0 : index
    %9 = vector.load %arg4[%c0_6, %c0_7] : memref<32x32xbf16, #tpu.memory_space<vmem>>, vector<32x32xbf16>
    %cst_8 = arith.constant dense<0.000000e+00> : vector<32x256xf32>
    %10 = tpu.matmul %9, %8, %cst_8 {dimension_numbers = #tpu.dot_dimension_numbers<[1], [0], [0], [1], [0, 0, 1, 1], [], []>} : vector<32x32xbf16>, vector<32x256xbf16>, vector<32x256xf32> -> vector<32x256xf32>
    %c0_9 = arith.constant 0 : index
    %c0_10 = arith.constant 0 : index
    %11 = vector.load %arg5[%c0_9, %c0_10] : memref<32x1xf32, #tpu.memory_space<vmem>>, vector<32x1xf32>
    %12 = vector.broadcast %11 : vector<32x1xf32> to vector<32x256xf32>
    %13 = arith.addf %10, %12 : vector<32x256xf32>
    %cst_11 = arith.constant 0.000000e+00 : f32
    %14 = vector.broadcast %cst_11 : f32 to vector<32x256xf32>
    %15 = arith.maximumf %13, %14 : vector<32x256xf32>
    %16 = arith.truncf %15 : vector<32x256xf32> to vector<32x256xbf16>
    %c0_12 = arith.constant 0 : index
    %c0_13 = arith.constant 0 : index
    %17 = vector.load %arg7[%c0_12, %c0_13] : memref<32x256xbf16, #tpu.memory_space<vmem>>, vector<32x256xbf16>
    tpu.vector_store %arg7[%c0_12, %c0_13], %16 {strides = array<i32>} : memref<32x256xbf16, #tpu.memory_space<vmem>>, vector<32x256xbf16>,
    %c0_14 = arith.constant 0 : index
    %c0_15 = arith.constant 0 : index
    %18 = vector.load %arg6[%c0_14, %c0_15] : memref<64x32xbf16, #tpu.memory_space<vmem>>, vector<64x32xbf16>
    %cst_16 = arith.constant dense<0.000000e+00> : vector<64x256xf32>
    %19 = tpu.matmul %18, %16, %cst_16 {dimension_numbers = #tpu.dot_dimension_numbers<[1], [0], [0], [1], [0, 0, 1, 1], [], []>} : vector<64x32xbf16>, vector<32x256xbf16>, vector<64x256xf32> -> vector<64x256xf32>
    %20 = arith.truncf %19 : vector<64x256xf32> to vector<64x256xbf16>
    %c0_17 = arith.constant 0 : index
    %c0_18 = arith.constant 0 : index
    %21 = vector.load %arg8[%c0_17, %c0_18] : memref<64x256xbf16, #tpu.memory_space<vmem>>, vector<64x256xbf16>
    tpu.vector_store %arg8[%c0_17, %c0_18], %20 {strides = array<i32>} : memref<64x256xbf16, #tpu.memory_space<vmem>>, vector<64x256xbf16>,
    return
  }
  func.func @transform_0(%arg0: i32) -> (i32, i32) {
    %c0_i32 = arith.constant 0 : i32
    %c0_i32_0 = arith.constant 0 : i32
    return %c0_i32, %arg0 : i32, i32
  }
  func.func @transform_1(%arg0: i32) -> (i32, i32) {
    %c0_i32 = arith.constant 0 : i32
    %c0_i32_0 = arith.constant 0 : i32
    %c0_i32_1 = arith.constant 0 : i32
    return %c0_i32, %c0_i32_0 : i32, i32
  }
  func.func @transform_2(%arg0: i32) -> (i32, i32) {
    %c0_i32 = arith.constant 0 : i32
    %c0_i32_0 = arith.constant 0 : i32
    %c0_i32_1 = arith.constant 0 : i32
    return %c0_i32, %c0_i32_0 : i32, i32
  }
  func.func @transform_3(%arg0: i32) -> (i32, i32) {
    %c0_i32 = arith.constant 0 : i32
    %c0_i32_0 = arith.constant 0 : i32
    %c0_i32_1 = arith.constant 0 : i32
    return %c0_i32, %c0_i32_0 : i32, i32
  }
  func.func @transform_4(%arg0: i32) -> (i32, i32) {
    %c0_i32 = arith.constant 0 : i32
    %c0_i32_0 = arith.constant 0 : i32
    %c0_i32_1 = arith.constant 0 : i32
    return %c0_i32, %c0_i32_0 : i32, i32
  }
  func.func @transform_5(%arg0: i32) -> (i32, i32) {
    %c0_i32 = arith.constant 0 : i32
    %c0_i32_0 = arith.constant 0 : i32
    %c0_i32_1 = arith.constant 0 : i32
    return %c0_i32, %c0_i32_0 : i32, i32
  }
  func.func @transform_6(%arg0: i32) -> (i32, i32) {
    %c0_i32 = arith.constant 0 : i32
    %c0_i32_0 = arith.constant 0 : i32
    return %c0_i32, %arg0 : i32, i32
  }
  func.func @transform_7(%arg0: i32) -> (i32, i32) {
    %c0_i32 = arith.constant 0 : i32
    %c0_i32_0 = arith.constant 0 : i32
    return %c0_i32, %arg0 : i32, i32
  }
}

module attributes {stable_mosaic.version = 11 : i64} {
  func.func @_bb_level_kernel(%arg0: i32, %arg1: memref<32x128xbf16, #tpu.memory_space<vmem>>, %arg2: memref<64x32xbf16, #tpu.memory_space<vmem>>, %arg3: memref<64x1xf32, #tpu.memory_space<vmem>>, %arg4: memref<64x64xbf16, #tpu.memory_space<vmem>>, %arg5: memref<64x128xbf16, #tpu.memory_space<vmem>>, %arg6: memref<64x128xbf16, #tpu.memory_space<vmem>>) attributes {dimension_semantics = [#tpu.dimension_semantics<parallel>], iteration_bounds = array<i64: 1>, scalar_prefetch = 0 : i64, scratch_operands = 0 : i64, tpu.core_type = #tpu.core_type<tc>, window_params = [{transform_indices = @transform_0, window_bounds = array<i64: 32, 128>}, {pipeline_mode = #tpu.pipeline_mode<synchronous>, transform_indices = @transform_1, window_bounds = array<i64: 64, 32>}, {pipeline_mode = #tpu.pipeline_mode<synchronous>, transform_indices = @transform_2, window_bounds = array<i64: 64, 1>}, {pipeline_mode = #tpu.pipeline_mode<synchronous>, transform_indices = @transform_3, window_bounds = array<i64: 64, 64>}, {transform_indices = @transform_4, window_bounds = array<i64: 64, 128>}, {transform_indices = @transform_5, window_bounds = array<i64: 64, 128>}]} {
    %c0 = arith.constant 0 : index
    %c0_0 = arith.constant 0 : index
    %0 = vector.load %arg2[%c0, %c0_0] : memref<64x32xbf16, #tpu.memory_space<vmem>>, vector<64x32xbf16>
    %c0_1 = arith.constant 0 : index
    %c0_2 = arith.constant 0 : index
    %1 = vector.load %arg1[%c0_1, %c0_2] : memref<32x128xbf16, #tpu.memory_space<vmem>>, vector<32x128xbf16>
    %cst = arith.constant dense<0.000000e+00> : vector<64x128xf32>
    %2 = tpu.matmul %0, %1, %cst {dimension_numbers = #tpu.dot_dimension_numbers<[1], [0], [0], [1], [0, 0, 1, 1], [], []>} : vector<64x32xbf16>, vector<32x128xbf16>, vector<64x128xf32> -> vector<64x128xf32>
    %c0_3 = arith.constant 0 : index
    %c0_4 = arith.constant 0 : index
    %3 = vector.load %arg3[%c0_3, %c0_4] : memref<64x1xf32, #tpu.memory_space<vmem>>, vector<64x1xf32>
    %4 = vector.broadcast %3 : vector<64x1xf32> to vector<64x128xf32>
    %5 = arith.addf %2, %4 : vector<64x128xf32>
    %cst_5 = arith.constant 0.000000e+00 : f32
    %6 = vector.broadcast %cst_5 : f32 to vector<64x128xf32>
    %7 = arith.maximumf %5, %6 : vector<64x128xf32>
    %8 = arith.truncf %7 : vector<64x128xf32> to vector<64x128xbf16>
    %c0_6 = arith.constant 0 : index
    %c0_7 = arith.constant 0 : index
    %9 = vector.load %arg5[%c0_6, %c0_7] : memref<64x128xbf16, #tpu.memory_space<vmem>>, vector<64x128xbf16>
    tpu.vector_store %arg5[%c0_6, %c0_7], %8 {strides = array<i32>} : memref<64x128xbf16, #tpu.memory_space<vmem>>, vector<64x128xbf16>,
    %c0_8 = arith.constant 0 : index
    %c0_9 = arith.constant 0 : index
    %10 = vector.load %arg4[%c0_8, %c0_9] : memref<64x64xbf16, #tpu.memory_space<vmem>>, vector<64x64xbf16>
    %cst_10 = arith.constant dense<0.000000e+00> : vector<64x128xf32>
    %11 = tpu.matmul %10, %8, %cst_10 {dimension_numbers = #tpu.dot_dimension_numbers<[1], [0], [0], [1], [0, 0, 1, 1], [], []>} : vector<64x64xbf16>, vector<64x128xbf16>, vector<64x128xf32> -> vector<64x128xf32>
    %12 = arith.truncf %11 : vector<64x128xf32> to vector<64x128xbf16>
    %c0_11 = arith.constant 0 : index
    %c0_12 = arith.constant 0 : index
    %13 = vector.load %arg6[%c0_11, %c0_12] : memref<64x128xbf16, #tpu.memory_space<vmem>>, vector<64x128xbf16>
    tpu.vector_store %arg6[%c0_11, %c0_12], %12 {strides = array<i32>} : memref<64x128xbf16, #tpu.memory_space<vmem>>, vector<64x128xbf16>,
    return
  }
  func.func @transform_0(%arg0: i32) -> (i32, i32) {
    %c0_i32 = arith.constant 0 : i32
    %c0_i32_0 = arith.constant 0 : i32
    return %c0_i32, %arg0 : i32, i32
  }
  func.func @transform_1(%arg0: i32) -> (i32, i32) {
    %c0_i32 = arith.constant 0 : i32
    %c0_i32_0 = arith.constant 0 : i32
    %c0_i32_1 = arith.constant 0 : i32
    return %c0_i32, %c0_i32_0 : i32, i32
  }
  func.func @transform_2(%arg0: i32) -> (i32, i32) {
    %c0_i32 = arith.constant 0 : i32
    %c0_i32_0 = arith.constant 0 : i32
    %c0_i32_1 = arith.constant 0 : i32
    return %c0_i32, %c0_i32_0 : i32, i32
  }
  func.func @transform_3(%arg0: i32) -> (i32, i32) {
    %c0_i32 = arith.constant 0 : i32
    %c0_i32_0 = arith.constant 0 : i32
    %c0_i32_1 = arith.constant 0 : i32
    return %c0_i32, %c0_i32_0 : i32, i32
  }
  func.func @transform_4(%arg0: i32) -> (i32, i32) {
    %c0_i32 = arith.constant 0 : i32
    %c0_i32_0 = arith.constant 0 : i32
    return %c0_i32, %arg0 : i32, i32
  }
  func.func @transform_5(%arg0: i32) -> (i32, i32) {
    %c0_i32 = arith.constant 0 : i32
    %c0_i32_0 = arith.constant 0 : i32
    return %c0_i32, %arg0 : i32, i32
  }
}

module attributes {stable_mosaic.version = 11 : i64} {
  func.func @_bb_level_kernel(%arg0: i32, %arg1: memref<64x32xbf16, #tpu.memory_space<vmem>>, %arg2: memref<128x64xbf16, #tpu.memory_space<vmem>>, %arg3: memref<128x1xf32, #tpu.memory_space<vmem>>, %arg4: memref<64x128xbf16, #tpu.memory_space<vmem>>, %arg5: memref<128x32xbf16, #tpu.memory_space<vmem>>, %arg6: memref<64x32xbf16, #tpu.memory_space<vmem>>) attributes {dimension_semantics = [#tpu.dimension_semantics<parallel>], iteration_bounds = array<i64: 1>, scalar_prefetch = 0 : i64, scratch_operands = 0 : i64, tpu.core_type = #tpu.core_type<tc>, window_params = [{transform_indices = @transform_0, window_bounds = array<i64: 64, 32>}, {pipeline_mode = #tpu.pipeline_mode<synchronous>, transform_indices = @transform_1, window_bounds = array<i64: 128, 64>}, {pipeline_mode = #tpu.pipeline_mode<synchronous>, transform_indices = @transform_2, window_bounds = array<i64: 128, 1>}, {pipeline_mode = #tpu.pipeline_mode<synchronous>, transform_indices = @transform_3, window_bounds = array<i64: 64, 128>}, {transform_indices = @transform_4, window_bounds = array<i64: 128, 32>}, {transform_indices = @transform_5, window_bounds = array<i64: 64, 32>}]} {
    %c0 = arith.constant 0 : index
    %c0_0 = arith.constant 0 : index
    %0 = vector.load %arg2[%c0, %c0_0] : memref<128x64xbf16, #tpu.memory_space<vmem>>, vector<128x64xbf16>
    %c0_1 = arith.constant 0 : index
    %c0_2 = arith.constant 0 : index
    %1 = vector.load %arg1[%c0_1, %c0_2] : memref<64x32xbf16, #tpu.memory_space<vmem>>, vector<64x32xbf16>
    %cst = arith.constant dense<0.000000e+00> : vector<128x32xf32>
    %2 = tpu.matmul %0, %1, %cst {dimension_numbers = #tpu.dot_dimension_numbers<[1], [0], [0], [1], [0, 0, 1, 1], [], []>} : vector<128x64xbf16>, vector<64x32xbf16>, vector<128x32xf32> -> vector<128x32xf32>
    %c0_3 = arith.constant 0 : index
    %c0_4 = arith.constant 0 : index
    %3 = vector.load %arg3[%c0_3, %c0_4] : memref<128x1xf32, #tpu.memory_space<vmem>>, vector<128x1xf32>
    %4 = vector.broadcast %3 : vector<128x1xf32> to vector<128x32xf32>
    %5 = arith.addf %2, %4 : vector<128x32xf32>
    %cst_5 = arith.constant 0.000000e+00 : f32
    %6 = vector.broadcast %cst_5 : f32 to vector<128x32xf32>
    %7 = arith.maximumf %5, %6 : vector<128x32xf32>
    %8 = arith.truncf %7 : vector<128x32xf32> to vector<128x32xbf16>
    %c0_6 = arith.constant 0 : index
    %c0_7 = arith.constant 0 : index
    %9 = vector.load %arg5[%c0_6, %c0_7] : memref<128x32xbf16, #tpu.memory_space<vmem>>, vector<128x32xbf16>
    tpu.vector_store %arg5[%c0_6, %c0_7], %8 {strides = array<i32>} : memref<128x32xbf16, #tpu.memory_space<vmem>>, vector<128x32xbf16>,
    %c0_8 = arith.constant 0 : index
    %c0_9 = arith.constant 0 : index
    %10 = vector.load %arg4[%c0_8, %c0_9] : memref<64x128xbf16, #tpu.memory_space<vmem>>, vector<64x128xbf16>
    %cst_10 = arith.constant dense<0.000000e+00> : vector<64x32xf32>
    %11 = tpu.matmul %10, %8, %cst_10 {dimension_numbers = #tpu.dot_dimension_numbers<[1], [0], [0], [1], [0, 0, 1, 1], [], []>} : vector<64x128xbf16>, vector<128x32xbf16>, vector<64x32xf32> -> vector<64x32xf32>
    %12 = arith.truncf %11 : vector<64x32xf32> to vector<64x32xbf16>
    %c0_11 = arith.constant 0 : index
    %c0_12 = arith.constant 0 : index
    %13 = vector.load %arg6[%c0_11, %c0_12] : memref<64x32xbf16, #tpu.memory_space<vmem>>, vector<64x32xbf16>
    tpu.vector_store %arg6[%c0_11, %c0_12], %12 {strides = array<i32>} : memref<64x32xbf16, #tpu.memory_space<vmem>>, vector<64x32xbf16>,
    return
  }
  func.func @transform_0(%arg0: i32) -> (i32, i32) {
    %c0_i32 = arith.constant 0 : i32
    %c0_i32_0 = arith.constant 0 : i32
    return %c0_i32, %arg0 : i32, i32
  }
  func.func @transform_1(%arg0: i32) -> (i32, i32) {
    %c0_i32 = arith.constant 0 : i32
    %c0_i32_0 = arith.constant 0 : i32
    %c0_i32_1 = arith.constant 0 : i32
    return %c0_i32, %c0_i32_0 : i32, i32
  }
  func.func @transform_2(%arg0: i32) -> (i32, i32) {
    %c0_i32 = arith.constant 0 : i32
    %c0_i32_0 = arith.constant 0 : i32
    %c0_i32_1 = arith.constant 0 : i32
    return %c0_i32, %c0_i32_0 : i32, i32
  }
  func.func @transform_3(%arg0: i32) -> (i32, i32) {
    %c0_i32 = arith.constant 0 : i32
    %c0_i32_0 = arith.constant 0 : i32
    %c0_i32_1 = arith.constant 0 : i32
    return %c0_i32, %c0_i32_0 : i32, i32
  }
  func.func @transform_4(%arg0: i32) -> (i32, i32) {
    %c0_i32 = arith.constant 0 : i32
    %c0_i32_0 = arith.constant 0 : i32
    return %c0_i32, %arg0 : i32, i32
  }
  func.func @transform_5(%arg0: i32) -> (i32, i32) {
    %c0_i32 = arith.constant 0 : i32
    %c0_i32_0 = arith.constant 0 : i32
    return %c0_i32, %arg0 : i32, i32
  }
}

module attributes {stable_mosaic.version = 11 : i64} {
  func.func @_bb_level_kernel(%arg0: i32, %arg1: memref<128x8xbf16, #tpu.memory_space<vmem>>, %arg2: memref<128x128xbf16, #tpu.memory_space<vmem>>, %arg3: memref<128x1xf32, #tpu.memory_space<vmem>>, %arg4: memref<64x128xbf16, #tpu.memory_space<vmem>>, %arg5: memref<128x8xbf16, #tpu.memory_space<vmem>>, %arg6: memref<64x8xbf16, #tpu.memory_space<vmem>>) attributes {dimension_semantics = [#tpu.dimension_semantics<parallel>], iteration_bounds = array<i64: 1>, scalar_prefetch = 0 : i64, scratch_operands = 0 : i64, tpu.core_type = #tpu.core_type<tc>, window_params = [{transform_indices = @transform_0, window_bounds = array<i64: 128, 8>}, {pipeline_mode = #tpu.pipeline_mode<synchronous>, transform_indices = @transform_1, window_bounds = array<i64: 128, 128>}, {pipeline_mode = #tpu.pipeline_mode<synchronous>, transform_indices = @transform_2, window_bounds = array<i64: 128, 1>}, {pipeline_mode = #tpu.pipeline_mode<synchronous>, transform_indices = @transform_3, window_bounds = array<i64: 64, 128>}, {transform_indices = @transform_4, window_bounds = array<i64: 128, 8>}, {transform_indices = @transform_5, window_bounds = array<i64: 64, 8>}]} {
    %c0 = arith.constant 0 : index
    %c0_0 = arith.constant 0 : index
    %0 = vector.load %arg2[%c0, %c0_0] : memref<128x128xbf16, #tpu.memory_space<vmem>>, vector<128x128xbf16>
    %c0_1 = arith.constant 0 : index
    %c0_2 = arith.constant 0 : index
    %1 = vector.load %arg1[%c0_1, %c0_2] : memref<128x8xbf16, #tpu.memory_space<vmem>>, vector<128x8xbf16>
    %cst = arith.constant dense<0.000000e+00> : vector<128x8xf32>
    %2 = tpu.matmul %0, %1, %cst {dimension_numbers = #tpu.dot_dimension_numbers<[1], [0], [0], [1], [0, 0, 1, 1], [], []>} : vector<128x128xbf16>, vector<128x8xbf16>, vector<128x8xf32> -> vector<128x8xf32>
    %c0_3 = arith.constant 0 : index
    %c0_4 = arith.constant 0 : index
    %3 = vector.load %arg3[%c0_3, %c0_4] : memref<128x1xf32, #tpu.memory_space<vmem>>, vector<128x1xf32>
    %4 = vector.broadcast %3 : vector<128x1xf32> to vector<128x8xf32>
    %5 = arith.addf %2, %4 : vector<128x8xf32>
    %cst_5 = arith.constant 0.000000e+00 : f32
    %6 = vector.broadcast %cst_5 : f32 to vector<128x8xf32>
    %7 = arith.maximumf %5, %6 : vector<128x8xf32>
    %8 = arith.truncf %7 : vector<128x8xf32> to vector<128x8xbf16>
    %c0_6 = arith.constant 0 : index
    %c0_7 = arith.constant 0 : index
    %9 = vector.load %arg5[%c0_6, %c0_7] : memref<128x8xbf16, #tpu.memory_space<vmem>>, vector<128x8xbf16>
    tpu.vector_store %arg5[%c0_6, %c0_7], %8 {strides = array<i32>} : memref<128x8xbf16, #tpu.memory_space<vmem>>, vector<128x8xbf16>,
    %c0_8 = arith.constant 0 : index
    %c0_9 = arith.constant 0 : index
    %10 = vector.load %arg4[%c0_8, %c0_9] : memref<64x128xbf16, #tpu.memory_space<vmem>>, vector<64x128xbf16>
    %cst_10 = arith.constant dense<0.000000e+00> : vector<64x8xf32>
    %11 = tpu.matmul %10, %8, %cst_10 {dimension_numbers = #tpu.dot_dimension_numbers<[1], [0], [0], [1], [0, 0, 1, 1], [], []>} : vector<64x128xbf16>, vector<128x8xbf16>, vector<64x8xf32> -> vector<64x8xf32>
    %12 = arith.truncf %11 : vector<64x8xf32> to vector<64x8xbf16>
    %c0_11 = arith.constant 0 : index
    %c0_12 = arith.constant 0 : index
    %13 = vector.load %arg6[%c0_11, %c0_12] : memref<64x8xbf16, #tpu.memory_space<vmem>>, vector<64x8xbf16>
    tpu.vector_store %arg6[%c0_11, %c0_12], %12 {strides = array<i32>} : memref<64x8xbf16, #tpu.memory_space<vmem>>, vector<64x8xbf16>,
    return
  }
  func.func @transform_0(%arg0: i32) -> (i32, i32) {
    %c0_i32 = arith.constant 0 : i32
    %c0_i32_0 = arith.constant 0 : i32
    return %c0_i32, %arg0 : i32, i32
  }
  func.func @transform_1(%arg0: i32) -> (i32, i32) {
    %c0_i32 = arith.constant 0 : i32
    %c0_i32_0 = arith.constant 0 : i32
    %c0_i32_1 = arith.constant 0 : i32
    return %c0_i32, %c0_i32_0 : i32, i32
  }
  func.func @transform_2(%arg0: i32) -> (i32, i32) {
    %c0_i32 = arith.constant 0 : i32
    %c0_i32_0 = arith.constant 0 : i32
    %c0_i32_1 = arith.constant 0 : i32
    return %c0_i32, %c0_i32_0 : i32, i32
  }
  func.func @transform_3(%arg0: i32) -> (i32, i32) {
    %c0_i32 = arith.constant 0 : i32
    %c0_i32_0 = arith.constant 0 : i32
    %c0_i32_1 = arith.constant 0 : i32
    return %c0_i32, %c0_i32_0 : i32, i32
  }
  func.func @transform_4(%arg0: i32) -> (i32, i32) {
    %c0_i32 = arith.constant 0 : i32
    %c0_i32_0 = arith.constant 0 : i32
    return %c0_i32, %arg0 : i32, i32
  }
  func.func @transform_5(%arg0: i32) -> (i32, i32) {
    %c0_i32 = arith.constant 0 : i32
    %c0_i32_0 = arith.constant 0 : i32
    return %c0_i32, %arg0 : i32, i32
  }
}

module attributes {stable_mosaic.version = 11 : i64} {
  func.func @_top_head_kernel(%arg0: i32, %arg1: memref<64x256xbf16, #tpu.memory_space<vmem>>, %arg2: memref<64x256xbf16, #tpu.memory_space<vmem>>, %arg3: memref<64x256xbf16, #tpu.memory_space<vmem>>, %arg4: memref<64x256xbf16, #tpu.memory_space<vmem>>, %arg5: memref<64x1xf32, #tpu.memory_space<vmem>>, %arg6: memref<16x64xbf16, #tpu.memory_space<vmem>>, %arg7: memref<16x1xf32, #tpu.memory_space<vmem>>, %arg8: memref<8x256xf32, #tpu.memory_space<vmem>>, %arg9: memref<1x256xi32, #tpu.memory_space<vmem>>, %arg10: memref<1x256xf32, #tpu.memory_space<vmem>>) attributes {dimension_semantics = [#tpu.dimension_semantics<parallel>], iteration_bounds = array<i64: 2>, scalar_prefetch = 0 : i64, scratch_operands = 0 : i64, tpu.core_type = #tpu.core_type<tc>, window_params = [{transform_indices = @transform_0, window_bounds = array<i64: 64, 256>}, {transform_indices = @transform_1, window_bounds = array<i64: 64, 256>}, {transform_indices = @transform_2, window_bounds = array<i64: 64, 256>}, {transform_indices = @transform_3, window_bounds = array<i64: 64, 256>}, {pipeline_mode = #tpu.pipeline_mode<synchronous>, transform_indices = @transform_4, window_bounds = array<i64: 64, 1>}, {pipeline_mode = #tpu.pipeline_mode<synchronous>, transform_indices = @transform_5, window_bounds = array<i64: 16, 64>}, {pipeline_mode = #tpu.pipeline_mode<synchronous>, transform_indices = @transform_6, window_bounds = array<i64: 16, 1>}, {transform_indices = @transform_7, window_bounds = array<i64: 8, 256>}, {transform_indices = @transform_8, window_bounds = array<i64: 1, 256>}, {transform_indices = @transform_9, window_bounds = array<i64: 1, 256>}]} {
    %c0 = arith.constant 0 : index
    %c0_0 = arith.constant 0 : index
    %0 = vector.load %arg1[%c0, %c0_0] : memref<64x256xbf16, #tpu.memory_space<vmem>>, vector<64x256xbf16>
    %1 = arith.extf %0 : vector<64x256xbf16> to vector<64x256xf32>
    %c0_1 = arith.constant 0 : index
    %c0_2 = arith.constant 0 : index
    %2 = vector.load %arg2[%c0_1, %c0_2] : memref<64x256xbf16, #tpu.memory_space<vmem>>, vector<64x256xbf16>
    %3 = arith.extf %2 : vector<64x256xbf16> to vector<64x256xf32>
    %4 = arith.addf %1, %3 : vector<64x256xf32>
    %c0_3 = arith.constant 0 : index
    %c0_4 = arith.constant 0 : index
    %5 = vector.load %arg3[%c0_3, %c0_4] : memref<64x256xbf16, #tpu.memory_space<vmem>>, vector<64x256xbf16>
    %6 = arith.extf %5 : vector<64x256xbf16> to vector<64x256xf32>
    %7 = arith.addf %4, %6 : vector<64x256xf32>
    %c0_5 = arith.constant 0 : index
    %c0_6 = arith.constant 0 : index
    %8 = vector.load %arg4[%c0_5, %c0_6] : memref<64x256xbf16, #tpu.memory_space<vmem>>, vector<64x256xbf16>
    %9 = arith.extf %8 : vector<64x256xbf16> to vector<64x256xf32>
    %10 = arith.addf %7, %9 : vector<64x256xf32>
    %c0_7 = arith.constant 0 : index
    %c0_8 = arith.constant 0 : index
    %11 = vector.load %arg5[%c0_7, %c0_8] : memref<64x1xf32, #tpu.memory_space<vmem>>, vector<64x1xf32>
    %12 = vector.broadcast %11 : vector<64x1xf32> to vector<64x256xf32>
    %13 = arith.addf %10, %12 : vector<64x256xf32>
    %cst = arith.constant 0.000000e+00 : f32
    %14 = vector.broadcast %cst : f32 to vector<64x256xf32>
    %15 = arith.maximumf %13, %14 : vector<64x256xf32>
    %16 = arith.truncf %15 : vector<64x256xf32> to vector<64x256xbf16>
    %c0_9 = arith.constant 0 : index
    %c0_10 = arith.constant 0 : index
    %17 = vector.load %arg6[%c0_9, %c0_10] : memref<16x64xbf16, #tpu.memory_space<vmem>>, vector<16x64xbf16>
    %cst_11 = arith.constant dense<0.000000e+00> : vector<16x256xf32>
    %18 = tpu.matmul %17, %16, %cst_11 {dimension_numbers = #tpu.dot_dimension_numbers<[1], [0], [0], [1], [0, 0, 1, 1], [], []>} : vector<16x64xbf16>, vector<64x256xbf16>, vector<16x256xf32> -> vector<16x256xf32>
    %c0_12 = arith.constant 0 : index
    %c0_13 = arith.constant 0 : index
    %19 = vector.load %arg7[%c0_12, %c0_13] : memref<16x1xf32, #tpu.memory_space<vmem>>, vector<16x1xf32>
    %20 = vector.broadcast %19 : vector<16x1xf32> to vector<16x256xf32>
    %21 = arith.addf %18, %20 : vector<16x256xf32>
    %22 = vector.extract_strided_slice %21 {offsets = [0, 0], sizes = [8, 256], strides = [1, 1]} : vector<16x256xf32> to vector<8x256xf32>
    %23 = vector.extract_strided_slice %21 {offsets = [8, 0], sizes = [8, 256], strides = [1, 1]} : vector<16x256xf32> to vector<8x256xf32>
    %24 = arith.subf %23, %22 : vector<8x256xf32>
    %25 = math.absf %24 : vector<8x256xf32>
    %cst_14 = arith.constant 0.000000e+00 : f32
    %26 = vector.broadcast %cst_14 : f32 to vector<8x256xf32>
    %27 = arith.subf %26, %25 : vector<8x256xf32>
    %28 = math.exp %27 : vector<8x256xf32>
    %cst_15 = arith.constant 1.000000e+00 : f32
    %29 = vector.broadcast %cst_15 : f32 to vector<8x256xf32>
    %30 = arith.addf %29, %28 : vector<8x256xf32>
    %31 = tpu.reciprocal %30 {approx = true} : vector<8x256xf32> -> vector<8x256xf32>
    %cst_16 = arith.constant 0.000000e+00 : f32
    %32 = vector.broadcast %cst_16 : f32 to vector<8x256xf32>
    %33 = arith.cmpf oge, %24, %32 : vector<8x256xf32>
    %34 = arith.mulf %28, %31 : vector<8x256xf32>
    %35 = arith.select %33, %31, %34 : vector<8x256xi1>, vector<8x256xf32>
    %cst_17 = arith.constant 1.000000e+00 : f32
    %36 = vector.broadcast %cst_17 : f32 to vector<8x256xf32>
    %37 = arith.minimumf %35, %36 : vector<8x256xf32>
    %c0_18 = arith.constant 0 : index
    %c0_19 = arith.constant 0 : index
    %38 = vector.load %arg8[%c0_18, %c0_19] : memref<8x256xf32, #tpu.memory_space<vmem>>, vector<8x256xf32>
    tpu.vector_store %arg8[%c0_18, %c0_19], %37 {strides = array<i32>} : memref<8x256xf32, #tpu.memory_space<vmem>>, vector<8x256xf32>,
    %cst_20 = arith.constant 0.000000e+00 : f32
    %39 = vector.broadcast %cst_20 : f32 to vector<8x256xf32>
    %40 = arith.cmpf ogt, %24, %39 : vector<8x256xf32>
    %cst_21 = arith.constant 1.000000e+00 : f32
    %cst_22 = arith.constant 0.000000e+00 : f32
    %41 = vector.broadcast %cst_21 : f32 to vector<8x256xf32>
    %42 = vector.broadcast %cst_22 : f32 to vector<8x256xf32>
    %43 = arith.select %40, %41, %42 : vector<8x256xi1>, vector<8x256xf32>
    %cst_23 = arith.constant dense<0.000000e+00> : vector<256xf32>
    %44 = vector.multi_reduction <add>, %43, %cst_23 [0] : vector<8x256xf32> to vector<256xf32>
    %45 = vector.shape_cast %44 : vector<256xf32> to vector<1x256xf32>
    %46 = arith.fptosi %45 : vector<1x256xf32> to vector<1x256xi32>
    %c0_24 = arith.constant 0 : index
    %c0_25 = arith.constant 0 : index
    %47 = vector.load %arg9[%c0_24, %c0_25] : memref<1x256xi32, #tpu.memory_space<vmem>>, vector<1x256xi32>
    tpu.vector_store %arg9[%c0_24, %c0_25], %46 {strides = array<i32>} : memref<1x256xi32, #tpu.memory_space<vmem>>, vector<1x256xi32>,
    %cst_26 = arith.constant 4.38202667 : f32
    %48 = vector.broadcast %cst_26 : f32 to vector<1x256xf32>
    %49 = arith.mulf %48, %45 : vector<1x256xf32>
    %cst_27 = arith.constant 8.000000e+00 : f32
    %50 = vector.broadcast %cst_27 : f32 to vector<1x256xf32>
    %51 = arith.divf %49, %50 : vector<1x256xf32>
    %52 = math.exp %51 : vector<1x256xf32>
    %cst_28 = arith.constant 1.000000e+00 : f32
    %53 = vector.broadcast %cst_28 : f32 to vector<1x256xf32>
    %54 = arith.addf %45, %53 : vector<1x256xf32>
    %cst_29 = arith.constant 4.38202667 : f32
    %55 = vector.broadcast %cst_29 : f32 to vector<1x256xf32>
    %56 = arith.mulf %55, %54 : vector<1x256xf32>
    %cst_30 = arith.constant 8.000000e+00 : f32
    %57 = vector.broadcast %cst_30 : f32 to vector<1x256xf32>
    %58 = arith.divf %56, %57 : vector<1x256xf32>
    %59 = math.exp %58 : vector<1x256xf32>
    %60 = arith.addf %52, %59 : vector<1x256xf32>
    %cst_31 = arith.constant 5.000000e-01 : f32
    %61 = vector.broadcast %cst_31 : f32 to vector<1x256xf32>
    %62 = arith.mulf %60, %61 : vector<1x256xf32>
    %cst_32 = arith.constant 1.000000e+00 : f32
    %63 = vector.broadcast %cst_32 : f32 to vector<1x256xf32>
    %64 = arith.subf %62, %63 : vector<1x256xf32>
    %c0_33 = arith.constant 0 : index
    %c0_34 = arith.constant 0 : index
    %65 = vector.load %arg10[%c0_33, %c0_34] : memref<1x256xf32, #tpu.memory_space<vmem>>, vector<1x256xf32>
    tpu.vector_store %arg10[%c0_33, %c0_34], %64 {strides = array<i32>} : memref<1x256xf32, #tpu.memory_space<vmem>>, vector<1x256xf32>,
    return
  }
  func.func @transform_0(%arg0: i32) -> (i32, i32) {
    %c0_i32 = arith.constant 0 : i32
    %c0_i32_0 = arith.constant 0 : i32
    return %c0_i32, %arg0 : i32, i32
  }
  func.func @transform_1(%arg0: i32) -> (i32, i32) {
    %c0_i32 = arith.constant 0 : i32
    %c0_i32_0 = arith.constant 0 : i32
    return %c0_i32, %arg0 : i32, i32
  }
  func.func @transform_2(%arg0: i32) -> (i32, i32) {
    %c0_i32 = arith.constant 0 : i32
    %c0_i32_0 = arith.constant 0 : i32
    return %c0_i32, %arg0 : i32, i32
  }
  func.func @transform_3(%arg0: i32) -> (i32, i32) {
    %c0_i32 = arith.constant 0 : i32
    %c0_i32_0 = arith.constant 0 : i32
    return %c0_i32, %arg0 : i32, i32
  }
  func.func @transform_4(%arg0: i32) -> (i32, i32) {
    %c0_i32 = arith.constant 0 : i32
    %c0_i32_0 = arith.constant 0 : i32
    %c0_i32_1 = arith.constant 0 : i32
    return %c0_i32, %c0_i32_0 : i32, i32
  }
  func.func @transform_5(%arg0: i32) -> (i32, i32) {
    %c0_i32 = arith.constant 0 : i32
    %c0_i32_0 = arith.constant 0 : i32
    %c0_i32_1 = arith.constant 0 : i32
    return %c0_i32, %c0_i32_0 : i32, i32
  }
  func.func @transform_6(%arg0: i32) -> (i32, i32) {
    %c0_i32 = arith.constant 0 : i32
    %c0_i32_0 = arith.constant 0 : i32
    %c0_i32_1 = arith.constant 0 : i32
    return %c0_i32, %c0_i32_0 : i32, i32
  }
  func.func @transform_7(%arg0: i32) -> (i32, i32) {
    %c0_i32 = arith.constant 0 : i32
    %c0_i32_0 = arith.constant 0 : i32
    return %c0_i32, %arg0 : i32, i32
  }
  func.func @transform_8(%arg0: i32) -> (i32, i32) {
    %c0_i32 = arith.constant 0 : i32
    %c0_i32_0 = arith.constant 0 : i32
    return %c0_i32, %arg0 : i32, i32
  }
  func.func @transform_9(%arg0: i32) -> (i32, i32) {
    %c0_i32 = arith.constant 0 : i32
    %c0_i32_0 = arith.constant 0 : i32
    return %c0_i32, %arg0 : i32, i32
  }
}

</mosaic_0001>

<llo_original>
// kernel: base_model_forward.5
$region0: #{base_model_forward.5}
  #allocation0 [shape = 'u32[]', space=smem, size = 0x4, offset = 0x4, fixed_abs, tag = 'smem constant byte address 0x4 - core index']
  #allocation1 [shape = 'u32[72,128]{1,0:T(1,128)}', space=vmem, size = 0x9000, scoped, tag = 'internal scratch']
  %s0 = inlined_call_operand.vmem [shape: bf16[27,512], index: 0, kind: input, shape index: {}]
  %s1 = inlined_call_operand.vmem [shape: bf16[32,27], index: 1, kind: input, shape index: {}]
  %s2 = inlined_call_operand.vmem [shape: f32[32,1], index: 2, kind: input, shape index: {}]
  %s3 = inlined_call_operand.vmem [shape: bf16[32,32], index: 3, kind: input, shape index: {}]
  %s4 = inlined_call_operand.vmem [shape: f32[32,1], index: 4, kind: input, shape index: {}]
  %s5 = inlined_call_operand.vmem [shape: bf16[64,32], index: 5, kind: input, shape index: {}]
  %s6 = inlined_call_operand.vmem [shape: bf16[32,512], index: 6, kind: output, shape index: {0}]
  %s7 = inlined_call_operand.vmem [shape: bf16[64,512], index: 7, kind: output, shape index: {1}]
  %8 = xla_tuple %s6, %s7
  %s9 = sld [smem:[#allocation0]]
  $region171: #{base_model_forward.5} parent=0
    _
  %s11 = ssub.s32 1, %s9
  %s12 = scalar_select 0, %s11, %s9
  $region1: #{base_model_forward.5} parent=0
    #allocation2 [shape = 'u8[32768]{0}', space=vmem, size = 0x8000, scoped, tag = 'input window, operand 0']
    #allocation3 [shape = 'u8[32768]{0}', space=vmem, size = 0x8000, scoped, tag = 'output window, operand 0']
    #allocation4 [shape = 'u8[65536]{0}', space=vmem, size = 0x10000, scoped, tag = 'output window, operand 1']
    loop: start=0, step=1, limit=4
    $region2: #{base_model_forward.5} parent=1 // loop_pre_header
      _
    $region3: #{base_model_forward.5} parent=1 // loop_header
      %s14 = sphi 0, %s18
      %p15 = scmp.ge.s32.totalorder %s14, 4
      %s24 = sphi 0, %s26
      %s27 = sphi 0, %s24
      %s28 = sphi 0, %s27
      %s44 = sphi 0, %s28
      %s48 = sphi 0, %s48
      %s50 = sphi 0, %s48
      %s51 = sphi 0, %s50
      %s65 = sphi 0, %s51
      %s69 = sphi 0, %s69
      %s71 = sphi 0, %s69
      %s72 = sphi 0, %s71
      %s86 = sphi 0, %s72
      %s90 = sphi 0, %s90
      %s92 = sphi 0, %s90
      %s93 = sphi 0, %s92
      %s107 = sphi 0, %s93
      %s111 = sphi 0, %s111
      %s113 = sphi 0, %s111
      %s114 = sphi 0, %s113
      %s128 = sphi 0, %s114
      %s132 = sphi 0, %s132
      %s134 = sphi 0, %s132
      %s135 = sphi 0, %s134
      %s149 = sphi 0, %s135
      %s155 = sphi 0, %s157
      %s158 = sphi 0, %s155
      %s159 = sphi 0, %s158
      %s175 = sphi 0, %s159
      %s181 = sphi 0, %s183
      %s184 = sphi 0, %s181
      %s185 = sphi 0, %s184
      %s201 = sphi 0, %s185
    $region4: #{base_model_forward.5} parent=1 // loop_header_branch
      %17 = sbr.rel (%p15) target = $region8
    $region5: #{base_model_forward.5} parent=1 // loop_body
      %s19 = ssub.s32 %s14, 1
      %s20 = ssub.s32 %s14, 2
      %s21 = sadd.s32 %s14, 1
      %s22 = ssub.s32 %s14, %s21
      %p23 = scmp.eq.s32.totalorder %s22, 0
      %s25 = sadd.s32 %s24, 1
      %s26 = scalar_select %p23, %s24, %s25
      %p29 = pneg %p23
      %p30 = scmp.eq.s32.totalorder %s14, 1
      %p31 = por %p29, %p30
      %p32 = scmp.ne.s32.totalorder %s24, %s27
      %p33 = scmp.eq.s32.totalorder %s14, 0
      %p34 = por %p32, %p33
      %p35 = scmp.ne.s32.totalorder %s24, %s27
      %p36 = scmp.eq.s32.totalorder %s19, 1
      %p37 = por %p35, %p36
      %p38 = scmp.ne.s32.totalorder %s27, %s28
      %p39 = scmp.eq.s32.totalorder %s19, 0
      %p40 = por %p38, %p39
      %p41 = scmp.ne.s32.totalorder %s27, %s28
      %p42 = scmp.eq.s32.totalorder %s20, 1
      %p43 = por %p41, %p42
      %p45 = scmp.ne.s32.totalorder %s28, %s44
      %p46 = scmp.eq.s32.totalorder %s20, 0
      %p47 = por %p45, %p46
      %s49 = sadd.s32 %s48, 1
      %p52 = scmp.eq.s32.totalorder %s14, 1
      %p53 = scmp.ne.s32.totalorder %s48, %s50
      %p54 = scmp.eq.s32.totalorder %s14, 0
      %p55 = por %p53, %p54
      %p56 = scmp.ne.s32.totalorder %s48, %s50
      %p57 = scmp.eq.s32.totalorder %s19, 1
      %p58 = por %p56, %p57
      %p59 = scmp.ne.s32.totalorder %s50, %s51
      %p60 = scmp.eq.s32.totalorder %s19, 0
      %p61 = por %p59, %p60
      %p62 = scmp.ne.s32.totalorder %s50, %s51
      %p63 = scmp.eq.s32.totalorder %s20, 1
      %p64 = por %p62, %p63
      %p66 = scmp.ne.s32.totalorder %s51, %s65
      %p67 = scmp.eq.s32.totalorder %s20, 0
      %p68 = por %p66, %p67
      %s70 = sadd.s32 %s69, 1
      %p73 = scmp.eq.s32.totalorder %s14, 1
      %p74 = scmp.ne.s32.totalorder %s69, %s71
      %p75 = scmp.eq.s32.totalorder %s14, 0
      %p76 = por %p74, %p75
      %p77 = scmp.ne.s32.totalorder %s69, %s71
      %p78 = scmp.eq.s32.totalorder %s19, 1
      %p79 = por %p77, %p78
      %p80 = scmp.ne.s32.totalorder %s71, %s72
      %p81 = scmp.eq.s32.totalorder %s19, 0
      %p82 = por %p80, %p81
      %p83 = scmp.ne.s32.totalorder %s71, %s72
      %p84 = scmp.eq.s32.totalorder %s20, 1
      %p85 = por %p83, %p84
      %p87 = scmp.ne.s32.totalorder %s72, %s86
      %p88 = scmp.eq.s32.totalorder %s20, 0
      %p89 = por %p87, %p88
      %s91 = sadd.s32 %s90, 1
      %p94 = scmp.eq.s32.totalorder %s14, 1
      %p95 = scmp.ne.s32.totalorder %s90, %s92
      %p96 = scmp.eq.s32.totalorder %s14, 0
      %p97 = por %p95, %p96
      %p98 = scmp.ne.s32.totalorder %s90, %s92
      %p99 = scmp.eq.s32.totalorder %s19, 1
      %p100 = por %p98, %p99
      %p101 = scmp.ne.s32.totalorder %s92, %s93
      %p102 = scmp.eq.s32.totalorder %s19, 0
      %p103 = por %p101, %p102
      %p104 = scmp.ne.s32.totalorder %s92, %s93
      %p105 = scmp.eq.s32.totalorder %s20, 1
      %p106 = por %p104, %p105
      %p108 = scmp.ne.s32.totalorder %s93, %s107
      %p109 = scmp.eq.s32.totalorder %s20, 0
      %p110 = por %p108, %p109
      %s112 = sadd.s32 %s111, 1
      %p115 = scmp.eq.s32.totalorder %s14, 1
      %p116 = scmp.ne.s32.totalorder %s111, %s113
      %p117 = scmp.eq.s32.totalorder %s14, 0
      %p118 = por %p116, %p117
      %p119 = scmp.ne.s32.totalorder %s111, %s113
      %p120 = scmp.eq.s32.totalorder %s19, 1
      %p121 = por %p119, %p120
      %p122 = scmp.ne.s32.totalorder %s113, %s114
      %p123 = scmp.eq.s32.totalorder %s19, 0
      %p124 = por %p122, %p123
      %p125 = scmp.ne.s32.totalorder %s113, %s114
      %p126 = scmp.eq.s32.totalorder %s20, 1
      %p127 = por %p125, %p126
      %p129 = scmp.ne.s32.totalorder %s114, %s128
      %p130 = scmp.eq.s32.totalorder %s20, 0
      %p131 = por %p129, %p130
      %s133 = sadd.s32 %s132, 1
      %p136 = scmp.eq.s32.totalorder %s14, 1
      %p137 = scmp.ne.s32.totalorder %s132, %s134
      %p138 = scmp.eq.s32.totalorder %s14, 0
      %p139 = por %p137, %p138
      %p140 = scmp.ne.s32.totalorder %s132, %s134
      %p141 = scmp.eq.s32.totalorder %s19, 1
      %p142 = por %p140, %p141
      %p143 = scmp.ne.s32.totalorder %s134, %s135
      %p144 = scmp.eq.s32.totalorder %s19, 0
      %p145 = por %p143, %p144
      %p146 = scmp.ne.s32.totalorder %s134, %s135
      %p147 = scmp.eq.s32.totalorder %s20, 1
      %p148 = por %p146, %p147
      %p150 = scmp.ne.s32.totalorder %s135, %s149
      %p151 = scmp.eq.s32.totalorder %s20, 0
      %p152 = por %p150, %p151
      %s153 = ssub.s32 %s14, %s21
      %p154 = scmp.eq.s32.totalorder %s153, 0
      %s156 = sadd.s32 %s155, 1
      %s157 = scalar_select %p154, %s155, %s156
      %p160 = pneg %p154
      %p161 = scmp.eq.s32.totalorder %s14, 1
      %p162 = por %p160, %p161
      %p163 = scmp.ne.s32.totalorder %s155, %s158
      %p164 = scmp.eq.s32.totalorder %s14, 0
      %p165 = por %p163, %p164
      %p166 = scmp.ne.s32.totalorder %s155, %s158
      %p167 = scmp.eq.s32.totalorder %s19, 1
      %p168 = por %p166, %p167
      %p169 = scmp.ne.s32.totalorder %s158, %s159
      %p170 = scmp.eq.s32.totalorder %s19, 0
      %p171 = por %p169, %p170
      %p172 = scmp.ne.s32.totalorder %s158, %s159
      %p173 = scmp.eq.s32.totalorder %s20, 1
      %p174 = por %p172, %p173
      %p176 = scmp.ne.s32.totalorder %s159, %s175
      %p177 = scmp.eq.s32.totalorder %s20, 0
      %p178 = por %p176, %p177
      %s179 = ssub.s32 %s14, %s21
      %p180 = scmp.eq.s32.totalorder %s179, 0
      %s182 = sadd.s32 %s181, 1
      %s183 = scalar_select %p180, %s181, %s182
      %p186 = pneg %p180
      %p187 = scmp.eq.s32.totalorder %s14, 1
      %p188 = por %p186, %p187
      %p189 = scmp.ne.s32.totalorder %s181, %s184
      %p190 = scmp.eq.s32.totalorder %s14, 0
      %p191 = por %p189, %p190
      %p192 = scmp.ne.s32.totalorder %s181, %s184
      %p193 = scmp.eq.s32.totalorder %s19, 1
      %p194 = por %p192, %p193
      %p195 = scmp.ne.s32.totalorder %s184, %s185
      %p196 = scmp.eq.s32.totalorder %s19, 0
      %p197 = por %p195, %p196
      %p198 = scmp.ne.s32.totalorder %s184, %s185
      %p199 = scmp.eq.s32.totalorder %s20, 1
      %p200 = por %p198, %p199
      %p202 = scmp.ne.s32.totalorder %s185, %s201
      %p203 = scmp.eq.s32.totalorder %s20, 0
      %p204 = por %p202, %p203
      %p205 = scmp.le.s32.totalorder 1, %s14
      %p206 = scmp.lt.s32.totalorder %s14, 3
      %p207 = pnand %p205, %p206
      %p208 = pneg %p207
      // Predicated region
      $region9: #{base_model_forward.5} parent=5 // pred_check
        _
      $region10: #{base_model_forward.5} parent=5 // pred_check_branch
        %210 = sbr.rel (%p207) target = $region12
      $region11: #{base_model_forward.5} parent=5 // pred_region
        %s211 = ssub.s32 %s14, 1
        // Predicated region
        $region13: #{base_model_forward.5} parent=11 // pred_check
          %p212 = pneg %p61
        $region14: #{base_model_forward.5} parent=11 // pred_check_branch
          %214 = sbr.rel (%p212) target = $region16
        $region15: #{base_model_forward.5} parent=11 // pred_region
          _
        $region16: #{base_model_forward.5} parent=11 // pred_fallthru
          _
        // Predicated region
        $region17: #{base_model_forward.5} parent=11 // pred_check
          %p215 = pneg %p82
        $region18: #{base_model_forward.5} parent=11 // pred_check_branch
          %217 = sbr.rel (%p215) target = $region20
        $region19: #{base_model_forward.5} parent=11 // pred_region
          _
        $region20: #{base_model_forward.5} parent=11 // pred_fallthru
          _
        // Predicated region
        $region21: #{base_model_forward.5} parent=11 // pred_check
          %p218 = pneg %p103
        $region22: #{base_model_forward.5} parent=11 // pred_check_branch
          %220 = sbr.rel (%p218) target = $region24
        $region23: #{base_model_forward.5} parent=11 // pred_region
          _
        $region24: #{base_model_forward.5} parent=11 // pred_fallthru
          _
        // Predicated region
        $region25: #{base_model_forward.5} parent=11 // pred_check
          %p221 = pneg %p124
        $region26: #{base_model_forward.5} parent=11 // pred_check_branch
          %223 = sbr.rel (%p221) target = $region28
        $region27: #{base_model_forward.5} parent=11 // pred_region
          _
        $region28: #{base_model_forward.5} parent=11 // pred_fallthru
          _
        // Predicated region
        $region29: #{base_model_forward.5} parent=11 // pred_check
          %p224 = pneg %p145
        $region30: #{base_model_forward.5} parent=11 // pred_check_branch
          %226 = sbr.rel (%p224) target = $region32
        $region31: #{base_model_forward.5} parent=11 // pred_region
          _
        $region32: #{base_model_forward.5} parent=11 // pred_fallthru
          _
      $region12: #{base_model_forward.5} parent=5 // pred_fallthru
        _
      %p227 = scmp.lt.s32.totalorder %s14, 2
      // Predicated region
      $region33: #{base_model_forward.5} parent=5 // pred_check
        %p228 = pneg %p227
      $region34: #{base_model_forward.5} parent=5 // pred_check_branch
        %230 = sbr.rel (%p228) target = $region36
      $region35: #{base_model_forward.5} parent=5 // pred_region
        // Predicated region
        $region37: #{base_model_forward.5} parent=35 // pred_check
          %p231 = pneg %p34
        $region38: #{base_model_forward.5} parent=35 // pred_check_branch
          %233 = sbr.rel (%p231) target = $region40
        $region39: #{base_model_forward.5} parent=35 // pred_region
          %s234 = sand.u32 %s24, 1
          %s235 = sand.u32 %s24, 1
          %s236 = smul.addr %s235, 32
          %s237 = scalar_lea.vmem [#allocation2], %s236
          %s238 = smul.u32 2, %s14
          %s239 = smul.addr %s238, 4
          %s240 = scalar_lea.vmem %s0, %s239
          // Predicated region
          $region41: #{base_model_forward.5} parent=39 // pred_check
            _
          $region42: #{base_model_forward.5} parent=39 // pred_check_branch
            %242 = sbr.rel (0) target = $region44
          $region43: #{base_model_forward.5} parent=39 // pred_region
            // Predicated region
            $region45: #{base_model_forward.5} parent=43 // pred_check
              _
            $region46: #{base_model_forward.5} parent=43 // pred_check_branch
              %244 = sbr.rel (0) target = $region48
            $region47: #{base_model_forward.5} parent=43 // pred_region
              // Predicated region
              $region60: #{base_model_forward.5} parent=47 // pred_check
                _
              $region61: #{base_model_forward.5} parent=47 // pred_check_branch
                %266 = sbr.rel (0) target = $region63
              $region62: #{base_model_forward.5} parent=47 // pred_region
                loop: start=0, step=1, limit=1
                $region64: #{base_model_forward.5} parent=62 // loop_pre_header
                  _
                $region65: #{base_model_forward.5} parent=62 // loop_header
                  %s268 = sphi 0, %s272
                  %p269 = scmp.ge.s32.totalorder %s268, 1
                  %s273 = sphi %s240, %s240
                  %s274 = sphi %s237, %s237
                $region66: #{base_model_forward.5} parent=62 // loop_header_branch
                  %271 = sbr.rel (%p269) target = $region70
                $region67: #{base_model_forward.5} parent=62 // loop_body
                  %v275 = vld [vmem:[%s273] sm:$0xff]
                  %276 = vst [vmem:[%s274] sm:$0xff] %v275
                  %v277 = vld [vmem:[%s273 + $0x10] sm:$0xff]
                  %278 = vst [vmem:[%s274 + $0x8] sm:$0xff] %v277
                  %v279 = vld [vmem:[%s273 + $0x20] sm:$0xff]
                  %280 = vst [vmem:[%s274 + $0x10] sm:$0xff] %v279
                  %v281 = vld [vmem:[%s273 + $0x30] sm:$0xff]
                  %282 = vst [vmem:[%s274 + $0x18] sm:$0xff] %v281
                $region68: #{base_model_forward.5} parent=62 // loop_footer
                  %s272 = sadd.s32 1, %s268
                $region69: #{base_model_forward.5} parent=62 // loop_footer_branch
                  %267 = sbr.rel target = $region65
                $region70: #{base_model_forward.5} parent=62 // loop_exit
                  _
              $region63: #{base_model_forward.5} parent=47 // pred_fallthru
                _
              // Predicated region
              $region71: #{base_model_forward.5} parent=47 // pred_check
                _
              $region72: #{base_model_forward.5} parent=47 // pred_check_branch
                %284 = sbr.rel target = $region74
              $region73: #{base_model_forward.5} parent=47 // pred_region
                _
              $region74: #{base_model_forward.5} parent=47 // pred_fallthru
                _
            $region48: #{base_model_forward.5} parent=43 // pred_fallthru
              _
            // Predicated region
            $region49: #{base_model_forward.5} parent=43 // pred_check
              _
            $region50: #{base_model_forward.5} parent=43 // pred_check_branch
              %246 = sbr.rel target = $region52
            $region51: #{base_model_forward.5} parent=43 // pred_region
              %s248 = ssub.s32 256, 1
              loop: start=0, step=1, limit=1
              $region53: #{base_model_forward.5} parent=51 // loop_pre_header
                _
              $region54: #{base_model_forward.5} parent=51 // loop_header
                %s250 = sphi 0, %s254
                %p251 = scmp.ge.s32.totalorder %s250, 1
                %s255 = sphi %s240, %s240
                %s256 = sphi %s237, %s237
              $region55: #{base_model_forward.5} parent=51 // loop_header_branch
                %253 = sbr.rel (%p251) target = $region59
              $region56: #{base_model_forward.5} parent=51 // loop_body
                %v257 = vld [vmem:[%s255] sm:%s248]
                %258 = vst [vmem:[%s256] sm:%s248] %v257
                %v259 = vld [vmem:[%s255 + $0x10] sm:%s248]
                %260 = vst [vmem:[%s256 + $0x8] sm:%s248] %v259
                %v261 = vld [vmem:[%s255 + $0x20] sm:%s248]
                %262 = vst [vmem:[%s256 + $0x10] sm:%s248] %v261
                %v263 = vld [vmem:[%s255 + $0x30] sm:%s248]
                %264 = vst [vmem:[%s256 + $0x18] sm:%s248] %v263
              $region57: #{base_model_forward.5} parent=51 // loop_footer
                %s254 = sadd.s32 1, %s250
              $region58: #{base_model_forward.5} parent=51 // loop_footer_branch
                %249 = sbr.rel target = $region54
              $region59: #{base_model_forward.5} parent=51 // loop_exit
                _
            $region52: #{base_model_forward.5} parent=43 // pred_fallthru
              _
          $region44: #{base_model_forward.5} parent=39 // pred_fallthru
            _
          %285 = vnop
        $region40: #{base_model_forward.5} parent=35 // pred_fallthru
          _
      $region36: #{base_model_forward.5} parent=5 // pred_fallthru
        _
      %p286 = scmp.le.s32.totalorder 1, %s14
      %p287 = scmp.lt.s32.totalorder %s14, 3
      %p288 = pnand %p286, %p287
      %p289 = pneg %p288
      // Predicated region
      $region75: #{base_model_forward.5} parent=5 // pred_check
        _
      $region76: #{base_model_forward.5} parent=5 // pred_check_branch
        %291 = sbr.rel (%p288) target = $region78
      $region77: #{base_model_forward.5} parent=5 // pred_region
        %s292 = ssub.s32 %s14, 1
        %s293 = sand.u32 %s27, 1
        %s294 = sand.u32 %s27, 1
        %s295 = smul.addr %s294, 32
        %s296 = scalar_lea.vmem [#allocation2], %s295
        // Predicated region
        $region79: #{base_model_forward.5} parent=77 // pred_check
          %p297 = pneg %p40
        $region80: #{base_model_forward.5} parent=77 // pred_check_branch
          %299 = sbr.rel (%p297) target = $region82
        $region81: #{base_model_forward.5} parent=77 // pred_region
          _
        $region82: #{base_model_forward.5} parent=77 // pred_fallthru
          _
        %s300 = sand.u32 %s27, 1
        %s301 = sand.u32 %s27, 1
        %s302 = smul.addr %s301, 32
        %s303 = scalar_lea.vmem [#allocation2], %s302
        %p304 = pneg %p40
        %p305 = pneg %p37
        %p306 = pneg %p61
        %p307 = pneg %p58
        %p308 = pneg %p82
        %p309 = pneg %p79
        %p310 = pneg %p103
        %p311 = pneg %p100
        %p312 = pneg %p124
        %p313 = pneg %p121
        %p314 = pneg %p145
        %p315 = pneg %p142
        %p316 = pneg %p171
        %p317 = pneg %p168
        %s318 = sand.u32 %s158, 1
        %s319 = sand.u32 %s158, 1
        %s320 = smul.addr %s319, 32
        %s321 = scalar_lea.vmem [#allocation3], %s320
        %p322 = pneg %p197
        %p323 = pneg %p194
        %s324 = sand.u32 %s184, 1
        %s325 = sand.u32 %s184, 1
        %s326 = smul.addr %s325, 64
        %s327 = scalar_lea.vmem [#allocation4], %s326
        %s328 = smul.u32 2, %s19
        %s329 = smul.u32 2, %s19
        %s330 = smul.u32 2, %s19
        %v332 = vld [vmem:[%s1] sm:$0xf]
        %v333 = vld [vmem:[%s1 + $0x4] sm:$0xf]
        %v334 = vld [vmem:[%s1 + $0x8] sm:$0xf]
        %v335 = vld [vmem:[%s1 + $0xc] sm:$0xf]
        %v336 = vld [vmem:[%s296] sm:$0xff]
        %v337 = vld [vmem:[%s296 + $0x8] sm:$0xff]
        %v338 = vld [vmem:[%s296 + $0x10] sm:$0xff]
        %v339 = vld [vmem:[%s296 + $0x18] sm:$0x33]
        %v340 = vld [vmem:[%s2] sm:$0xff]
        %v341 = vld [vmem:[%s2 + $0x8] sm:$0xff]
        %v342 = vld [vmem:[%s2 + $0x10] sm:$0xff]
        %v343 = vld [vmem:[%s2 + $0x18] sm:$0xff]
        %345 = vset.pattern.permute.xlu0 0
        %346 = vperm.xlu0 %345, %v340
        %v347 = vpop.permute.xlu0 %346
        %350 = vset.pattern.permute.xlu0 0
        %351 = vperm.xlu0 %350, %v341
        %v352 = vpop.permute.xlu0 %351
        %355 = vset.pattern.permute.xlu0 0
        %356 = vperm.xlu0 %355, %v342
        %v357 = vpop.permute.xlu0 %356
        %360 = vset.pattern.permute.xlu0 0
        %361 = vperm.xlu0 %360, %v343
        %v362 = vpop.permute.xlu0 %361
        %v368 = vunpack.c.l.b16 %v332
        %v369 = vunpack.c.l.b16 %v333
        %v370 = vunpack.c.l.b16 %v334
        %v371 = vunpack.c.l.b16 %v335
        %v372 = vpack.c.b16 %v369, %v368
        %v373 = vpack.c.b16 %v371, %v370
        %v378 = vunpack.c.l.b16 %v336
        %v379 = vunpack.c.h.b16 %v336
        %v380 = vunpack.c.l.b16 %v337
        %v381 = vunpack.c.h.b16 %v337
        %v382 = vunpack.c.l.b16 %v338
        %v383 = vunpack.c.h.b16 %v338
        %v384 = vunpack.c.l.b16 %v339
        %v385 = vunpack.c.h.b16 %v339
        %v386 = vpack.c.b16 %v380, %v378
        %v387 = vpack.c.b16 %v381, %v379
        %v388 = vpack.c.b16 %v384, %v382
        %v389 = vpack.c.b16 %v385, %v383
        %vm392 = vcmask 220160
        %v394 = vsel %vm392, %v372, 0
        %v397 = vsel %vm392, %v373, 0
        %vm399 = vcmask 1044480
        %vm400 = vcmask 1045504
        %v401 = vsel %vm399, 4294967295, 65535
        %v402 = vsel %vm400, %v401, 0
        %v404 = vand.u32 %v388, %v402
        %v407 = vand.u32 %v389, %v402
        %409 = vmatpush.bf16.msra.mxu0 0
        %410 = vmatpush.bf16.msra.mxu0 0
        %411 = vmatpush.bf16.msra.mxu0 0
        %412 = vmatpush.bf16.msra.mxu0 0
        %413 = vmatpush.bf16.msra.mxu0 0
        %414 = vmatpush.bf16.msra.mxu0 0
        %415 = vmatpush.bf16.msra.mxu0 %v404
        %416 = vmatpush.bf16.msra.mxu0 %v386
        %417 = vmatmul.bf16.gmra.mxu0 %v394
        %v418 = vpop.f32.mrf.mxu0
        %v419 = vadd.f32 %v347, %v418
        %v420 = vpop.f32.mrf.mxu0
        %v421 = vadd.f32 %v352, %v420
        %422 = vmatmul.bf16.gmra.mxu0 %v397
        %v423 = vpop.f32.mrf.mxu0
        %v424 = vadd.f32 %v357, %v423
        %v425 = vpop.f32.mrf.mxu0
        %v426 = vadd.f32 %v362, %v425
        %427 = vdwg.mxu0
        %428 = vmatpush.bf16.msra.mxu0 0
        %429 = vmatpush.bf16.msra.mxu0 0
        %430 = vmatpush.bf16.msra.mxu0 0
        %431 = vmatpush.bf16.msra.mxu0 0
        %432 = vmatpush.bf16.msra.mxu0 0
        %433 = vmatpush.bf16.msra.mxu0 0
        %434 = vmatpush.bf16.msra.mxu0 %v407
        %435 = vmatpush.bf16.msra.mxu0 %v387
        %436 = vmatmul.bf16.gmra.mxu0 %v394
        %v437 = vpop.f32.mrf.mxu0
        %v438 = vadd.f32 %v347, %v437
        %v439 = vpop.f32.mrf.mxu0
        %v440 = vadd.f32 %v352, %v439
        %441 = vmatmul.bf16.gmra.mxu0 %v397
        %v442 = vpop.f32.mrf.mxu0
        %v443 = vadd.f32 %v357, %v442
        %v444 = vpop.f32.mrf.mxu0
        %v445 = vadd.f32 %v362, %v444
        %446 = vdwg.mxu0
        %v447 = vmax.f32 %v419, 0.0
        %v448 = vmax.f32 %v438, 0.0
        %v449 = vmax.f32 %v421, 0.0
        %v450 = vmax.f32 %v440, 0.0
        %v451 = vmax.f32 %v424, 0.0
        %v452 = vmax.f32 %v443, 0.0
        %v453 = vmax.f32 %v426, 0.0
        %v454 = vmax.f32 %v445, 0.0
        %v455 = vpack.c.bf16 %v449, %v447
        %v456 = vpack.c.bf16 %v450, %v448
        %v457 = vpack.c.bf16 %v453, %v451
        %v458 = vpack.c.bf16 %v454, %v452
        %v459 = vld [vmem:[%s3] sm:$0xf]
        %v460 = vld [vmem:[%s3 + $0x4] sm:$0xf]
        %v461 = vld [vmem:[%s3 + $0x8] sm:$0xf]
        %v462 = vld [vmem:[%s3 + $0xc] sm:$0xf]
        %v463 = vld [vmem:[%s4] sm:$0xff]
        %v464 = vld [vmem:[%s4 + $0x8] sm:$0xff]
        %v465 = vld [vmem:[%s4 + $0x10] sm:$0xff]
        %v466 = vld [vmem:[%s4 + $0x18] sm:$0xff]
        %468 = vset.pattern.permute.xlu0 0
        %469 = vperm.xlu0 %468, %v463
        %v470 = vpop.permute.xlu0 %469
        %473 = vset.pattern.permute.xlu0 0
        %474 = vperm.xlu0 %473, %v464
        %v475 = vpop.permute.xlu0 %474
        %478 = vset.pattern.permute.xlu0 0
        %479 = vperm.xlu0 %478, %v465
        %v480 = vpop.permute.xlu0 %479
        %483 = vset.pattern.permute.xlu0 0
        %484 = vperm.xlu0 %483, %v466
        %v485 = vpop.permute.xlu0 %484
        %v491 = vunpack.c.l.b16 %v459
        %v492 = vunpack.c.l.b16 %v460
        %v493 = vunpack.c.l.b16 %v461
        %v494 = vunpack.c.l.b16 %v462
        %v495 = vpack.c.b16 %v492, %v491
        %v496 = vpack.c.b16 %v494, %v493
        %vm497 = vcmask 261120
        %v499 = vsel %vm497, %v495, 0
        %v502 = vsel %vm497, %v496, 0
        %504 = vmatpush.bf16.msra.mxu0 0
        %505 = vmatpush.bf16.msra.mxu0 0
        %506 = vmatpush.bf16.msra.mxu0 0
        %507 = vmatpush.bf16.msra.mxu0 0
        %508 = vmatpush.bf16.msra.mxu0 0
        %509 = vmatpush.bf16.msra.mxu0 0
        %510 = vmatpush.bf16.msra.mxu0 %v457
        %511 = vmatpush.bf16.msra.mxu0 %v455
        %512 = vmatmul.bf16.gmra.mxu0 %v499
        %v513 = vpop.f32.mrf.mxu0
        %v514 = vadd.f32 %v470, %v513
        %v515 = vpop.f32.mrf.mxu0
        %v516 = vadd.f32 %v475, %v515
        %517 = vmatmul.bf16.gmra.mxu0 %v502
        %v518 = vpop.f32.mrf.mxu0
        %v519 = vadd.f32 %v480, %v518
        %v520 = vpop.f32.mrf.mxu0
        %v521 = vadd.f32 %v485, %v520
        %522 = vdwg.mxu0
        %523 = vmatpush.bf16.msra.mxu0 0
        %524 = vmatpush.bf16.msra.mxu0 0
        %525 = vmatpush.bf16.msra.mxu0 0
        %526 = vmatpush.bf16.msra.mxu0 0
        %527 = vmatpush.bf16.msra.mxu0 0
        %528 = vmatpush.bf16.msra.mxu0 0
        %529 = vmatpush.bf16.msra.mxu0 %v458
        %530 = vmatpush.bf16.msra.mxu0 %v456
        %531 = vmatmul.bf16.gmra.mxu0 %v499
        %v532 = vpop.f32.mrf.mxu0
        %v533 = vadd.f32 %v470, %v532
        %v534 = vpop.f32.mrf.mxu0
        %v535 = vadd.f32 %v475, %v534
        %536 = vmatmul.bf16.gmra.mxu0 %v502
        %v537 = vpop.f32.mrf.mxu0
        %v538 = vadd.f32 %v480, %v537
        %v539 = vpop.f32.mrf.mxu0
        %v540 = vadd.f32 %v485, %v539
        %541 = vdwg.mxu0
        %v542 = vmax.f32 %v514, 0.0
        %v543 = vmax.f32 %v533, 0.0
        %v544 = vmax.f32 %v516, 0.0
        %v545 = vmax.f32 %v535, 0.0
        %v546 = vmax.f32 %v519, 0.0
        %v547 = vmax.f32 %v538, 0.0
        %v548 = vmax.f32 %v521, 0.0
        %v549 = vmax.f32 %v540, 0.0
        %v550 = vpack.c.bf16 %v543, %v542
        %v551 = vpack.c.bf16 %v545, %v544
        %v552 = vpack.c.bf16 %v547, %v546
        %v553 = vpack.c.bf16 %v549, %v548
        %554 = vst [vmem:[%s321] sm:$0xff] %v550
        %555 = vst [vmem:[%s321 + $0x8] sm:$0xff] %v551
        %556 = vst [vmem:[%s321 + $0x10] sm:$0xff] %v552
        %557 = vst [vmem:[%s321 + $0x18] sm:$0xff] %v553
        %v558 = vld [vmem:[%s5] sm:$0xf]
        %v559 = vld [vmem:[%s5 + $0x4] sm:$0xf]
        %v560 = vld [vmem:[%s5 + $0x8] sm:$0xf]
        %v561 = vld [vmem:[%s5 + $0xc] sm:$0xf]
        %v562 = vld [vmem:[%s5 + $0x10] sm:$0xf]
        %v563 = vld [vmem:[%s5 + $0x14] sm:$0xf]
        %v564 = vld [vmem:[%s5 + $0x18] sm:$0xf]
        %v565 = vld [vmem:[%s5 + $0x1c] sm:$0xf]
        %v574 = vunpack.c.l.b16 %v558
        %v575 = vunpack.c.l.b16 %v559
        %v576 = vunpack.c.l.b16 %v560
        %v577 = vunpack.c.l.b16 %v561
        %v578 = vunpack.c.l.b16 %v562
        %v579 = vunpack.c.l.b16 %v563
        %v580 = vunpack.c.l.b16 %v564
        %v581 = vunpack.c.l.b16 %v565
        %v582 = vpack.c.b16 %v575, %v574
        %v583 = vpack.c.b16 %v577, %v576
        %v584 = vpack.c.b16 %v579, %v578
        %v585 = vpack.c.b16 %v581, %v580
        %v590 = vunpack.c.l.b16 %v550
        %v591 = vunpack.c.h.b16 %v550
        %v592 = vunpack.c.l.b16 %v551
        %v593 = vunpack.c.h.b16 %v551
        %v594 = vunpack.c.l.b16 %v552
        %v595 = vunpack.c.h.b16 %v552
        %v596 = vunpack.c.l.b16 %v553
        %v597 = vunpack.c.h.b16 %v553
        %v598 = vpack.c.b16 %v592, %v590
        %v599 = vpack.c.b16 %v593, %v591
        %v600 = vpack.c.b16 %v596, %v594
        %v601 = vpack.c.b16 %v597, %v595
        %v607 = vsel %vm497, %v582, 0
        %v610 = vsel %vm497, %v583, 0
        %v613 = vsel %vm497, %v584, 0
        %v616 = vsel %vm497, %v585, 0
        %618 = vmatpush.bf16.msra.mxu0 0
        %619 = vmatpush.bf16.msra.mxu0 0
        %620 = vmatpush.bf16.msra.mxu0 0
        %621 = vmatpush.bf16.msra.mxu0 0
        %622 = vmatpush.bf16.msra.mxu0 0
        %623 = vmatpush.bf16.msra.mxu0 0
        %624 = vmatpush.bf16.msra.mxu0 %v600
        %625 = vmatpush.bf16.msra.mxu0 %v598
        %626 = vmatmul.bf16.gmra.mxu0 %v607
        %v627 = vpop.f32.mrf.mxu0
        %v628 = vadd.f32 0.0, %v627
        %v629 = vpop.f32.mrf.mxu0
        %v630 = vadd.f32 0.0, %v629
        %631 = vmatmul.bf16.gmra.mxu0 %v610
        %v632 = vpop.f32.mrf.mxu0
        %v633 = vadd.f32 0.0, %v632
        %v634 = vpop.f32.mrf.mxu0
        %v635 = vadd.f32 0.0, %v634
        %636 = vmatmul.bf16.gmra.mxu0 %v613
        %v637 = vpop.f32.mrf.mxu0
        %v638 = vadd.f32 0.0, %v637
        %v639 = vpop.f32.mrf.mxu0
        %v640 = vadd.f32 0.0, %v639
        %641 = vmatmul.bf16.gmra.mxu0 %v616
        %v642 = vpop.f32.mrf.mxu0
        %v643 = vadd.f32 0.0, %v642
        %v644 = vpop.f32.mrf.mxu0
        %v645 = vadd.f32 0.0, %v644
        %646 = vdwg.mxu0
        %647 = vmatpush.bf16.msra.mxu0 0
        %648 = vmatpush.bf16.msra.mxu0 0
        %649 = vmatpush.bf16.msra.mxu0 0
        %650 = vmatpush.bf16.msra.mxu0 0
        %651 = vmatpush.bf16.msra.mxu0 0
        %652 = vmatpush.bf16.msra.mxu0 0
        %653 = vmatpush.bf16.msra.mxu0 %v601
        %654 = vmatpush.bf16.msra.mxu0 %v599
        %655 = vmatmul.bf16.gmra.mxu0 %v607
        %v656 = vpop.f32.mrf.mxu0
        %v657 = vadd.f32 0.0, %v656
        %v658 = vpop.f32.mrf.mxu0
        %v659 = vadd.f32 0.0, %v658
        %660 = vmatmul.bf16.gmra.mxu0 %v610
        %v661 = vpop.f32.mrf.mxu0
        %v662 = vadd.f32 0.0, %v661
        %v663 = vpop.f32.mrf.mxu0
        %v664 = vadd.f32 0.0, %v663
        %665 = vmatmul.bf16.gmra.mxu0 %v613
        %v666 = vpop.f32.mrf.mxu0
        %v667 = vadd.f32 0.0, %v666
        %v668 = vpop.f32.mrf.mxu0
        %v669 = vadd.f32 0.0, %v668
        %670 = vmatmul.bf16.gmra.mxu0 %v616
        %v671 = vpop.f32.mrf.mxu0
        %v672 = vadd.f32 0.0, %v671
        %v673 = vpop.f32.mrf.mxu0
        %v674 = vadd.f32 0.0, %v673
        %675 = vdwg.mxu0
        %v676 = vpack.c.bf16 %v657, %v628
        %v677 = vpack.c.bf16 %v659, %v630
        %v678 = vpack.c.bf16 %v662, %v633
        %v679 = vpack.c.bf16 %v664, %v635
        %v680 = vpack.c.bf16 %v667, %v638
        %v681 = vpack.c.bf16 %v669, %v640
        %v682 = vpack.c.bf16 %v672, %v643
        %v683 = vpack.c.bf16 %v674, %v645
        %684 = vst [vmem:[%s327] sm:$0xff] %v676
        %685 = vst [vmem:[%s327 + $0x8] sm:$0xff] %v677
        %686 = vst [vmem:[%s327 + $0x10] sm:$0xff] %v678
        %687 = vst [vmem:[%s327 + $0x18] sm:$0xff] %v679
        %688 = vst [vmem:[%s327 + $0x20] sm:$0xff] %v680
        %689 = vst [vmem:[%s327 + $0x28] sm:$0xff] %v681
        %690 = vst [vmem:[%s327 + $0x30] sm:$0xff] %v682
        %691 = vst [vmem:[%s327 + $0x38] sm:$0xff] %v683
        %s692 = sand.u32 %s158, 1
        %s693 = sand.u32 %s158, 1
        %s694 = smul.addr %s693, 32
        %s695 = scalar_lea.vmem [#allocation3], %s694
        %s696 = sand.u32 %s184, 1
        %s697 = sand.u32 %s184, 1
        %s698 = smul.addr %s697, 64
        %s699 = scalar_lea.vmem [#allocation4], %s698
        // Predicated region
        $region83: #{base_model_forward.5} parent=77 // pred_check
          %p700 = pneg %p168
        $region84: #{base_model_forward.5} parent=77 // pred_check_branch
          %702 = sbr.rel (%p700) target = $region86
        $region85: #{base_model_forward.5} parent=77 // pred_region
          %s703 = smul.u32 2, %s19
          %s704 = smul.addr %s703, 4
          %s705 = scalar_lea.vmem %s6, %s704
          // Predicated region
          $region87: #{base_model_forward.5} parent=85 // pred_check
            _
          $region88: #{base_model_forward.5} parent=85 // pred_check_branch
            %707 = sbr.rel (0) target = $region90
          $region89: #{base_model_forward.5} parent=85 // pred_region
            // Predicated region
            $region91: #{base_model_forward.5} parent=89 // pred_check
              _
            $region92: #{base_model_forward.5} parent=89 // pred_check_branch
              %709 = sbr.rel (0) target = $region94
            $region93: #{base_model_forward.5} parent=89 // pred_region
              // Predicated region
              $region106: #{base_model_forward.5} parent=93 // pred_check
                _
              $region107: #{base_model_forward.5} parent=93 // pred_check_branch
                %731 = sbr.rel (0) target = $region109
              $region108: #{base_model_forward.5} parent=93 // pred_region
                loop: start=0, step=1, limit=1
                $region110: #{base_model_forward.5} parent=108 // loop_pre_header
                  _
                $region111: #{base_model_forward.5} parent=108 // loop_header
                  %s733 = sphi 0, %s737
                  %p734 = scmp.ge.s32.totalorder %s733, 1
                  %s738 = sphi %s695, %s695
                  %s739 = sphi %s705, %s705
                $region112: #{base_model_forward.5} parent=108 // loop_header_branch
                  %736 = sbr.rel (%p734) target = $region116
                $region113: #{base_model_forward.5} parent=108 // loop_body
                  %v740 = vld [vmem:[%s738] sm:$0xff]
                  %741 = vst [vmem:[%s739] sm:$0xff] %v740
                  %v742 = vld [vmem:[%s738 + $0x8] sm:$0xff]
                  %743 = vst [vmem:[%s739 + $0x10] sm:$0xff] %v742
                  %v744 = vld [vmem:[%s738 + $0x10] sm:$0xff]
                  %745 = vst [vmem:[%s739 + $0x20] sm:$0xff] %v744
                  %v746 = vld [vmem:[%s738 + $0x18] sm:$0xff]
                  %747 = vst [vmem:[%s739 + $0x30] sm:$0xff] %v746
                $region114: #{base_model_forward.5} parent=108 // loop_footer
                  %s737 = sadd.s32 1, %s733
                $region115: #{base_model_forward.5} parent=108 // loop_footer_branch
                  %732 = sbr.rel target = $region111
                $region116: #{base_model_forward.5} parent=108 // loop_exit
                  _
              $region109: #{base_model_forward.5} parent=93 // pred_fallthru
                _
              // Predicated region
              $region117: #{base_model_forward.5} parent=93 // pred_check
                _
              $region118: #{base_model_forward.5} parent=93 // pred_check_branch
                %749 = sbr.rel target = $region120
              $region119: #{base_model_forward.5} parent=93 // pred_region
                _
              $region120: #{base_model_forward.5} parent=93 // pred_fallthru
                _
            $region94: #{base_model_forward.5} parent=89 // pred_fallthru
              _
            // Predicated region
            $region95: #{base_model_forward.5} parent=89 // pred_check
              _
            $region96: #{base_model_forward.5} parent=89 // pred_check_branch
              %711 = sbr.rel target = $region98
            $region97: #{base_model_forward.5} parent=89 // pred_region
              %s713 = ssub.s32 256, 1
              loop: start=0, step=1, limit=1
              $region99: #{base_model_forward.5} parent=97 // loop_pre_header
                _
              $region100: #{base_model_forward.5} parent=97 // loop_header
                %s715 = sphi 0, %s719
                %p716 = scmp.ge.s32.totalorder %s715, 1
                %s720 = sphi %s695, %s695
                %s721 = sphi %s705, %s705
              $region101: #{base_model_forward.5} parent=97 // loop_header_branch
                %718 = sbr.rel (%p716) target = $region105
              $region102: #{base_model_forward.5} parent=97 // loop_body
                %v722 = vld [vmem:[%s720] sm:%s713]
                %723 = vst [vmem:[%s721] sm:%s713] %v722
                %v724 = vld [vmem:[%s720 + $0x8] sm:%s713]
                %725 = vst [vmem:[%s721 + $0x10] sm:%s713] %v724
                %v726 = vld [vmem:[%s720 + $0x10] sm:%s713]
                %727 = vst [vmem:[%s721 + $0x20] sm:%s713] %v726
                %v728 = vld [vmem:[%s720 + $0x18] sm:%s713]
                %729 = vst [vmem:[%s721 + $0x30] sm:%s713] %v728
              $region103: #{base_model_forward.5} parent=97 // loop_footer
                %s719 = sadd.s32 1, %s715
              $region104: #{base_model_forward.5} parent=97 // loop_footer_branch
                %714 = sbr.rel target = $region100
              $region105: #{base_model_forward.5} parent=97 // loop_exit
                _
            $region98: #{base_model_forward.5} parent=89 // pred_fallthru
              _
          $region90: #{base_model_forward.5} parent=85 // pred_fallthru
            _
          %750 = vnop
        $region86: #{base_model_forward.5} parent=77 // pred_fallthru
          _
        // Predicated region
        $region121: #{base_model_forward.5} parent=77 // pred_check
          %p751 = pneg %p194
        $region122: #{base_model_forward.5} parent=77 // pred_check_branch
          %753 = sbr.rel (%p751) target = $region124
        $region123: #{base_model_forward.5} parent=77 // pred_region
          %s754 = smul.u32 2, %s19
          %s755 = smul.addr %s754, 4
          %s756 = scalar_lea.vmem %s7, %s755
          // Predicated region
          $region125: #{base_model_forward.5} parent=123 // pred_check
            _
          $region126: #{base_model_forward.5} parent=123 // pred_check_branch
            %758 = sbr.rel (0) target = $region128
          $region127: #{base_model_forward.5} parent=123 // pred_region
            // Predicated region
            $region129: #{base_model_forward.5} parent=127 // pred_check
              _
            $region130: #{base_model_forward.5} parent=127 // pred_check_branch
              %760 = sbr.rel (0) target = $region132
            $region131: #{base_model_forward.5} parent=127 // pred_region
              // Predicated region
              $region144: #{base_model_forward.5} parent=131 // pred_check
                _
              $region145: #{base_model_forward.5} parent=131 // pred_check_branch
                %790 = sbr.rel (0) target = $region147
              $region146: #{base_model_forward.5} parent=131 // pred_region
                loop: start=0, step=1, limit=1
                $region148: #{base_model_forward.5} parent=146 // loop_pre_header
                  _
                $region149: #{base_model_forward.5} parent=146 // loop_header
                  %s792 = sphi 0, %s796
                  %p793 = scmp.ge.s32.totalorder %s792, 1
                  %s797 = sphi %s699, %s699
                  %s798 = sphi %s756, %s756
                $region150: #{base_model_forward.5} parent=146 // loop_header_branch
                  %795 = sbr.rel (%p793) target = $region154
                $region151: #{base_model_forward.5} parent=146 // loop_body
                  %v799 = vld [vmem:[%s797] sm:$0xff]
                  %800 = vst [vmem:[%s798] sm:$0xff] %v799
                  %v801 = vld [vmem:[%s797 + $0x8] sm:$0xff]
                  %802 = vst [vmem:[%s798 + $0x10] sm:$0xff] %v801
                  %v803 = vld [vmem:[%s797 + $0x10] sm:$0xff]
                  %804 = vst [vmem:[%s798 + $0x20] sm:$0xff] %v803
                  %v805 = vld [vmem:[%s797 + $0x18] sm:$0xff]
                  %806 = vst [vmem:[%s798 + $0x30] sm:$0xff] %v805
                  %v807 = vld [vmem:[%s797 + $0x20] sm:$0xff]
                  %808 = vst [vmem:[%s798 + $0x40] sm:$0xff] %v807
                  %v809 = vld [vmem:[%s797 + $0x28] sm:$0xff]
                  %810 = vst [vmem:[%s798 + $0x50] sm:$0xff] %v809
                  %v811 = vld [vmem:[%s797 + $0x30] sm:$0xff]
                  %812 = vst [vmem:[%s798 + $0x60] sm:$0xff] %v811
                  %v813 = vld [vmem:[%s797 + $0x38] sm:$0xff]
                  %814 = vst [vmem:[%s798 + $0x70] sm:$0xff] %v813
                $region152: #{base_model_forward.5} parent=146 // loop_footer
                  %s796 = sadd.s32 1, %s792
                $region153: #{base_model_forward.5} parent=146 // loop_footer_branch
                  %791 = sbr.rel target = $region149
                $region154: #{base_model_forward.5} parent=146 // loop_exit
                  _
              $region147: #{base_model_forward.5} parent=131 // pred_fallthru
                _
              // Predicated region
              $region155: #{base_model_forward.5} parent=131 // pred_check
                _
              $region156: #{base_model_forward.5} parent=131 // pred_check_branch
                %816 = sbr.rel target = $region158
              $region157: #{base_model_forward.5} parent=131 // pred_region
                _
              $region158: #{base_model_forward.5} parent=131 // pred_fallthru
                _
            $region132: #{base_model_forward.5} parent=127 // pred_fallthru
              _
            // Predicated region
            $region133: #{base_model_forward.5} parent=127 // pred_check
              _
            $region134: #{base_model_forward.5} parent=127 // pred_check_branch
              %762 = sbr.rel target = $region136
            $region135: #{base_model_forward.5} parent=127 // pred_region
              %s764 = ssub.s32 256, 1
              loop: start=0, step=1, limit=1
              $region137: #{base_model_forward.5} parent=135 // loop_pre_header
                _
              $region138: #{base_model_forward.5} parent=135 // loop_header
                %s766 = sphi 0, %s770
                %p767 = scmp.ge.s32.totalorder %s766, 1
                %s771 = sphi %s699, %s699
                %s772 = sphi %s756, %s756
              $region139: #{base_model_forward.5} parent=135 // loop_header_branch
                %769 = sbr.rel (%p767) target = $region143
              $region140: #{base_model_forward.5} parent=135 // loop_body
                %v773 = vld [vmem:[%s771] sm:%s764]
                %774 = vst [vmem:[%s772] sm:%s764] %v773
                %v775 = vld [vmem:[%s771 + $0x8] sm:%s764]
                %776 = vst [vmem:[%s772 + $0x10] sm:%s764] %v775
                %v777 = vld [vmem:[%s771 + $0x10] sm:%s764]
                %778 = vst [vmem:[%s772 + $0x20] sm:%s764] %v777
                %v779 = vld [vmem:[%s771 + $0x18] sm:%s764]
                %780 = vst [vmem:[%s772 + $0x30] sm:%s764] %v779
                %v781 = vld [vmem:[%s771 + $0x20] sm:%s764]
                %782 = vst [vmem:[%s772 + $0x40] sm:%s764] %v781
                %v783 = vld [vmem:[%s771 + $0x28] sm:%s764]
                %784 = vst [vmem:[%s772 + $0x50] sm:%s764] %v783
                %v785 = vld [vmem:[%s771 + $0x30] sm:%s764]
                %786 = vst [vmem:[%s772 + $0x60] sm:%s764] %v785
                %v787 = vld [vmem:[%s771 + $0x38] sm:%s764]
                %788 = vst [vmem:[%s772 + $0x70] sm:%s764] %v787
              $region141: #{base_model_forward.5} parent=135 // loop_footer
                %s770 = sadd.s32 1, %s766
              $region142: #{base_model_forward.5} parent=135 // loop_footer_branch
                %765 = sbr.rel target = $region138
              $region143: #{base_model_forward.5} parent=135 // loop_exit
                _
            $region136: #{base_model_forward.5} parent=127 // pred_fallthru
              _
          $region128: #{base_model_forward.5} parent=123 // pred_fallthru
            _
          %817 = vnop
        $region124: #{base_model_forward.5} parent=77 // pred_fallthru
          _
      $region78: #{base_model_forward.5} parent=5 // pred_fallthru
        _
      %p818 = scmp.le.s32.totalorder 2, %s14
      // Predicated region
      $region159: #{base_model_forward.5} parent=5 // pred_check
        %p819 = pneg %p818
      $region160: #{base_model_forward.5} parent=5 // pred_check_branch
        %821 = sbr.rel (%p819) target = $region162
      $region161: #{base_model_forward.5} parent=5 // pred_region
        %s822 = ssub.s32 %s14, 2
        // Predicated region
        $region163: #{base_model_forward.5} parent=161 // pred_check
          %p823 = pneg %p174
        $region164: #{base_model_forward.5} parent=161 // pred_check_branch
          %825 = sbr.rel (%p823) target = $region166
        $region165: #{base_model_forward.5} parent=161 // pred_region
          %s826 = sand.u32 %s159, 1
          %s827 = sand.u32 %s159, 1
          %s828 = smul.addr %s827, 32
          %s829 = scalar_lea.vmem [#allocation3], %s828
        $region166: #{base_model_forward.5} parent=161 // pred_fallthru
          _
        // Predicated region
        $region167: #{base_model_forward.5} parent=161 // pred_check
          %p830 = pneg %p200
        $region168: #{base_model_forward.5} parent=161 // pred_check_branch
          %832 = sbr.rel (%p830) target = $region170
        $region169: #{base_model_forward.5} parent=161 // pred_region
          %s833 = sand.u32 %s185, 1
          %s834 = sand.u32 %s185, 1
          %s835 = smul.addr %s834, 64
          %s836 = scalar_lea.vmem [#allocation4], %s835
        $region170: #{base_model_forward.5} parent=161 // pred_fallthru
          _
      $region162: #{base_model_forward.5} parent=5 // pred_fallthru
        _
    $region6: #{base_model_forward.5} parent=1 // loop_footer
      %s18 = sadd.s32 1, %s14
    $region7: #{base_model_forward.5} parent=1 // loop_footer_branch
      %13 = sbr.rel target = $region3
    $region8: #{base_model_forward.5} parent=1 // loop_exit
      _

// kernel: base_model_forward.6
$region0: #{base_model_forward.6}
  #allocation0 [shape = 'u32[]', space=smem, size = 0x4, offset = 0x4, fixed_abs, tag = 'smem constant byte address 0x4 - core index']
  #allocation1 [shape = 'u32[72,128]{1,0:T(1,128)}', space=vmem, size = 0x9000, scoped, tag = 'internal scratch']
  %s0 = inlined_call_operand.vmem [shape: bf16[32,128], index: 0, kind: input, shape index: {}]
  %s1 = inlined_call_operand.vmem [shape: bf16[64,32], index: 1, kind: input, shape index: {}]
  %s2 = inlined_call_operand.vmem [shape: f32[64,1], index: 2, kind: input, shape index: {}]
  %s3 = inlined_call_operand.vmem [shape: bf16[64,64], index: 3, kind: input, shape index: {}]
  %s4 = inlined_call_operand.vmem [shape: bf16[64,128], index: 4, kind: output, shape index: {0}]
  %s5 = inlined_call_operand.vmem [shape: bf16[64,128], index: 5, kind: output, shape index: {1}]
  %6 = xla_tuple %s4, %s5
  %s7 = sld [smem:[#allocation0]]
  $region34: #{base_model_forward.6} parent=0
    _
  %s9 = ssub.s32 1, %s7
  %s10 = scalar_select 0, %s9, %s7
  // Predicated region
  $region2: #{base_model_forward.6} parent=0 // pred_check
    _
  $region3: #{base_model_forward.6} parent=0 // pred_check_branch
    %12 = sbr.rel (0) target = $region5
  $region4: #{base_model_forward.6} parent=0 // pred_region
    _
  $region5: #{base_model_forward.6} parent=0 // pred_fallthru
    _
  // Predicated region
  $region6: #{base_model_forward.6} parent=0 // pred_check
    _
  $region7: #{base_model_forward.6} parent=0 // pred_check_branch
    %14 = sbr.rel (0) target = $region9
  $region8: #{base_model_forward.6} parent=0 // pred_region
    _
  $region9: #{base_model_forward.6} parent=0 // pred_fallthru
    _
  // Predicated region
  $region10: #{base_model_forward.6} parent=0 // pred_check
    _
  $region11: #{base_model_forward.6} parent=0 // pred_check_branch
    %16 = sbr.rel (0) target = $region13
  $region12: #{base_model_forward.6} parent=0 // pred_region
    _
  $region13: #{base_model_forward.6} parent=0 // pred_fallthru
    _
  // Predicated region
  $region14: #{base_model_forward.6} parent=0 // pred_check
    _
  $region15: #{base_model_forward.6} parent=0 // pred_check_branch
    %18 = sbr.rel (0) target = $region17
  $region16: #{base_model_forward.6} parent=0 // pred_region
    _
  $region17: #{base_model_forward.6} parent=0 // pred_fallthru
    _
  %v20 = vld [vmem:[%s1] sm:$0xf]
  %v21 = vld [vmem:[%s1 + $0x4] sm:$0xf]
  %v22 = vld [vmem:[%s1 + $0x8] sm:$0xf]
  %v23 = vld [vmem:[%s1 + $0xc] sm:$0xf]
  %v24 = vld [vmem:[%s1 + $0x10] sm:$0xf]
  %v25 = vld [vmem:[%s1 + $0x14] sm:$0xf]
  %v26 = vld [vmem:[%s1 + $0x18] sm:$0xf]
  %v27 = vld [vmem:[%s1 + $0x1c] sm:$0xf]
  %v28 = vld [vmem:[%s0] sm:$0xf]
  %v29 = vld [vmem:[%s0 + $0x4] sm:$0xf]
  %v30 = vld [vmem:[%s0 + $0x8] sm:$0xf]
  %v31 = vld [vmem:[%s0 + $0xc] sm:$0xf]
  %v32 = vld [vmem:[%s2] sm:$0xff]
  %v33 = vld [vmem:[%s2 + $0x8] sm:$0xff]
  %v34 = vld [vmem:[%s2 + $0x10] sm:$0xff]
  %v35 = vld [vmem:[%s2 + $0x18] sm:$0xff]
  %v36 = vld [vmem:[%s2 + $0x20] sm:$0xff]
  %v37 = vld [vmem:[%s2 + $0x28] sm:$0xff]
  %v38 = vld [vmem:[%s2 + $0x30] sm:$0xff]
  %v39 = vld [vmem:[%s2 + $0x38] sm:$0xff]
  %41 = vset.pattern.permute.xlu0 0
  %42 = vperm.xlu0 %41, %v32
  %v43 = vpop.permute.xlu0 %42
  %46 = vset.pattern.permute.xlu0 0
  %47 = vperm.xlu0 %46, %v33
  %v48 = vpop.permute.xlu0 %47
  %51 = vset.pattern.permute.xlu0 0
  %52 = vperm.xlu0 %51, %v34
  %v53 = vpop.permute.xlu0 %52
  %56 = vset.pattern.permute.xlu0 0
  %57 = vperm.xlu0 %56, %v35
  %v58 = vpop.permute.xlu0 %57
  %61 = vset.pattern.permute.xlu0 0
  %62 = vperm.xlu0 %61, %v36
  %v63 = vpop.permute.xlu0 %62
  %66 = vset.pattern.permute.xlu0 0
  %67 = vperm.xlu0 %66, %v37
  %v68 = vpop.permute.xlu0 %67
  %71 = vset.pattern.permute.xlu0 0
  %72 = vperm.xlu0 %71, %v38
  %v73 = vpop.permute.xlu0 %72
  %76 = vset.pattern.permute.xlu0 0
  %77 = vperm.xlu0 %76, %v39
  %v78 = vpop.permute.xlu0 %77
  %v88 = vunpack.c.l.b16 %v20
  %v89 = vunpack.c.l.b16 %v21
  %v90 = vunpack.c.l.b16 %v22
  %v91 = vunpack.c.l.b16 %v23
  %v92 = vunpack.c.l.b16 %v24
  %v93 = vunpack.c.l.b16 %v25
  %v94 = vunpack.c.l.b16 %v26
  %v95 = vunpack.c.l.b16 %v27
  %v96 = vpack.c.b16 %v89, %v88
  %v97 = vpack.c.b16 %v91, %v90
  %v98 = vpack.c.b16 %v93, %v92
  %v99 = vpack.c.b16 %v95, %v94
  %v104 = vunpack.c.l.b16 %v28
  %v105 = vunpack.c.l.b16 %v29
  %v106 = vunpack.c.l.b16 %v30
  %v107 = vunpack.c.l.b16 %v31
  %v108 = vpack.c.b16 %v105, %v104
  %v109 = vpack.c.b16 %v107, %v106
  %vm112 = vcmask 261120
  %v114 = vsel %vm112, %v96, 0
  %v117 = vsel %vm112, %v97, 0
  %v120 = vsel %vm112, %v98, 0
  %v123 = vsel %vm112, %v99, 0
  %125 = vmatpush.bf16.msra.mxu0 0
  %126 = vmatpush.bf16.msra.mxu0 0
  %127 = vmatpush.bf16.msra.mxu0 0
  %128 = vmatpush.bf16.msra.mxu0 0
  %129 = vmatpush.bf16.msra.mxu0 0
  %130 = vmatpush.bf16.msra.mxu0 0
  %131 = vmatpush.bf16.msra.mxu0 %v109
  %132 = vmatpush.bf16.msra.mxu0 %v108
  %133 = vmatmul.bf16.gmra.mxu0 %v114
  %v134 = vpop.f32.mrf.mxu0
  %v135 = vadd.f32 %v43, %v134
  %v136 = vpop.f32.mrf.mxu0
  %v137 = vadd.f32 %v48, %v136
  %138 = vmatmul.bf16.gmra.mxu0 %v117
  %v139 = vpop.f32.mrf.mxu0
  %v140 = vadd.f32 %v53, %v139
  %v141 = vpop.f32.mrf.mxu0
  %v142 = vadd.f32 %v58, %v141
  %143 = vmatmul.bf16.gmra.mxu0 %v120
  %v144 = vpop.f32.mrf.mxu0
  %v145 = vadd.f32 %v63, %v144
  %v146 = vpop.f32.mrf.mxu0
  %v147 = vadd.f32 %v68, %v146
  %148 = vmatmul.bf16.gmra.mxu0 %v123
  %v149 = vpop.f32.mrf.mxu0
  %v150 = vadd.f32 %v73, %v149
  %v151 = vpop.f32.mrf.mxu0
  %v152 = vadd.f32 %v78, %v151
  %153 = vdwg.mxu0
  %v154 = vmax.f32 %v135, 0.0
  %v155 = vmax.f32 %v137, 0.0
  %v156 = vmax.f32 %v140, 0.0
  %v157 = vmax.f32 %v142, 0.0
  %v158 = vmax.f32 %v145, 0.0
  %v159 = vmax.f32 %v147, 0.0
  %v160 = vmax.f32 %v150, 0.0
  %v161 = vmax.f32 %v152, 0.0
  %v162 = vpack.c.bf16 %v154, %v154
  %v163 = vpack.c.bf16 %v155, %v155
  %v164 = vpack.c.bf16 %v156, %v156
  %v165 = vpack.c.bf16 %v157, %v157
  %v166 = vpack.c.bf16 %v158, %v158
  %v167 = vpack.c.bf16 %v159, %v159
  %v168 = vpack.c.bf16 %v160, %v160
  %v169 = vpack.c.bf16 %v161, %v161
  %170 = vst [vmem:[%s4] sm:$0xf] %v162
  %171 = vst [vmem:[%s4 + $0x4] sm:$0xf] %v163
  %172 = vst [vmem:[%s4 + $0x8] sm:$0xf] %v164
  %173 = vst [vmem:[%s4 + $0xc] sm:$0xf] %v165
  %174 = vst [vmem:[%s4 + $0x10] sm:$0xf] %v166
  %175 = vst [vmem:[%s4 + $0x14] sm:$0xf] %v167
  %176 = vst [vmem:[%s4 + $0x18] sm:$0xf] %v168
  %177 = vst [vmem:[%s4 + $0x1c] sm:$0xf] %v169
  %v178 = vld [vmem:[%s3] sm:$0xf]
  %v179 = vld [vmem:[%s3 + $0x4] sm:$0xf]
  %v180 = vld [vmem:[%s3 + $0x8] sm:$0xf]
  %v181 = vld [vmem:[%s3 + $0xc] sm:$0xf]
  %v182 = vld [vmem:[%s3 + $0x10] sm:$0xf]
  %v183 = vld [vmem:[%s3 + $0x14] sm:$0xf]
  %v184 = vld [vmem:[%s3 + $0x18] sm:$0xf]
  %v185 = vld [vmem:[%s3 + $0x1c] sm:$0xf]
  %v194 = vunpack.c.l.b16 %v178
  %v195 = vunpack.c.l.b16 %v179
  %v196 = vunpack.c.l.b16 %v180
  %v197 = vunpack.c.l.b16 %v181
  %v198 = vunpack.c.l.b16 %v182
  %v199 = vunpack.c.l.b16 %v183
  %v200 = vunpack.c.l.b16 %v184
  %v201 = vunpack.c.l.b16 %v185
  %v202 = vpack.c.b16 %v195, %v194
  %v203 = vpack.c.b16 %v197, %v196
  %v204 = vpack.c.b16 %v199, %v198
  %v205 = vpack.c.b16 %v201, %v200
  %v214 = vunpack.c.l.b16 %v162
  %v215 = vunpack.c.l.b16 %v163
  %v216 = vunpack.c.l.b16 %v164
  %v217 = vunpack.c.l.b16 %v165
  %v218 = vunpack.c.l.b16 %v166
  %v219 = vunpack.c.l.b16 %v167
  %v220 = vunpack.c.l.b16 %v168
  %v221 = vunpack.c.l.b16 %v169
  %v222 = vpack.c.b16 %v215, %v214
  %v223 = vpack.c.b16 %v217, %v216
  %v224 = vpack.c.b16 %v219, %v218
  %v225 = vpack.c.b16 %v221, %v220
  %vm230 = vcmask 523264
  %v232 = vsel %vm230, %v202, 0
  %v235 = vsel %vm230, %v203, 0
  %v238 = vsel %vm230, %v204, 0
  %v241 = vsel %vm230, %v205, 0
  %243 = vmatpush.bf16.msra.mxu0 0
  %244 = vmatpush.bf16.msra.mxu0 0
  %245 = vmatpush.bf16.msra.mxu0 0
  %246 = vmatpush.bf16.msra.mxu0 0
  %247 = vmatpush.bf16.msra.mxu0 %v225
  %248 = vmatpush.bf16.msra.mxu0 %v224
  %249 = vmatpush.bf16.msra.mxu0 %v223
  %250 = vmatpush.bf16.msra.mxu0 %v222
  %251 = vmatmul.bf16.gmra.mxu0 %v232
  %v252 = vpop.f32.mrf.mxu0
  %v253 = vadd.f32 0.0, %v252
  %v254 = vpop.f32.mrf.mxu0
  %v255 = vadd.f32 0.0, %v254
  %256 = vmatmul.bf16.gmra.mxu0 %v235
  %v257 = vpop.f32.mrf.mxu0
  %v258 = vadd.f32 0.0, %v257
  %v259 = vpop.f32.mrf.mxu0
  %v260 = vadd.f32 0.0, %v259
  %261 = vmatmul.bf16.gmra.mxu0 %v238
  %v262 = vpop.f32.mrf.mxu0
  %v263 = vadd.f32 0.0, %v262
  %v264 = vpop.f32.mrf.mxu0
  %v265 = vadd.f32 0.0, %v264
  %266 = vmatmul.bf16.gmra.mxu0 %v241
  %v267 = vpop.f32.mrf.mxu0
  %v268 = vadd.f32 0.0, %v267
  %v269 = vpop.f32.mrf.mxu0
  %v270 = vadd.f32 0.0, %v269
  %271 = vdwg.mxu0
  %v272 = vpack.c.bf16 %v253, %v253
  %v273 = vpack.c.bf16 %v255, %v255
  %v274 = vpack.c.bf16 %v258, %v258
  %v275 = vpack.c.bf16 %v260, %v260
  %v276 = vpack.c.bf16 %v263, %v263
  %v277 = vpack.c.bf16 %v265, %v265
  %v278 = vpack.c.bf16 %v268, %v268
  %v279 = vpack.c.bf16 %v270, %v270
  %280 = vst [vmem:[%s5] sm:$0xf] %v272
  %281 = vst [vmem:[%s5 + $0x4] sm:$0xf] %v273
  %282 = vst [vmem:[%s5 + $0x8] sm:$0xf] %v274
  %283 = vst [vmem:[%s5 + $0xc] sm:$0xf] %v275
  %284 = vst [vmem:[%s5 + $0x10] sm:$0xf] %v276
  %285 = vst [vmem:[%s5 + $0x14] sm:$0xf] %v277
  %286 = vst [vmem:[%s5 + $0x18] sm:$0xf] %v278
  %287 = vst [vmem:[%s5 + $0x1c] sm:$0xf] %v279
  // Predicated region
  $region18: #{base_model_forward.6} parent=0 // pred_check
    _
  $region19: #{base_model_forward.6} parent=0 // pred_check_branch
    %289 = sbr.rel (0) target = $region21
  $region20: #{base_model_forward.6} parent=0 // pred_region
    _
  $region21: #{base_model_forward.6} parent=0 // pred_fallthru
    _
  // Predicated region
  $region22: #{base_model_forward.6} parent=0 // pred_check
    _
  $region23: #{base_model_forward.6} parent=0 // pred_check_branch
    %291 = sbr.rel (0) target = $region25
  $region24: #{base_model_forward.6} parent=0 // pred_region
    _
  $region25: #{base_model_forward.6} parent=0 // pred_fallthru
    _
  // Predicated region
  $region26: #{base_model_forward.6} parent=0 // pred_check
    _
  $region27: #{base_model_forward.6} parent=0 // pred_check_branch
    %293 = sbr.rel (0) target = $region29
  $region28: #{base_model_forward.6} parent=0 // pred_region
    _
  $region29: #{base_model_forward.6} parent=0 // pred_fallthru
    _
  // Predicated region
  $region30: #{base_model_forward.6} parent=0 // pred_check
    _
  $region31: #{base_model_forward.6} parent=0 // pred_check_branch
    %295 = sbr.rel (0) target = $region33
  $region32: #{base_model_forward.6} parent=0 // pred_region
    _
  $region33: #{base_model_forward.6} parent=0 // pred_fallthru
    _

// kernel: base_model_forward.7
$region0: #{base_model_forward.7}
  #allocation0 [shape = 'u32[]', space=smem, size = 0x4, offset = 0x4, fixed_abs, tag = 'smem constant byte address 0x4 - core index']
  #allocation1 [shape = 'u32[72,128]{1,0:T(1,128)}', space=vmem, size = 0x9000, scoped, tag = 'internal scratch']
  %s0 = inlined_call_operand.vmem [shape: bf16[64,32], index: 0, kind: input, shape index: {}]
  %s1 = inlined_call_operand.vmem [shape: bf16[128,64], index: 1, kind: input, shape index: {}]
  %s2 = inlined_call_operand.vmem [shape: f32[128,1], index: 2, kind: input, shape index: {}]
  %s3 = inlined_call_operand.vmem [shape: bf16[64,128], index: 3, kind: input, shape index: {}]
  %s4 = inlined_call_operand.vmem [shape: bf16[128,32], index: 4, kind: output, shape index: {0}]
  %s5 = inlined_call_operand.vmem [shape: bf16[64,32], index: 5, kind: output, shape index: {1}]
  %6 = xla_tuple %s4, %s5
  %s7 = sld [smem:[#allocation0]]
  $region34: #{base_model_forward.7} parent=0
    _
  %s9 = ssub.s32 1, %s7
  %s10 = scalar_select 0, %s9, %s7
  // Predicated region
  $region2: #{base_model_forward.7} parent=0 // pred_check
    _
  $region3: #{base_model_forward.7} parent=0 // pred_check_branch
    %12 = sbr.rel (0) target = $region5
  $region4: #{base_model_forward.7} parent=0 // pred_region
    _
  $region5: #{base_model_forward.7} parent=0 // pred_fallthru
    _
  // Predicated region
  $region6: #{base_model_forward.7} parent=0 // pred_check
    _
  $region7: #{base_model_forward.7} parent=0 // pred_check_branch
    %14 = sbr.rel (0) target = $region9
  $region8: #{base_model_forward.7} parent=0 // pred_region
    _
  $region9: #{base_model_forward.7} parent=0 // pred_fallthru
    _
  // Predicated region
  $region10: #{base_model_forward.7} parent=0 // pred_check
    _
  $region11: #{base_model_forward.7} parent=0 // pred_check_branch
    %16 = sbr.rel (0) target = $region13
  $region12: #{base_model_forward.7} parent=0 // pred_region
    _
  $region13: #{base_model_forward.7} parent=0 // pred_fallthru
    _
  // Predicated region
  $region14: #{base_model_forward.7} parent=0 // pred_check
    _
  $region15: #{base_model_forward.7} parent=0 // pred_check_branch
    %18 = sbr.rel (0) target = $region17
  $region16: #{base_model_forward.7} parent=0 // pred_region
    _
  $region17: #{base_model_forward.7} parent=0 // pred_fallthru
    _
  %v20 = vld [vmem:[%s1] sm:$0xf]
  %v21 = vld [vmem:[%s1 + $0x4] sm:$0xf]
  %v22 = vld [vmem:[%s1 + $0x8] sm:$0xf]
  %v23 = vld [vmem:[%s1 + $0xc] sm:$0xf]
  %v24 = vld [vmem:[%s1 + $0x10] sm:$0xf]
  %v25 = vld [vmem:[%s1 + $0x14] sm:$0xf]
  %v26 = vld [vmem:[%s1 + $0x18] sm:$0xf]
  %v27 = vld [vmem:[%s1 + $0x1c] sm:$0xf]
  %v28 = vld [vmem:[%s1 + $0x20] sm:$0xf]
  %v29 = vld [vmem:[%s1 + $0x24] sm:$0xf]
  %v30 = vld [vmem:[%s1 + $0x28] sm:$0xf]
  %v31 = vld [vmem:[%s1 + $0x2c] sm:$0xf]
  %v32 = vld [vmem:[%s1 + $0x30] sm:$0xf]
  %v33 = vld [vmem:[%s1 + $0x34] sm:$0xf]
  %v34 = vld [vmem:[%s1 + $0x38] sm:$0xf]
  %v35 = vld [vmem:[%s1 + $0x3c] sm:$0xf]
  %v36 = vld [vmem:[%s0] sm:$0xf]
  %v37 = vld [vmem:[%s0 + $0x4] sm:$0xf]
  %v38 = vld [vmem:[%s0 + $0x8] sm:$0xf]
  %v39 = vld [vmem:[%s0 + $0xc] sm:$0xf]
  %v40 = vld [vmem:[%s0 + $0x10] sm:$0xf]
  %v41 = vld [vmem:[%s0 + $0x14] sm:$0xf]
  %v42 = vld [vmem:[%s0 + $0x18] sm:$0xf]
  %v43 = vld [vmem:[%s0 + $0x1c] sm:$0xf]
  %v44 = vld [vmem:[%s2] sm:$0xff]
  %v45 = vld [vmem:[%s2 + $0x8] sm:$0xff]
  %v46 = vld [vmem:[%s2 + $0x10] sm:$0xff]
  %v47 = vld [vmem:[%s2 + $0x18] sm:$0xff]
  %v48 = vld [vmem:[%s2 + $0x20] sm:$0xff]
  %v49 = vld [vmem:[%s2 + $0x28] sm:$0xff]
  %v50 = vld [vmem:[%s2 + $0x30] sm:$0xff]
  %v51 = vld [vmem:[%s2 + $0x38] sm:$0xff]
  %v52 = vld [vmem:[%s2 + $0x40] sm:$0xff]
  %v53 = vld [vmem:[%s2 + $0x48] sm:$0xff]
  %v54 = vld [vmem:[%s2 + $0x50] sm:$0xff]
  %v55 = vld [vmem:[%s2 + $0x58] sm:$0xff]
  %v56 = vld [vmem:[%s2 + $0x60] sm:$0xff]
  %v57 = vld [vmem:[%s2 + $0x68] sm:$0xff]
  %v58 = vld [vmem:[%s2 + $0x70] sm:$0xff]
  %v59 = vld [vmem:[%s2 + $0x78] sm:$0xff]
  %61 = vset.pattern.permute.xlu0 0
  %62 = vperm.xlu0 %61, %v44
  %v63 = vpop.permute.xlu0 %62
  %66 = vset.pattern.permute.xlu0 0
  %67 = vperm.xlu0 %66, %v45
  %v68 = vpop.permute.xlu0 %67
  %71 = vset.pattern.permute.xlu0 0
  %72 = vperm.xlu0 %71, %v46
  %v73 = vpop.permute.xlu0 %72
  %76 = vset.pattern.permute.xlu0 0
  %77 = vperm.xlu0 %76, %v47
  %v78 = vpop.permute.xlu0 %77
  %81 = vset.pattern.permute.xlu0 0
  %82 = vperm.xlu0 %81, %v48
  %v83 = vpop.permute.xlu0 %82
  %86 = vset.pattern.permute.xlu0 0
  %87 = vperm.xlu0 %86, %v49
  %v88 = vpop.permute.xlu0 %87
  %91 = vset.pattern.permute.xlu0 0
  %92 = vperm.xlu0 %91, %v50
  %v93 = vpop.permute.xlu0 %92
  %96 = vset.pattern.permute.xlu0 0
  %97 = vperm.xlu0 %96, %v51
  %v98 = vpop.permute.xlu0 %97
  %101 = vset.pattern.permute.xlu0 0
  %102 = vperm.xlu0 %101, %v52
  %v103 = vpop.permute.xlu0 %102
  %106 = vset.pattern.permute.xlu0 0
  %107 = vperm.xlu0 %106, %v53
  %v108 = vpop.permute.xlu0 %107
  %111 = vset.pattern.permute.xlu0 0
  %112 = vperm.xlu0 %111, %v54
  %v113 = vpop.permute.xlu0 %112
  %116 = vset.pattern.permute.xlu0 0
  %117 = vperm.xlu0 %116, %v55
  %v118 = vpop.permute.xlu0 %117
  %121 = vset.pattern.permute.xlu0 0
  %122 = vperm.xlu0 %121, %v56
  %v123 = vpop.permute.xlu0 %122
  %126 = vset.pattern.permute.xlu0 0
  %127 = vperm.xlu0 %126, %v57
  %v128 = vpop.permute.xlu0 %127
  %131 = vset.pattern.permute.xlu0 0
  %132 = vperm.xlu0 %131, %v58
  %v133 = vpop.permute.xlu0 %132
  %136 = vset.pattern.permute.xlu0 0
  %137 = vperm.xlu0 %136, %v59
  %v138 = vpop.permute.xlu0 %137
  %v156 = vunpack.c.l.b16 %v20
  %v157 = vunpack.c.l.b16 %v21
  %v158 = vunpack.c.l.b16 %v22
  %v159 = vunpack.c.l.b16 %v23
  %v160 = vunpack.c.l.b16 %v24
  %v161 = vunpack.c.l.b16 %v25
  %v162 = vunpack.c.l.b16 %v26
  %v163 = vunpack.c.l.b16 %v27
  %v164 = vunpack.c.l.b16 %v28
  %v165 = vunpack.c.l.b16 %v29
  %v166 = vunpack.c.l.b16 %v30
  %v167 = vunpack.c.l.b16 %v31
  %v168 = vunpack.c.l.b16 %v32
  %v169 = vunpack.c.l.b16 %v33
  %v170 = vunpack.c.l.b16 %v34
  %v171 = vunpack.c.l.b16 %v35
  %v172 = vpack.c.b16 %v157, %v156
  %v173 = vpack.c.b16 %v159, %v158
  %v174 = vpack.c.b16 %v161, %v160
  %v175 = vpack.c.b16 %v163, %v162
  %v176 = vpack.c.b16 %v165, %v164
  %v177 = vpack.c.b16 %v167, %v166
  %v178 = vpack.c.b16 %v169, %v168
  %v179 = vpack.c.b16 %v171, %v170
  %v188 = vunpack.c.l.b16 %v36
  %v189 = vunpack.c.l.b16 %v37
  %v190 = vunpack.c.l.b16 %v38
  %v191 = vunpack.c.l.b16 %v39
  %v192 = vunpack.c.l.b16 %v40
  %v193 = vunpack.c.l.b16 %v41
  %v194 = vunpack.c.l.b16 %v42
  %v195 = vunpack.c.l.b16 %v43
  %v196 = vpack.c.b16 %v189, %v188
  %v197 = vpack.c.b16 %v191, %v190
  %v198 = vpack.c.b16 %v193, %v192
  %v199 = vpack.c.b16 %v195, %v194
  %vm204 = vcmask 523264
  %v206 = vsel %vm204, %v172, 0
  %v209 = vsel %vm204, %v173, 0
  %v212 = vsel %vm204, %v174, 0
  %v215 = vsel %vm204, %v175, 0
  %v218 = vsel %vm204, %v176, 0
  %v221 = vsel %vm204, %v177, 0
  %v224 = vsel %vm204, %v178, 0
  %v227 = vsel %vm204, %v179, 0
  %229 = vmatpush.bf16.msra.mxu0 0
  %230 = vmatpush.bf16.msra.mxu0 0
  %231 = vmatpush.bf16.msra.mxu0 0
  %232 = vmatpush.bf16.msra.mxu0 0
  %233 = vmatpush.bf16.msra.mxu0 %v199
  %234 = vmatpush.bf16.msra.mxu0 %v198
  %235 = vmatpush.bf16.msra.mxu0 %v197
  %236 = vmatpush.bf16.msra.mxu0 %v196
  %237 = vmatmul.bf16.gmra.mxu0 %v206
  %v238 = vpop.f32.mrf.mxu0
  %v239 = vadd.f32 %v63, %v238
  %v240 = vpop.f32.mrf.mxu0
  %v241 = vadd.f32 %v68, %v240
  %242 = vmatmul.bf16.gmra.mxu0 %v209
  %v243 = vpop.f32.mrf.mxu0
  %v244 = vadd.f32 %v73, %v243
  %v245 = vpop.f32.mrf.mxu0
  %v246 = vadd.f32 %v78, %v245
  %247 = vmatmul.bf16.gmra.mxu0 %v212
  %v248 = vpop.f32.mrf.mxu0
  %v249 = vadd.f32 %v83, %v248
  %v250 = vpop.f32.mrf.mxu0
  %v251 = vadd.f32 %v88, %v250
  %252 = vmatmul.bf16.gmra.mxu0 %v215
  %v253 = vpop.f32.mrf.mxu0
  %v254 = vadd.f32 %v93, %v253
  %v255 = vpop.f32.mrf.mxu0
  %v256 = vadd.f32 %v98, %v255
  %257 = vmatmul.bf16.gmra.mxu0 %v218
  %v258 = vpop.f32.mrf.mxu0
  %v259 = vadd.f32 %v103, %v258
  %v260 = vpop.f32.mrf.mxu0
  %v261 = vadd.f32 %v108, %v260
  %262 = vmatmul.bf16.gmra.mxu0 %v221
  %v263 = vpop.f32.mrf.mxu0
  %v264 = vadd.f32 %v113, %v263
  %v265 = vpop.f32.mrf.mxu0
  %v266 = vadd.f32 %v118, %v265
  %267 = vmatmul.bf16.gmra.mxu0 %v224
  %v268 = vpop.f32.mrf.mxu0
  %v269 = vadd.f32 %v123, %v268
  %v270 = vpop.f32.mrf.mxu0
  %v271 = vadd.f32 %v128, %v270
  %272 = vmatmul.bf16.gmra.mxu0 %v227
  %v273 = vpop.f32.mrf.mxu0
  %v274 = vadd.f32 %v133, %v273
  %v275 = vpop.f32.mrf.mxu0
  %v276 = vadd.f32 %v138, %v275
  %277 = vdwg.mxu0
  %v278 = vmax.f32 %v239, 0.0
  %v279 = vmax.f32 %v241, 0.0
  %v280 = vmax.f32 %v244, 0.0
  %v281 = vmax.f32 %v246, 0.0
  %v282 = vmax.f32 %v249, 0.0
  %v283 = vmax.f32 %v251, 0.0
  %v284 = vmax.f32 %v254, 0.0
  %v285 = vmax.f32 %v256, 0.0
  %v286 = vmax.f32 %v259, 0.0
  %v287 = vmax.f32 %v261, 0.0
  %v288 = vmax.f32 %v264, 0.0
  %v289 = vmax.f32 %v266, 0.0
  %v290 = vmax.f32 %v269, 0.0
  %v291 = vmax.f32 %v271, 0.0
  %v292 = vmax.f32 %v274, 0.0
  %v293 = vmax.f32 %v276, 0.0
  %v294 = vpack.c.bf16 %v278, %v278
  %v295 = vpack.c.bf16 %v279, %v279
  %v296 = vpack.c.bf16 %v280, %v280
  %v297 = vpack.c.bf16 %v281, %v281
  %v298 = vpack.c.bf16 %v282, %v282
  %v299 = vpack.c.bf16 %v283, %v283
  %v300 = vpack.c.bf16 %v284, %v284
  %v301 = vpack.c.bf16 %v285, %v285
  %v302 = vpack.c.bf16 %v286, %v286
  %v303 = vpack.c.bf16 %v287, %v287
  %v304 = vpack.c.bf16 %v288, %v288
  %v305 = vpack.c.bf16 %v289, %v289
  %v306 = vpack.c.bf16 %v290, %v290
  %v307 = vpack.c.bf16 %v291, %v291
  %v308 = vpack.c.bf16 %v292, %v292
  %v309 = vpack.c.bf16 %v293, %v293
  %vm310 = vcmask 257024
  %311 = vst.msk [vmem:[%s4] sm:$0xf] %vm310, %v294
  %312 = vst.msk [vmem:[%s4 + $0x4] sm:$0xf] %vm310, %v295
  %313 = vst.msk [vmem:[%s4 + $0x8] sm:$0xf] %vm310, %v296
  %314 = vst.msk [vmem:[%s4 + $0xc] sm:$0xf] %vm310, %v297
  %315 = vst.msk [vmem:[%s4 + $0x10] sm:$0xf] %vm310, %v298
  %316 = vst.msk [vmem:[%s4 + $0x14] sm:$0xf] %vm310, %v299
  %317 = vst.msk [vmem:[%s4 + $0x18] sm:$0xf] %vm310, %v300
  %318 = vst.msk [vmem:[%s4 + $0x1c] sm:$0xf] %vm310, %v301
  %319 = vst.msk [vmem:[%s4 + $0x20] sm:$0xf] %vm310, %v302
  %320 = vst.msk [vmem:[%s4 + $0x24] sm:$0xf] %vm310, %v303
  %321 = vst.msk [vmem:[%s4 + $0x28] sm:$0xf] %vm310, %v304
  %322 = vst.msk [vmem:[%s4 + $0x2c] sm:$0xf] %vm310, %v305
  %323 = vst.msk [vmem:[%s4 + $0x30] sm:$0xf] %vm310, %v306
  %324 = vst.msk [vmem:[%s4 + $0x34] sm:$0xf] %vm310, %v307
  %325 = vst.msk [vmem:[%s4 + $0x38] sm:$0xf] %vm310, %v308
  %326 = vst.msk [vmem:[%s4 + $0x3c] sm:$0xf] %vm310, %v309
  %v327 = vld [vmem:[%s3] sm:$0xf]
  %v328 = vld [vmem:[%s3 + $0x4] sm:$0xf]
  %v329 = vld [vmem:[%s3 + $0x8] sm:$0xf]
  %v330 = vld [vmem:[%s3 + $0xc] sm:$0xf]
  %v331 = vld [vmem:[%s3 + $0x10] sm:$0xf]
  %v332 = vld [vmem:[%s3 + $0x14] sm:$0xf]
  %v333 = vld [vmem:[%s3 + $0x18] sm:$0xf]
  %v334 = vld [vmem:[%s3 + $0x1c] sm:$0xf]
  %v343 = vunpack.c.l.b16 %v327
  %v344 = vunpack.c.l.b16 %v328
  %v345 = vunpack.c.l.b16 %v329
  %v346 = vunpack.c.l.b16 %v330
  %v347 = vunpack.c.l.b16 %v331
  %v348 = vunpack.c.l.b16 %v332
  %v349 = vunpack.c.l.b16 %v333
  %v350 = vunpack.c.l.b16 %v334
  %v351 = vpack.c.b16 %v344, %v343
  %v352 = vpack.c.b16 %v346, %v345
  %v353 = vpack.c.b16 %v348, %v347
  %v354 = vpack.c.b16 %v350, %v349
  %v375 = vunpack.c.l.b16 %v294
  %v376 = vunpack.c.l.b16 %v295
  %v377 = vunpack.c.l.b16 %v296
  %v378 = vunpack.c.l.b16 %v297
  %v379 = vunpack.c.l.b16 %v298
  %v380 = vunpack.c.l.b16 %v299
  %v381 = vunpack.c.l.b16 %v300
  %v382 = vunpack.c.l.b16 %v301
  %v383 = vunpack.c.l.b16 %v302
  %v384 = vunpack.c.l.b16 %v303
  %v385 = vunpack.c.l.b16 %v304
  %v386 = vunpack.c.l.b16 %v305
  %v387 = vunpack.c.l.b16 %v306
  %v388 = vunpack.c.l.b16 %v307
  %v389 = vunpack.c.l.b16 %v308
  %v390 = vunpack.c.l.b16 %v309
  %v391 = vpack.c.b16 %v376, %v375
  %v392 = vpack.c.b16 %v378, %v377
  %v393 = vpack.c.b16 %v380, %v379
  %v394 = vpack.c.b16 %v382, %v381
  %v395 = vpack.c.b16 %v384, %v383
  %v396 = vpack.c.b16 %v386, %v385
  %v397 = vpack.c.b16 %v388, %v387
  %v398 = vpack.c.b16 %v390, %v389
  %407 = vmatpush.bf16.msra.mxu0 %v398
  %408 = vmatpush.bf16.msra.mxu0 %v397
  %409 = vmatpush.bf16.msra.mxu0 %v396
  %410 = vmatpush.bf16.msra.mxu0 %v395
  %411 = vmatpush.bf16.msra.mxu0 %v394
  %412 = vmatpush.bf16.msra.mxu0 %v393
  %413 = vmatpush.bf16.msra.mxu0 %v392
  %414 = vmatpush.bf16.msra.mxu0 %v391
  %415 = vmatmul.bf16.gmra.mxu0 %v351
  %v416 = vpop.f32.mrf.mxu0
  %v417 = vadd.f32 0.0, %v416
  %v418 = vpop.f32.mrf.mxu0
  %v419 = vadd.f32 0.0, %v418
  %420 = vmatmul.bf16.gmra.mxu0 %v352
  %v421 = vpop.f32.mrf.mxu0
  %v422 = vadd.f32 0.0, %v421
  %v423 = vpop.f32.mrf.mxu0
  %v424 = vadd.f32 0.0, %v423
  %425 = vmatmul.bf16.gmra.mxu0 %v353
  %v426 = vpop.f32.mrf.mxu0
  %v427 = vadd.f32 0.0, %v426
  %v428 = vpop.f32.mrf.mxu0
  %v429 = vadd.f32 0.0, %v428
  %430 = vmatmul.bf16.gmra.mxu0 %v354
  %v431 = vpop.f32.mrf.mxu0
  %v432 = vadd.f32 0.0, %v431
  %v433 = vpop.f32.mrf.mxu0
  %v434 = vadd.f32 0.0, %v433
  %435 = vdwg.mxu0
  %v436 = vpack.c.bf16 %v417, %v417
  %v437 = vpack.c.bf16 %v419, %v419
  %v438 = vpack.c.bf16 %v422, %v422
  %v439 = vpack.c.bf16 %v424, %v424
  %v440 = vpack.c.bf16 %v427, %v427
  %v441 = vpack.c.bf16 %v429, %v429
  %v442 = vpack.c.bf16 %v432, %v432
  %v443 = vpack.c.bf16 %v434, %v434
  %444 = vst.msk [vmem:[%s5] sm:$0xf] %vm310, %v436
  %445 = vst.msk [vmem:[%s5 + $0x4] sm:$0xf] %vm310, %v437
  %446 = vst.msk [vmem:[%s5 + $0x8] sm:$0xf] %vm310, %v438
  %447 = vst.msk [vmem:[%s5 + $0xc] sm:$0xf] %vm310, %v439
  %448 = vst.msk [vmem:[%s5 + $0x10] sm:$0xf] %vm310, %v440
  %449 = vst.msk [vmem:[%s5 + $0x14] sm:$0xf] %vm310, %v441
  %450 = vst.msk [vmem:[%s5 + $0x18] sm:$0xf] %vm310, %v442
  %451 = vst.msk [vmem:[%s5 + $0x1c] sm:$0xf] %vm310, %v443
  // Predicated region
  $region18: #{base_model_forward.7} parent=0 // pred_check
    _
  $region19: #{base_model_forward.7} parent=0 // pred_check_branch
    %453 = sbr.rel (0) target = $region21
  $region20: #{base_model_forward.7} parent=0 // pred_region
    _
  $region21: #{base_model_forward.7} parent=0 // pred_fallthru
    _
  // Predicated region
  $region22: #{base_model_forward.7} parent=0 // pred_check
    _
  $region23: #{base_model_forward.7} parent=0 // pred_check_branch
    %455 = sbr.rel (0) target = $region25
  $region24: #{base_model_forward.7} parent=0 // pred_region
    _
  $region25: #{base_model_forward.7} parent=0 // pred_fallthru
    _
  // Predicated region
  $region26: #{base_model_forward.7} parent=0 // pred_check
    _
  $region27: #{base_model_forward.7} parent=0 // pred_check_branch
    %457 = sbr.rel (0) target = $region29
  $region28: #{base_model_forward.7} parent=0 // pred_region
    _
  $region29: #{base_model_forward.7} parent=0 // pred_fallthru
    _
  // Predicated region
  $region30: #{base_model_forward.7} parent=0 // pred_check
    _
  $region31: #{base_model_forward.7} parent=0 // pred_check_branch
    %459 = sbr.rel (0) target = $region33
  $region32: #{base_model_forward.7} parent=0 // pred_region
    _
  $region33: #{base_model_forward.7} parent=0 // pred_fallthru
    _

// kernel: base_model_forward.8
$region0: #{base_model_forward.8}
  #allocation0 [shape = 'u32[]', space=smem, size = 0x4, offset = 0x4, fixed_abs, tag = 'smem constant byte address 0x4 - core index']
  #allocation1 [shape = 'u32[72,128]{1,0:T(1,128)}', space=vmem, size = 0x9000, scoped, tag = 'internal scratch']
  %s0 = inlined_call_operand.vmem [shape: bf16[128,8], index: 0, kind: input, shape index: {}]
  %s1 = inlined_call_operand.vmem [shape: bf16[128,128], index: 1, kind: input, shape index: {}]
  %s2 = inlined_call_operand.vmem [shape: f32[128,1], index: 2, kind: input, shape index: {}]
  %s3 = inlined_call_operand.vmem [shape: bf16[64,128], index: 3, kind: input, shape index: {}]
  %s4 = inlined_call_operand.hbm [shape: bf16[128,8], index: 4, kind: output, shape index: {0}]
  %s5 = inlined_call_operand.vmem [shape: bf16[64,8], index: 5, kind: output, shape index: {1}]
  %6 = xla_tuple %s4, %s5
  %s7 = sld [smem:[#allocation0]]
  $region34: #{base_model_forward.8} parent=0
    _
  %s9 = ssub.s32 1, %s7
  %s10 = scalar_select 0, %s9, %s7
  $region1: #{base_model_forward.8} parent=0
    #allocation2 [shape = 'u8[32768]{0}', space=vmem, size = 0x8000, scoped, tag = 'output window, operand 0, single buffered']
    #allocation3 [shape = 's32[1]{0}', space=sflag, size = 0x4, scoped, tag = 'scoped memory for base_model_forward.8']
    %11 = vsyncpa [#allocation3], 0
    // Predicated region
    $region2: #{base_model_forward.8} parent=1 // pred_check
      _
    $region3: #{base_model_forward.8} parent=1 // pred_check_branch
      %13 = sbr.rel (0) target = $region5
    $region4: #{base_model_forward.8} parent=1 // pred_region
      _
    $region5: #{base_model_forward.8} parent=1 // pred_fallthru
      _
    // Predicated region
    $region6: #{base_model_forward.8} parent=1 // pred_check
      _
    $region7: #{base_model_forward.8} parent=1 // pred_check_branch
      %15 = sbr.rel (0) target = $region9
    $region8: #{base_model_forward.8} parent=1 // pred_region
      _
    $region9: #{base_model_forward.8} parent=1 // pred_fallthru
      _
    // Predicated region
    $region10: #{base_model_forward.8} parent=1 // pred_check
      _
    $region11: #{base_model_forward.8} parent=1 // pred_check_branch
      %17 = sbr.rel (0) target = $region13
    $region12: #{base_model_forward.8} parent=1 // pred_region
      _
    $region13: #{base_model_forward.8} parent=1 // pred_fallthru
      _
    // Predicated region
    $region14: #{base_model_forward.8} parent=1 // pred_check
      _
    $region15: #{base_model_forward.8} parent=1 // pred_check_branch
      %19 = sbr.rel (0) target = $region17
    $region16: #{base_model_forward.8} parent=1 // pred_region
      _
    $region17: #{base_model_forward.8} parent=1 // pred_fallthru
      _
    %v20 = vld [vmem:[%s1] sm:$0xf]
    %v21 = vld [vmem:[%s1 + $0x4] sm:$0xf]
    %v22 = vld [vmem:[%s1 + $0x8] sm:$0xf]
    %v23 = vld [vmem:[%s1 + $0xc] sm:$0xf]
    %v24 = vld [vmem:[%s1 + $0x10] sm:$0xf]
    %v25 = vld [vmem:[%s1 + $0x14] sm:$0xf]
    %v26 = vld [vmem:[%s1 + $0x18] sm:$0xf]
    %v27 = vld [vmem:[%s1 + $0x1c] sm:$0xf]
    %v28 = vld [vmem:[%s1 + $0x20] sm:$0xf]
    %v29 = vld [vmem:[%s1 + $0x24] sm:$0xf]
    %v30 = vld [vmem:[%s1 + $0x28] sm:$0xf]
    %v31 = vld [vmem:[%s1 + $0x2c] sm:$0xf]
    %v32 = vld [vmem:[%s1 + $0x30] sm:$0xf]
    %v33 = vld [vmem:[%s1 + $0x34] sm:$0xf]
    %v34 = vld [vmem:[%s1 + $0x38] sm:$0xf]
    %v35 = vld [vmem:[%s1 + $0x3c] sm:$0xf]
    %v36 = vld [vmem:[%s0] sm:$0xf]
    %v37 = vld [vmem:[%s0 + $0x4] sm:$0xf]
    %v38 = vld [vmem:[%s0 + $0x8] sm:$0xf]
    %v39 = vld [vmem:[%s0 + $0xc] sm:$0xf]
    %v40 = vld [vmem:[%s0 + $0x10] sm:$0xf]
    %v41 = vld [vmem:[%s0 + $0x14] sm:$0xf]
    %v42 = vld [vmem:[%s0 + $0x18] sm:$0xf]
    %v43 = vld [vmem:[%s0 + $0x1c] sm:$0xf]
    %v44 = vld [vmem:[%s0 + $0x20] sm:$0xf]
    %v45 = vld [vmem:[%s0 + $0x24] sm:$0xf]
    %v46 = vld [vmem:[%s0 + $0x28] sm:$0xf]
    %v47 = vld [vmem:[%s0 + $0x2c] sm:$0xf]
    %v48 = vld [vmem:[%s0 + $0x30] sm:$0xf]
    %v49 = vld [vmem:[%s0 + $0x34] sm:$0xf]
    %v50 = vld [vmem:[%s0 + $0x38] sm:$0xf]
    %v51 = vld [vmem:[%s0 + $0x3c] sm:$0xf]
    %v52 = vld [vmem:[%s2] sm:$0xff]
    %v53 = vld [vmem:[%s2 + $0x8] sm:$0xff]
    %v54 = vld [vmem:[%s2 + $0x10] sm:$0xff]
    %v55 = vld [vmem:[%s2 + $0x18] sm:$0xff]
    %v56 = vld [vmem:[%s2 + $0x20] sm:$0xff]
    %v57 = vld [vmem:[%s2 + $0x28] sm:$0xff]
    %v58 = vld [vmem:[%s2 + $0x30] sm:$0xff]
    %v59 = vld [vmem:[%s2 + $0x38] sm:$0xff]
    %v60 = vld [vmem:[%s2 + $0x40] sm:$0xff]
    %v61 = vld [vmem:[%s2 + $0x48] sm:$0xff]
    %v62 = vld [vmem:[%s2 + $0x50] sm:$0xff]
    %v63 = vld [vmem:[%s2 + $0x58] sm:$0xff]
    %v64 = vld [vmem:[%s2 + $0x60] sm:$0xff]
    %v65 = vld [vmem:[%s2 + $0x68] sm:$0xff]
    %v66 = vld [vmem:[%s2 + $0x70] sm:$0xff]
    %v67 = vld [vmem:[%s2 + $0x78] sm:$0xff]
    %69 = vset.pattern.permute.xlu0 0
    %70 = vperm.xlu0 %69, %v52
    %v71 = vpop.permute.xlu0 %70
    %74 = vset.pattern.permute.xlu0 0
    %75 = vperm.xlu0 %74, %v53
    %v76 = vpop.permute.xlu0 %75
    %79 = vset.pattern.permute.xlu0 0
    %80 = vperm.xlu0 %79, %v54
    %v81 = vpop.permute.xlu0 %80
    %84 = vset.pattern.permute.xlu0 0
    %85 = vperm.xlu0 %84, %v55
    %v86 = vpop.permute.xlu0 %85
    %89 = vset.pattern.permute.xlu0 0
    %90 = vperm.xlu0 %89, %v56
    %v91 = vpop.permute.xlu0 %90
    %94 = vset.pattern.permute.xlu0 0
    %95 = vperm.xlu0 %94, %v57
    %v96 = vpop.permute.xlu0 %95
    %99 = vset.pattern.permute.xlu0 0
    %100 = vperm.xlu0 %99, %v58
    %v101 = vpop.permute.xlu0 %100
    %104 = vset.pattern.permute.xlu0 0
    %105 = vperm.xlu0 %104, %v59
    %v106 = vpop.permute.xlu0 %105
    %109 = vset.pattern.permute.xlu0 0
    %110 = vperm.xlu0 %109, %v60
    %v111 = vpop.permute.xlu0 %110
    %114 = vset.pattern.permute.xlu0 0
    %115 = vperm.xlu0 %114, %v61
    %v116 = vpop.permute.xlu0 %115
    %119 = vset.pattern.permute.xlu0 0
    %120 = vperm.xlu0 %119, %v62
    %v121 = vpop.permute.xlu0 %120
    %124 = vset.pattern.permute.xlu0 0
    %125 = vperm.xlu0 %124, %v63
    %v126 = vpop.permute.xlu0 %125
    %129 = vset.pattern.permute.xlu0 0
    %130 = vperm.xlu0 %129, %v64
    %v131 = vpop.permute.xlu0 %130
    %134 = vset.pattern.permute.xlu0 0
    %135 = vperm.xlu0 %134, %v65
    %v136 = vpop.permute.xlu0 %135
    %139 = vset.pattern.permute.xlu0 0
    %140 = vperm.xlu0 %139, %v66
    %v141 = vpop.permute.xlu0 %140
    %144 = vset.pattern.permute.xlu0 0
    %145 = vperm.xlu0 %144, %v67
    %v146 = vpop.permute.xlu0 %145
    %v164 = vunpack.c.l.b16 %v20
    %v165 = vunpack.c.l.b16 %v21
    %v166 = vunpack.c.l.b16 %v22
    %v167 = vunpack.c.l.b16 %v23
    %v168 = vunpack.c.l.b16 %v24
    %v169 = vunpack.c.l.b16 %v25
    %v170 = vunpack.c.l.b16 %v26
    %v171 = vunpack.c.l.b16 %v27
    %v172 = vunpack.c.l.b16 %v28
    %v173 = vunpack.c.l.b16 %v29
    %v174 = vunpack.c.l.b16 %v30
    %v175 = vunpack.c.l.b16 %v31
    %v176 = vunpack.c.l.b16 %v32
    %v177 = vunpack.c.l.b16 %v33
    %v178 = vunpack.c.l.b16 %v34
    %v179 = vunpack.c.l.b16 %v35
    %v180 = vpack.c.b16 %v165, %v164
    %v181 = vpack.c.b16 %v167, %v166
    %v182 = vpack.c.b16 %v169, %v168
    %v183 = vpack.c.b16 %v171, %v170
    %v184 = vpack.c.b16 %v173, %v172
    %v185 = vpack.c.b16 %v175, %v174
    %v186 = vpack.c.b16 %v177, %v176
    %v187 = vpack.c.b16 %v179, %v178
    %v212 = vunpack.c.l.b16 %v36
    %v213 = vunpack.c.l.b16 %v37
    %v214 = vunpack.c.l.b16 %v38
    %v215 = vunpack.c.l.b16 %v39
    %v216 = vunpack.c.l.b16 %v40
    %v217 = vunpack.c.l.b16 %v41
    %v218 = vunpack.c.l.b16 %v42
    %v219 = vunpack.c.l.b16 %v43
    %v220 = vunpack.c.l.b16 %v44
    %v221 = vunpack.c.l.b16 %v45
    %v222 = vunpack.c.l.b16 %v46
    %v223 = vunpack.c.l.b16 %v47
    %v224 = vunpack.c.l.b16 %v48
    %v225 = vunpack.c.l.b16 %v49
    %v226 = vunpack.c.l.b16 %v50
    %v227 = vunpack.c.l.b16 %v51
    %v228 = vpack.c.b16 %v213, %v212
    %v229 = vpack.c.b16 %v215, %v214
    %v230 = vpack.c.b16 %v217, %v216
    %v231 = vpack.c.b16 %v219, %v218
    %v232 = vpack.c.b16 %v221, %v220
    %v233 = vpack.c.b16 %v223, %v222
    %v234 = vpack.c.b16 %v225, %v224
    %v235 = vpack.c.b16 %v227, %v226
    %244 = vmatpush.bf16.msra.mxu0 %v235
    %245 = vmatpush.bf16.msra.mxu0 %v234
    %246 = vmatpush.bf16.msra.mxu0 %v233
    %247 = vmatpush.bf16.msra.mxu0 %v232
    %248 = vmatpush.bf16.msra.mxu0 %v231
    %249 = vmatpush.bf16.msra.mxu0 %v230
    %250 = vmatpush.bf16.msra.mxu0 %v229
    %251 = vmatpush.bf16.msra.mxu0 %v228
    %252 = vmatmul.bf16.gmra.mxu0 %v180
    %v253 = vpop.f32.mrf.mxu0
    %v254 = vadd.f32 %v71, %v253
    %v255 = vpop.f32.mrf.mxu0
    %v256 = vadd.f32 %v76, %v255
    %257 = vmatmul.bf16.gmra.mxu0 %v181
    %v258 = vpop.f32.mrf.mxu0
    %v259 = vadd.f32 %v81, %v258
    %v260 = vpop.f32.mrf.mxu0
    %v261 = vadd.f32 %v86, %v260
    %262 = vmatmul.bf16.gmra.mxu0 %v182
    %v263 = vpop.f32.mrf.mxu0
    %v264 = vadd.f32 %v91, %v263
    %v265 = vpop.f32.mrf.mxu0
    %v266 = vadd.f32 %v96, %v265
    %267 = vmatmul.bf16.gmra.mxu0 %v183
    %v268 = vpop.f32.mrf.mxu0
    %v269 = vadd.f32 %v101, %v268
    %v270 = vpop.f32.mrf.mxu0
    %v271 = vadd.f32 %v106, %v270
    %272 = vmatmul.bf16.gmra.mxu0 %v184
    %v273 = vpop.f32.mrf.mxu0
    %v274 = vadd.f32 %v111, %v273
    %v275 = vpop.f32.mrf.mxu0
    %v276 = vadd.f32 %v116, %v275
    %277 = vmatmul.bf16.gmra.mxu0 %v185
    %v278 = vpop.f32.mrf.mxu0
    %v279 = vadd.f32 %v121, %v278
    %v280 = vpop.f32.mrf.mxu0
    %v281 = vadd.f32 %v126, %v280
    %282 = vmatmul.bf16.gmra.mxu0 %v186
    %v283 = vpop.f32.mrf.mxu0
    %v284 = vadd.f32 %v131, %v283
    %v285 = vpop.f32.mrf.mxu0
    %v286 = vadd.f32 %v136, %v285
    %287 = vmatmul.bf16.gmra.mxu0 %v187
    %v288 = vpop.f32.mrf.mxu0
    %v289 = vadd.f32 %v141, %v288
    %v290 = vpop.f32.mrf.mxu0
    %v291 = vadd.f32 %v146, %v290
    %292 = vdwg.mxu0
    %v293 = vmax.f32 %v254, 0.0
    %v294 = vmax.f32 %v256, 0.0
    %v295 = vmax.f32 %v259, 0.0
    %v296 = vmax.f32 %v261, 0.0
    %v297 = vmax.f32 %v264, 0.0
    %v298 = vmax.f32 %v266, 0.0
    %v299 = vmax.f32 %v269, 0.0
    %v300 = vmax.f32 %v271, 0.0
    %v301 = vmax.f32 %v274, 0.0
    %v302 = vmax.f32 %v276, 0.0
    %v303 = vmax.f32 %v279, 0.0
    %v304 = vmax.f32 %v281, 0.0
    %v305 = vmax.f32 %v284, 0.0
    %v306 = vmax.f32 %v286, 0.0
    %v307 = vmax.f32 %v289, 0.0
    %v308 = vmax.f32 %v291, 0.0
    %v309 = vpack.c.bf16 %v293, %v293
    %v310 = vpack.c.bf16 %v294, %v294
    %v311 = vpack.c.bf16 %v295, %v295
    %v312 = vpack.c.bf16 %v296, %v296
    %v313 = vpack.c.bf16 %v297, %v297
    %v314 = vpack.c.bf16 %v298, %v298
    %v315 = vpack.c.bf16 %v299, %v299
    %v316 = vpack.c.bf16 %v300, %v300
    %v317 = vpack.c.bf16 %v301, %v301
    %v318 = vpack.c.bf16 %v302, %v302
    %v319 = vpack.c.bf16 %v303, %v303
    %v320 = vpack.c.bf16 %v304, %v304
    %v321 = vpack.c.bf16 %v305, %v305
    %v322 = vpack.c.bf16 %v306, %v306
    %v323 = vpack.c.bf16 %v307, %v307
    %v324 = vpack.c.bf16 %v308, %v308
    %vm325 = vcmask 60416
    %326 = vst.msk [vmem:[#allocation2] sm:$0xf] %vm325, %v309
    %327 = vst.msk [vmem:[#allocation2 + $0x4] sm:$0xf] %vm325, %v310
    %328 = vst.msk [vmem:[#allocation2 + $0x8] sm:$0xf] %vm325, %v311
    %329 = vst.msk [vmem:[#allocation2 + $0xc] sm:$0xf] %vm325, %v312
    %330 = vst.msk [vmem:[#allocation2 + $0x10] sm:$0xf] %vm325, %v313
    %331 = vst.msk [vmem:[#allocation2 + $0x14] sm:$0xf] %vm325, %v314
    %332 = vst.msk [vmem:[#allocation2 + $0x18] sm:$0xf] %vm325, %v315
    %333 = vst.msk [vmem:[#allocation2 + $0x1c] sm:$0xf] %vm325, %v316
    %334 = vst.msk [vmem:[#allocation2 + $0x20] sm:$0xf] %vm325, %v317
    %335 = vst.msk [vmem:[#allocation2 + $0x24] sm:$0xf] %vm325, %v318
    %336 = vst.msk [vmem:[#allocation2 + $0x28] sm:$0xf] %vm325, %v319
    %337 = vst.msk [vmem:[#allocation2 + $0x2c] sm:$0xf] %vm325, %v320
    %338 = vst.msk [vmem:[#allocation2 + $0x30] sm:$0xf] %vm325, %v321
    %339 = vst.msk [vmem:[#allocation2 + $0x34] sm:$0xf] %vm325, %v322
    %340 = vst.msk [vmem:[#allocation2 + $0x38] sm:$0xf] %vm325, %v323
    %341 = vst.msk [vmem:[#allocation2 + $0x3c] sm:$0xf] %vm325, %v324
    %v342 = vld [vmem:[%s3] sm:$0xf]
    %v343 = vld [vmem:[%s3 + $0x4] sm:$0xf]
    %v344 = vld [vmem:[%s3 + $0x8] sm:$0xf]
    %v345 = vld [vmem:[%s3 + $0xc] sm:$0xf]
    %v346 = vld [vmem:[%s3 + $0x10] sm:$0xf]
    %v347 = vld [vmem:[%s3 + $0x14] sm:$0xf]
    %v348 = vld [vmem:[%s3 + $0x18] sm:$0xf]
    %v349 = vld [vmem:[%s3 + $0x1c] sm:$0xf]
    %v358 = vunpack.c.l.b16 %v342
    %v359 = vunpack.c.l.b16 %v343
    %v360 = vunpack.c.l.b16 %v344
    %v361 = vunpack.c.l.b16 %v345
    %v362 = vunpack.c.l.b16 %v346
    %v363 = vunpack.c.l.b16 %v347
    %v364 = vunpack.c.l.b16 %v348
    %v365 = vunpack.c.l.b16 %v349
    %v366 = vpack.c.b16 %v359, %v358
    %v367 = vpack.c.b16 %v361, %v360
    %v368 = vpack.c.b16 %v363, %v362
    %v369 = vpack.c.b16 %v365, %v364
    %v390 = vunpack.c.l.b16 %v309
    %v391 = vunpack.c.l.b16 %v310
    %v392 = vunpack.c.l.b16 %v311
    %v393 = vunpack.c.l.b16 %v312
    %v394 = vunpack.c.l.b16 %v313
    %v395 = vunpack.c.l.b16 %v314
    %v396 = vunpack.c.l.b16 %v315
    %v397 = vunpack.c.l.b16 %v316
    %v398 = vunpack.c.l.b16 %v317
    %v399 = vunpack.c.l.b16 %v318
    %v400 = vunpack.c.l.b16 %v319
    %v401 = vunpack.c.l.b16 %v320
    %v402 = vunpack.c.l.b16 %v321
    %v403 = vunpack.c.l.b16 %v322
    %v404 = vunpack.c.l.b16 %v323
    %v405 = vunpack.c.l.b16 %v324
    %v406 = vpack.c.b16 %v391, %v390
    %v407 = vpack.c.b16 %v393, %v392
    %v408 = vpack.c.b16 %v395, %v394
    %v409 = vpack.c.b16 %v397, %v396
    %v410 = vpack.c.b16 %v399, %v398
    %v411 = vpack.c.b16 %v401, %v400
    %v412 = vpack.c.b16 %v403, %v402
    %v413 = vpack.c.b16 %v405, %v404
    %422 = vmatpush.bf16.msra.mxu0 %v413
    %423 = vmatpush.bf16.msra.mxu0 %v412
    %424 = vmatpush.bf16.msra.mxu0 %v411
    %425 = vmatpush.bf16.msra.mxu0 %v410
    %426 = vmatpush.bf16.msra.mxu0 %v409
    %427 = vmatpush.bf16.msra.mxu0 %v408
    %428 = vmatpush.bf16.msra.mxu0 %v407
    %429 = vmatpush.bf16.msra.mxu0 %v406
    %430 = vmatmul.bf16.gmra.mxu0 %v366
    %v431 = vpop.f32.mrf.mxu0
    %v432 = vadd.f32 0.0, %v431
    %v433 = vpop.f32.mrf.mxu0
    %v434 = vadd.f32 0.0, %v433
    %435 = vmatmul.bf16.gmra.mxu0 %v367
    %v436 = vpop.f32.mrf.mxu0
    %v437 = vadd.f32 0.0, %v436
    %v438 = vpop.f32.mrf.mxu0
    %v439 = vadd.f32 0.0, %v438
    %440 = vmatmul.bf16.gmra.mxu0 %v368
    %v441 = vpop.f32.mrf.mxu0
    %v442 = vadd.f32 0.0, %v441
    %v443 = vpop.f32.mrf.mxu0
    %v444 = vadd.f32 0.0, %v443
    %445 = vmatmul.bf16.gmra.mxu0 %v369
    %v446 = vpop.f32.mrf.mxu0
    %v447 = vadd.f32 0.0, %v446
    %v448 = vpop.f32.mrf.mxu0
    %v449 = vadd.f32 0.0, %v448
    %450 = vdwg.mxu0
    %v451 = vpack.c.bf16 %v432, %v432
    %v452 = vpack.c.bf16 %v434, %v434
    %v453 = vpack.c.bf16 %v437, %v437
    %v454 = vpack.c.bf16 %v439, %v439
    %v455 = vpack.c.bf16 %v442, %v442
    %v456 = vpack.c.bf16 %v444, %v444
    %v457 = vpack.c.bf16 %v447, %v447
    %v458 = vpack.c.bf16 %v449, %v449
    %459 = vst.msk [vmem:[%s5] sm:$0xf] %vm325, %v451
    %460 = vst.msk [vmem:[%s5 + $0x4] sm:$0xf] %vm325, %v452
    %461 = vst.msk [vmem:[%s5 + $0x8] sm:$0xf] %vm325, %v453
    %462 = vst.msk [vmem:[%s5 + $0xc] sm:$0xf] %vm325, %v454
    %463 = vst.msk [vmem:[%s5 + $0x10] sm:$0xf] %vm325, %v455
    %464 = vst.msk [vmem:[%s5 + $0x14] sm:$0xf] %vm325, %v456
    %465 = vst.msk [vmem:[%s5 + $0x18] sm:$0xf] %vm325, %v457
    %466 = vst.msk [vmem:[%s5 + $0x1c] sm:$0xf] %vm325, %v458
    // Predicated region
    $region18: #{base_model_forward.8} parent=1 // pred_check
      _
    $region19: #{base_model_forward.8} parent=1 // pred_check_branch
      %468 = sbr.rel (0) target = $region21
    $region20: #{base_model_forward.8} parent=1 // pred_region
      %470 = vsyncadd [#allocation3], 0
      %s471 = sshll.u32 [#allocation2], 4
      %s472 = int_to_ptr.vmem [resolvable:$true] %s471
      %s473 = sshll.u32 %s4, 4
      %s474 = int_to_ptr.hbm [resolvable:$true] %s473
      %479 = dma.vmem_to_hbm [thread:$0]  %s472, 1024, %s474, [#allocation3], 64, 64, 4
    $region21: #{base_model_forward.8} parent=1 // pred_fallthru
      _
    // Predicated region
    $region22: #{base_model_forward.8} parent=1 // pred_check
      _
    $region23: #{base_model_forward.8} parent=1 // pred_check_branch
      %481 = sbr.rel (0) target = $region25
    $region24: #{base_model_forward.8} parent=1 // pred_region
      _
    $region25: #{base_model_forward.8} parent=1 // pred_fallthru
      _
    // Predicated region
    $region26: #{base_model_forward.8} parent=1 // pred_check
      _
    $region27: #{base_model_forward.8} parent=1 // pred_check_branch
      %483 = sbr.rel (0) target = $region29
    $region28: #{base_model_forward.8} parent=1 // pred_region
      %485 = dma.done [#allocation3], 1024
    $region29: #{base_model_forward.8} parent=1 // pred_fallthru
      _
    // Predicated region
    $region30: #{base_model_forward.8} parent=1 // pred_check
      _
    $region31: #{base_model_forward.8} parent=1 // pred_check_branch
      %487 = sbr.rel (0) target = $region33
    $region32: #{base_model_forward.8} parent=1 // pred_region
      _
    $region33: #{base_model_forward.8} parent=1 // pred_fallthru
      _
    %488 = vsyncpa [#allocation3], 1

// kernel: base_model_forward.9
$region0: #{base_model_forward.9}
  #allocation0 [shape = 'u32[]', space=smem, size = 0x4, offset = 0x4, fixed_abs, tag = 'smem constant byte address 0x4 - core index']
  #allocation1 [shape = 'u32[72,128]{1,0:T(1,128)}', space=vmem, size = 0x9000, scoped, tag = 'internal scratch']
  %s0 = inlined_call_operand.vmem [shape: bf16[64,512], index: 0, kind: input, shape index: {}]
  %s1 = inlined_call_operand.vmem [shape: bf16[64,512], index: 1, kind: input, shape index: {}]
  %s2 = inlined_call_operand.vmem [shape: bf16[64,512], index: 2, kind: input, shape index: {}]
  %s3 = inlined_call_operand.vmem [shape: bf16[64,512], index: 3, kind: input, shape index: {}]
  %s4 = inlined_call_operand.vmem [shape: f32[64,1], index: 4, kind: input, shape index: {}]
  %s5 = inlined_call_operand.vmem [shape: bf16[16,64], index: 5, kind: input, shape index: {}]
  %s6 = inlined_call_operand.vmem [shape: f32[16,1], index: 6, kind: input, shape index: {}]
  %s7 = inlined_call_operand.vmem [shape: f32[8,512], index: 7, kind: output, shape index: {0}]
  %s8 = inlined_call_operand.vmem [shape: s32[1,512], index: 8, kind: output, shape index: {1}]
  %s9 = inlined_call_operand.vmem [shape: f32[1,512], index: 9, kind: output, shape index: {2}]
  %10 = xla_tuple %s7, %s8, %s9
  %s11 = sld [smem:[#allocation0]]
  $region229: #{base_model_forward.9} parent=0
    _
  %s13 = ssub.s32 1, %s11
  %s14 = scalar_select 0, %s13, %s11
  $region1: #{base_model_forward.9} parent=0
    #allocation2 [shape = 'u8[65536]{0}', space=vmem, size = 0x10000, scoped, tag = 'input window, operand 0']
    #allocation3 [shape = 'u8[65536]{0}', space=vmem, size = 0x10000, scoped, tag = 'input window, operand 1']
    #allocation4 [shape = 'u8[65536]{0}', space=vmem, size = 0x10000, scoped, tag = 'input window, operand 2']
    #allocation5 [shape = 'u8[65536]{0}', space=vmem, size = 0x10000, scoped, tag = 'input window, operand 3']
    loop: start=0, step=1, limit=4
    $region2: #{base_model_forward.9} parent=1 // loop_pre_header
      _
    $region3: #{base_model_forward.9} parent=1 // loop_header
      %s16 = sphi 0, %s20
      %p17 = scmp.ge.s32.totalorder %s16, 4
      %s26 = sphi 0, %s28
      %s29 = sphi 0, %s26
      %s30 = sphi 0, %s29
      %s46 = sphi 0, %s30
      %s52 = sphi 0, %s54
      %s55 = sphi 0, %s52
      %s56 = sphi 0, %s55
      %s72 = sphi 0, %s56
      %s78 = sphi 0, %s80
      %s81 = sphi 0, %s78
      %s82 = sphi 0, %s81
      %s98 = sphi 0, %s82
      %s104 = sphi 0, %s106
      %s107 = sphi 0, %s104
      %s108 = sphi 0, %s107
      %s124 = sphi 0, %s108
      %s128 = sphi 0, %s128
      %s130 = sphi 0, %s128
      %s131 = sphi 0, %s130
      %s145 = sphi 0, %s131
      %s149 = sphi 0, %s149
      %s151 = sphi 0, %s149
      %s152 = sphi 0, %s151
      %s166 = sphi 0, %s152
      %s170 = sphi 0, %s170
      %s172 = sphi 0, %s170
      %s173 = sphi 0, %s172
      %s187 = sphi 0, %s173
      %s193 = sphi 0, %s195
      %s196 = sphi 0, %s193
      %s197 = sphi 0, %s196
      %s213 = sphi 0, %s197
      %s219 = sphi 0, %s221
      %s222 = sphi 0, %s219
      %s223 = sphi 0, %s222
      %s239 = sphi 0, %s223
      %s245 = sphi 0, %s247
      %s248 = sphi 0, %s245
      %s249 = sphi 0, %s248
      %s265 = sphi 0, %s249
    $region4: #{base_model_forward.9} parent=1 // loop_header_branch
      %19 = sbr.rel (%p17) target = $region8
    $region5: #{base_model_forward.9} parent=1 // loop_body
      %s21 = ssub.s32 %s16, 1
      %s22 = ssub.s32 %s16, 2
      %s23 = sadd.s32 %s16, 1
      %s24 = ssub.s32 %s16, %s23
      %p25 = scmp.eq.s32.totalorder %s24, 0
      %s27 = sadd.s32 %s26, 1
      %s28 = scalar_select %p25, %s26, %s27
      %p31 = pneg %p25
      %p32 = scmp.eq.s32.totalorder %s16, 1
      %p33 = por %p31, %p32
      %p34 = scmp.ne.s32.totalorder %s26, %s29
      %p35 = scmp.eq.s32.totalorder %s16, 0
      %p36 = por %p34, %p35
      %p37 = scmp.ne.s32.totalorder %s26, %s29
      %p38 = scmp.eq.s32.totalorder %s21, 1
      %p39 = por %p37, %p38
      %p40 = scmp.ne.s32.totalorder %s29, %s30
      %p41 = scmp.eq.s32.totalorder %s21, 0
      %p42 = por %p40, %p41
      %p43 = scmp.ne.s32.totalorder %s29, %s30
      %p44 = scmp.eq.s32.totalorder %s22, 1
      %p45 = por %p43, %p44
      %p47 = scmp.ne.s32.totalorder %s30, %s46
      %p48 = scmp.eq.s32.totalorder %s22, 0
      %p49 = por %p47, %p48
      %s50 = ssub.s32 %s16, %s23
      %p51 = scmp.eq.s32.totalorder %s50, 0
      %s53 = sadd.s32 %s52, 1
      %s54 = scalar_select %p51, %s52, %s53
      %p57 = pneg %p51
      %p58 = scmp.eq.s32.totalorder %s16, 1
      %p59 = por %p57, %p58
      %p60 = scmp.ne.s32.totalorder %s52, %s55
      %p61 = scmp.eq.s32.totalorder %s16, 0
      %p62 = por %p60, %p61
      %p63 = scmp.ne.s32.totalorder %s52, %s55
      %p64 = scmp.eq.s32.totalorder %s21, 1
      %p65 = por %p63, %p64
      %p66 = scmp.ne.s32.totalorder %s55, %s56
      %p67 = scmp.eq.s32.totalorder %s21, 0
      %p68 = por %p66, %p67
      %p69 = scmp.ne.s32.totalorder %s55, %s56
      %p70 = scmp.eq.s32.totalorder %s22, 1
      %p71 = por %p69, %p70
      %p73 = scmp.ne.s32.totalorder %s56, %s72
      %p74 = scmp.eq.s32.totalorder %s22, 0
      %p75 = por %p73, %p74
      %s76 = ssub.s32 %s16, %s23
      %p77 = scmp.eq.s32.totalorder %s76, 0
      %s79 = sadd.s32 %s78, 1
      %s80 = scalar_select %p77, %s78, %s79
      %p83 = pneg %p77
      %p84 = scmp.eq.s32.totalorder %s16, 1
      %p85 = por %p83, %p84
      %p86 = scmp.ne.s32.totalorder %s78, %s81
      %p87 = scmp.eq.s32.totalorder %s16, 0
      %p88 = por %p86, %p87
      %p89 = scmp.ne.s32.totalorder %s78, %s81
      %p90 = scmp.eq.s32.totalorder %s21, 1
      %p91 = por %p89, %p90
      %p92 = scmp.ne.s32.totalorder %s81, %s82
      %p93 = scmp.eq.s32.totalorder %s21, 0
      %p94 = por %p92, %p93
      %p95 = scmp.ne.s32.totalorder %s81, %s82
      %p96 = scmp.eq.s32.totalorder %s22, 1
      %p97 = por %p95, %p96
      %p99 = scmp.ne.s32.totalorder %s82, %s98
      %p100 = scmp.eq.s32.totalorder %s22, 0
      %p101 = por %p99, %p100
      %s102 = ssub.s32 %s16, %s23
      %p103 = scmp.eq.s32.totalorder %s102, 0
      %s105 = sadd.s32 %s104, 1
      %s106 = scalar_select %p103, %s104, %s105
      %p109 = pneg %p103
      %p110 = scmp.eq.s32.totalorder %s16, 1
      %p111 = por %p109, %p110
      %p112 = scmp.ne.s32.totalorder %s104, %s107
      %p113 = scmp.eq.s32.totalorder %s16, 0
      %p114 = por %p112, %p113
      %p115 = scmp.ne.s32.totalorder %s104, %s107
      %p116 = scmp.eq.s32.totalorder %s21, 1
      %p117 = por %p115, %p116
      %p118 = scmp.ne.s32.totalorder %s107, %s108
      %p119 = scmp.eq.s32.totalorder %s21, 0
      %p120 = por %p118, %p119
      %p121 = scmp.ne.s32.totalorder %s107, %s108
      %p122 = scmp.eq.s32.totalorder %s22, 1
      %p123 = por %p121, %p122
      %p125 = scmp.ne.s32.totalorder %s108, %s124
      %p126 = scmp.eq.s32.totalorder %s22, 0
      %p127 = por %p125, %p126
      %s129 = sadd.s32 %s128, 1
      %p132 = scmp.eq.s32.totalorder %s16, 1
      %p133 = scmp.ne.s32.totalorder %s128, %s130
      %p134 = scmp.eq.s32.totalorder %s16, 0
      %p135 = por %p133, %p134
      %p136 = scmp.ne.s32.totalorder %s128, %s130
      %p137 = scmp.eq.s32.totalorder %s21, 1
      %p138 = por %p136, %p137
      %p139 = scmp.ne.s32.totalorder %s130, %s131
      %p140 = scmp.eq.s32.totalorder %s21, 0
      %p141 = por %p139, %p140
      %p142 = scmp.ne.s32.totalorder %s130, %s131
      %p143 = scmp.eq.s32.totalorder %s22, 1
      %p144 = por %p142, %p143
      %p146 = scmp.ne.s32.totalorder %s131, %s145
      %p147 = scmp.eq.s32.totalorder %s22, 0
      %p148 = por %p146, %p147
      %s150 = sadd.s32 %s149, 1
      %p153 = scmp.eq.s32.totalorder %s16, 1
      %p154 = scmp.ne.s32.totalorder %s149, %s151
      %p155 = scmp.eq.s32.totalorder %s16, 0
      %p156 = por %p154, %p155
      %p157 = scmp.ne.s32.totalorder %s149, %s151
      %p158 = scmp.eq.s32.totalorder %s21, 1
      %p159 = por %p157, %p158
      %p160 = scmp.ne.s32.totalorder %s151, %s152
      %p161 = scmp.eq.s32.totalorder %s21, 0
      %p162 = por %p160, %p161
      %p163 = scmp.ne.s32.totalorder %s151, %s152
      %p164 = scmp.eq.s32.totalorder %s22, 1
      %p165 = por %p163, %p164
      %p167 = scmp.ne.s32.totalorder %s152, %s166
      %p168 = scmp.eq.s32.totalorder %s22, 0
      %p169 = por %p167, %p168
      %s171 = sadd.s32 %s170, 1
      %p174 = scmp.eq.s32.totalorder %s16, 1
      %p175 = scmp.ne.s32.totalorder %s170, %s172
      %p176 = scmp.eq.s32.totalorder %s16, 0
      %p177 = por %p175, %p176
      %p178 = scmp.ne.s32.totalorder %s170, %s172
      %p179 = scmp.eq.s32.totalorder %s21, 1
      %p180 = por %p178, %p179
      %p181 = scmp.ne.s32.totalorder %s172, %s173
      %p182 = scmp.eq.s32.totalorder %s21, 0
      %p183 = por %p181, %p182
      %p184 = scmp.ne.s32.totalorder %s172, %s173
      %p185 = scmp.eq.s32.totalorder %s22, 1
      %p186 = por %p184, %p185
      %p188 = scmp.ne.s32.totalorder %s173, %s187
      %p189 = scmp.eq.s32.totalorder %s22, 0
      %p190 = por %p188, %p189
      %s191 = ssub.s32 %s16, %s23
      %p192 = scmp.eq.s32.totalorder %s191, 0
      %s194 = sadd.s32 %s193, 1
      %s195 = scalar_select %p192, %s193, %s194
      %p198 = pneg %p192
      %p199 = scmp.eq.s32.totalorder %s16, 1
      %p200 = por %p198, %p199
      %p201 = scmp.ne.s32.totalorder %s193, %s196
      %p202 = scmp.eq.s32.totalorder %s16, 0
      %p203 = por %p201, %p202
      %p204 = scmp.ne.s32.totalorder %s193, %s196
      %p205 = scmp.eq.s32.totalorder %s21, 1
      %p206 = por %p204, %p205
      %p207 = scmp.ne.s32.totalorder %s196, %s197
      %p208 = scmp.eq.s32.totalorder %s21, 0
      %p209 = por %p207, %p208
      %p210 = scmp.ne.s32.totalorder %s196, %s197
      %p211 = scmp.eq.s32.totalorder %s22, 1
      %p212 = por %p210, %p211
      %p214 = scmp.ne.s32.totalorder %s197, %s213
      %p215 = scmp.eq.s32.totalorder %s22, 0
      %p216 = por %p214, %p215
      %s217 = ssub.s32 %s16, %s23
      %p218 = scmp.eq.s32.totalorder %s217, 0
      %s220 = sadd.s32 %s219, 1
      %s221 = scalar_select %p218, %s219, %s220
      %p224 = pneg %p218
      %p225 = scmp.eq.s32.totalorder %s16, 1
      %p226 = por %p224, %p225
      %p227 = scmp.ne.s32.totalorder %s219, %s222
      %p228 = scmp.eq.s32.totalorder %s16, 0
      %p229 = por %p227, %p228
      %p230 = scmp.ne.s32.totalorder %s219, %s222
      %p231 = scmp.eq.s32.totalorder %s21, 1
      %p232 = por %p230, %p231
      %p233 = scmp.ne.s32.totalorder %s222, %s223
      %p234 = scmp.eq.s32.totalorder %s21, 0
      %p235 = por %p233, %p234
      %p236 = scmp.ne.s32.totalorder %s222, %s223
      %p237 = scmp.eq.s32.totalorder %s22, 1
      %p238 = por %p236, %p237
      %p240 = scmp.ne.s32.totalorder %s223, %s239
      %p241 = scmp.eq.s32.totalorder %s22, 0
      %p242 = por %p240, %p241
      %s243 = ssub.s32 %s16, %s23
      %p244 = scmp.eq.s32.totalorder %s243, 0
      %s246 = sadd.s32 %s245, 1
      %s247 = scalar_select %p244, %s245, %s246
      %p250 = pneg %p244
      %p251 = scmp.eq.s32.totalorder %s16, 1
      %p252 = por %p250, %p251
      %p253 = scmp.ne.s32.totalorder %s245, %s248
      %p254 = scmp.eq.s32.totalorder %s16, 0
      %p255 = por %p253, %p254
      %p256 = scmp.ne.s32.totalorder %s245, %s248
      %p257 = scmp.eq.s32.totalorder %s21, 1
      %p258 = por %p256, %p257
      %p259 = scmp.ne.s32.totalorder %s248, %s249
      %p260 = scmp.eq.s32.totalorder %s21, 0
      %p261 = por %p259, %p260
      %p262 = scmp.ne.s32.totalorder %s248, %s249
      %p263 = scmp.eq.s32.totalorder %s22, 1
      %p264 = por %p262, %p263
      %p266 = scmp.ne.s32.totalorder %s249, %s265
      %p267 = scmp.eq.s32.totalorder %s22, 0
      %p268 = por %p266, %p267
      %p269 = scmp.le.s32.totalorder 1, %s16
      %p270 = scmp.lt.s32.totalorder %s16, 3
      %p271 = pnand %p269, %p270
      %p272 = pneg %p271
      // Predicated region
      $region9: #{base_model_forward.9} parent=5 // pred_check
        _
      $region10: #{base_model_forward.9} parent=5 // pred_check_branch
        %274 = sbr.rel (%p271) target = $region12
      $region11: #{base_model_forward.9} parent=5 // pred_region
        %s275 = ssub.s32 %s16, 1
        // Predicated region
        $region13: #{base_model_forward.9} parent=11 // pred_check
          %p276 = pneg %p141
        $region14: #{base_model_forward.9} parent=11 // pred_check_branch
          %278 = sbr.rel (%p276) target = $region16
        $region15: #{base_model_forward.9} parent=11 // pred_region
          _
        $region16: #{base_model_forward.9} parent=11 // pred_fallthru
          _
        // Predicated region
        $region17: #{base_model_forward.9} parent=11 // pred_check
          %p279 = pneg %p162
        $region18: #{base_model_forward.9} parent=11 // pred_check_branch
          %281 = sbr.rel (%p279) target = $region20
        $region19: #{base_model_forward.9} parent=11 // pred_region
          _
        $region20: #{base_model_forward.9} parent=11 // pred_fallthru
          _
        // Predicated region
        $region21: #{base_model_forward.9} parent=11 // pred_check
          %p282 = pneg %p183
        $region22: #{base_model_forward.9} parent=11 // pred_check_branch
          %284 = sbr.rel (%p282) target = $region24
        $region23: #{base_model_forward.9} parent=11 // pred_region
          _
        $region24: #{base_model_forward.9} parent=11 // pred_fallthru
          _
      $region12: #{base_model_forward.9} parent=5 // pred_fallthru
        _
      %p285 = scmp.lt.s32.totalorder %s16, 2
      // Predicated region
      $region25: #{base_model_forward.9} parent=5 // pred_check
        %p286 = pneg %p285
      $region26: #{base_model_forward.9} parent=5 // pred_check_branch
        %288 = sbr.rel (%p286) target = $region28
      $region27: #{base_model_forward.9} parent=5 // pred_region
        // Predicated region
        $region29: #{base_model_forward.9} parent=27 // pred_check
          %p289 = pneg %p36
        $region30: #{base_model_forward.9} parent=27 // pred_check_branch
          %291 = sbr.rel (%p289) target = $region32
        $region31: #{base_model_forward.9} parent=27 // pred_region
          %s292 = sand.u32 %s26, 1
          %s293 = sand.u32 %s26, 1
          %s294 = smul.addr %s293, 64
          %s295 = scalar_lea.vmem [#allocation2], %s294
          %s296 = smul.u32 2, %s16
          %s297 = smul.addr %s296, 4
          %s298 = scalar_lea.vmem %s0, %s297
          // Predicated region
          $region33: #{base_model_forward.9} parent=31 // pred_check
            _
          $region34: #{base_model_forward.9} parent=31 // pred_check_branch
            %300 = sbr.rel (0) target = $region36
          $region35: #{base_model_forward.9} parent=31 // pred_region
            // Predicated region
            $region37: #{base_model_forward.9} parent=35 // pred_check
              _
            $region38: #{base_model_forward.9} parent=35 // pred_check_branch
              %302 = sbr.rel (0) target = $region40
            $region39: #{base_model_forward.9} parent=35 // pred_region
              // Predicated region
              $region52: #{base_model_forward.9} parent=39 // pred_check
                _
              $region53: #{base_model_forward.9} parent=39 // pred_check_branch
                %332 = sbr.rel (0) target = $region55
              $region54: #{base_model_forward.9} parent=39 // pred_region
                loop: start=0, step=1, limit=1
                $region56: #{base_model_forward.9} parent=54 // loop_pre_header
                  _
                $region57: #{base_model_forward.9} parent=54 // loop_header
                  %s334 = sphi 0, %s338
                  %p335 = scmp.ge.s32.totalorder %s334, 1
                  %s339 = sphi %s298, %s298
                  %s340 = sphi %s295, %s295
                $region58: #{base_model_forward.9} parent=54 // loop_header_branch
                  %337 = sbr.rel (%p335) target = $region62
                $region59: #{base_model_forward.9} parent=54 // loop_body
                  %v341 = vld [vmem:[%s339] sm:$0xff]
                  %342 = vst [vmem:[%s340] sm:$0xff] %v341
                  %v343 = vld [vmem:[%s339 + $0x10] sm:$0xff]
                  %344 = vst [vmem:[%s340 + $0x8] sm:$0xff] %v343
                  %v345 = vld [vmem:[%s339 + $0x20] sm:$0xff]
                  %346 = vst [vmem:[%s340 + $0x10] sm:$0xff] %v345
                  %v347 = vld [vmem:[%s339 + $0x30] sm:$0xff]
                  %348 = vst [vmem:[%s340 + $0x18] sm:$0xff] %v347
                  %v349 = vld [vmem:[%s339 + $0x40] sm:$0xff]
                  %350 = vst [vmem:[%s340 + $0x20] sm:$0xff] %v349
                  %v351 = vld [vmem:[%s339 + $0x50] sm:$0xff]
                  %352 = vst [vmem:[%s340 + $0x28] sm:$0xff] %v351
                  %v353 = vld [vmem:[%s339 + $0x60] sm:$0xff]
                  %354 = vst [vmem:[%s340 + $0x30] sm:$0xff] %v353
                  %v355 = vld [vmem:[%s339 + $0x70] sm:$0xff]
                  %356 = vst [vmem:[%s340 + $0x38] sm:$0xff] %v355
                $region60: #{base_model_forward.9} parent=54 // loop_footer
                  %s338 = sadd.s32 1, %s334
                $region61: #{base_model_forward.9} parent=54 // loop_footer_branch
                  %333 = sbr.rel target = $region57
                $region62: #{base_model_forward.9} parent=54 // loop_exit
                  _
              $region55: #{base_model_forward.9} parent=39 // pred_fallthru
                _
              // Predicated region
              $region63: #{base_model_forward.9} parent=39 // pred_check
                _
              $region64: #{base_model_forward.9} parent=39 // pred_check_branch
                %358 = sbr.rel target = $region66
              $region65: #{base_model_forward.9} parent=39 // pred_region
                _
              $region66: #{base_model_forward.9} parent=39 // pred_fallthru
                _
            $region40: #{base_model_forward.9} parent=35 // pred_fallthru
              _
            // Predicated region
            $region41: #{base_model_forward.9} parent=35 // pred_check
              _
            $region42: #{base_model_forward.9} parent=35 // pred_check_branch
              %304 = sbr.rel target = $region44
            $region43: #{base_model_forward.9} parent=35 // pred_region
              %s306 = ssub.s32 256, 1
              loop: start=0, step=1, limit=1
              $region45: #{base_model_forward.9} parent=43 // loop_pre_header
                _
              $region46: #{base_model_forward.9} parent=43 // loop_header
                %s308 = sphi 0, %s312
                %p309 = scmp.ge.s32.totalorder %s308, 1
                %s313 = sphi %s298, %s298
                %s314 = sphi %s295, %s295
              $region47: #{base_model_forward.9} parent=43 // loop_header_branch
                %311 = sbr.rel (%p309) target = $region51
              $region48: #{base_model_forward.9} parent=43 // loop_body
                %v315 = vld [vmem:[%s313] sm:%s306]
                %316 = vst [vmem:[%s314] sm:%s306] %v315
                %v317 = vld [vmem:[%s313 + $0x10] sm:%s306]
                %318 = vst [vmem:[%s314 + $0x8] sm:%s306] %v317
                %v319 = vld [vmem:[%s313 + $0x20] sm:%s306]
                %320 = vst [vmem:[%s314 + $0x10] sm:%s306] %v319
                %v321 = vld [vmem:[%s313 + $0x30] sm:%s306]
                %322 = vst [vmem:[%s314 + $0x18] sm:%s306] %v321
                %v323 = vld [vmem:[%s313 + $0x40] sm:%s306]
                %324 = vst [vmem:[%s314 + $0x20] sm:%s306] %v323
                %v325 = vld [vmem:[%s313 + $0x50] sm:%s306]
                %326 = vst [vmem:[%s314 + $0x28] sm:%s306] %v325
                %v327 = vld [vmem:[%s313 + $0x60] sm:%s306]
                %328 = vst [vmem:[%s314 + $0x30] sm:%s306] %v327
                %v329 = vld [vmem:[%s313 + $0x70] sm:%s306]
                %330 = vst [vmem:[%s314 + $0x38] sm:%s306] %v329
              $region49: #{base_model_forward.9} parent=43 // loop_footer
                %s312 = sadd.s32 1, %s308
              $region50: #{base_model_forward.9} parent=43 // loop_footer_branch
                %307 = sbr.rel target = $region46
              $region51: #{base_model_forward.9} parent=43 // loop_exit
                _
            $region44: #{base_model_forward.9} parent=35 // pred_fallthru
              _
          $region36: #{base_model_forward.9} parent=31 // pred_fallthru
            _
          %359 = vnop
        $region32: #{base_model_forward.9} parent=27 // pred_fallthru
          _
        // Predicated region
        $region67: #{base_model_forward.9} parent=27 // pred_check
          %p360 = pneg %p62
        $region68: #{base_model_forward.9} parent=27 // pred_check_branch
          %362 = sbr.rel (%p360) target = $region70
        $region69: #{base_model_forward.9} parent=27 // pred_region
          %s363 = sand.u32 %s52, 1
          %s364 = sand.u32 %s52, 1
          %s365 = smul.addr %s364, 64
          %s366 = scalar_lea.vmem [#allocation3], %s365
          %s367 = smul.u32 2, %s16
          %s368 = smul.addr %s367, 4
          %s369 = scalar_lea.vmem %s1, %s368
          // Predicated region
          $region71: #{base_model_forward.9} parent=69 // pred_check
            _
          $region72: #{base_model_forward.9} parent=69 // pred_check_branch
            %371 = sbr.rel (0) target = $region74
          $region73: #{base_model_forward.9} parent=69 // pred_region
            // Predicated region
            $region75: #{base_model_forward.9} parent=73 // pred_check
              _
            $region76: #{base_model_forward.9} parent=73 // pred_check_branch
              %373 = sbr.rel (0) target = $region78
            $region77: #{base_model_forward.9} parent=73 // pred_region
              // Predicated region
              $region90: #{base_model_forward.9} parent=77 // pred_check
                _
              $region91: #{base_model_forward.9} parent=77 // pred_check_branch
                %403 = sbr.rel (0) target = $region93
              $region92: #{base_model_forward.9} parent=77 // pred_region
                loop: start=0, step=1, limit=1
                $region94: #{base_model_forward.9} parent=92 // loop_pre_header
                  _
                $region95: #{base_model_forward.9} parent=92 // loop_header
                  %s405 = sphi 0, %s409
                  %p406 = scmp.ge.s32.totalorder %s405, 1
                  %s410 = sphi %s369, %s369
                  %s411 = sphi %s366, %s366
                $region96: #{base_model_forward.9} parent=92 // loop_header_branch
                  %408 = sbr.rel (%p406) target = $region100
                $region97: #{base_model_forward.9} parent=92 // loop_body
                  %v412 = vld [vmem:[%s410] sm:$0xff]
                  %413 = vst [vmem:[%s411] sm:$0xff] %v412
                  %v414 = vld [vmem:[%s410 + $0x10] sm:$0xff]
                  %415 = vst [vmem:[%s411 + $0x8] sm:$0xff] %v414
                  %v416 = vld [vmem:[%s410 + $0x20] sm:$0xff]
                  %417 = vst [vmem:[%s411 + $0x10] sm:$0xff] %v416
                  %v418 = vld [vmem:[%s410 + $0x30] sm:$0xff]
                  %419 = vst [vmem:[%s411 + $0x18] sm:$0xff] %v418
                  %v420 = vld [vmem:[%s410 + $0x40] sm:$0xff]
                  %421 = vst [vmem:[%s411 + $0x20] sm:$0xff] %v420
                  %v422 = vld [vmem:[%s410 + $0x50] sm:$0xff]
                  %423 = vst [vmem:[%s411 + $0x28] sm:$0xff] %v422
                  %v424 = vld [vmem:[%s410 + $0x60] sm:$0xff]
                  %425 = vst [vmem:[%s411 + $0x30] sm:$0xff] %v424
                  %v426 = vld [vmem:[%s410 + $0x70] sm:$0xff]
                  %427 = vst [vmem:[%s411 + $0x38] sm:$0xff] %v426
                $region98: #{base_model_forward.9} parent=92 // loop_footer
                  %s409 = sadd.s32 1, %s405
                $region99: #{base_model_forward.9} parent=92 // loop_footer_branch
                  %404 = sbr.rel target = $region95
                $region100: #{base_model_forward.9} parent=92 // loop_exit
                  _
              $region93: #{base_model_forward.9} parent=77 // pred_fallthru
                _
              // Predicated region
              $region101: #{base_model_forward.9} parent=77 // pred_check
                _
              $region102: #{base_model_forward.9} parent=77 // pred_check_branch
                %429 = sbr.rel target = $region104
              $region103: #{base_model_forward.9} parent=77 // pred_region
                _
              $region104: #{base_model_forward.9} parent=77 // pred_fallthru
                _
            $region78: #{base_model_forward.9} parent=73 // pred_fallthru
              _
            // Predicated region
            $region79: #{base_model_forward.9} parent=73 // pred_check
              _
            $region80: #{base_model_forward.9} parent=73 // pred_check_branch
              %375 = sbr.rel target = $region82
            $region81: #{base_model_forward.9} parent=73 // pred_region
              %s377 = ssub.s32 256, 1
              loop: start=0, step=1, limit=1
              $region83: #{base_model_forward.9} parent=81 // loop_pre_header
                _
              $region84: #{base_model_forward.9} parent=81 // loop_header
                %s379 = sphi 0, %s383
                %p380 = scmp.ge.s32.totalorder %s379, 1
                %s384 = sphi %s369, %s369
                %s385 = sphi %s366, %s366
              $region85: #{base_model_forward.9} parent=81 // loop_header_branch
                %382 = sbr.rel (%p380) target = $region89
              $region86: #{base_model_forward.9} parent=81 // loop_body
                %v386 = vld [vmem:[%s384] sm:%s377]
                %387 = vst [vmem:[%s385] sm:%s377] %v386
                %v388 = vld [vmem:[%s384 + $0x10] sm:%s377]
                %389 = vst [vmem:[%s385 + $0x8] sm:%s377] %v388
                %v390 = vld [vmem:[%s384 + $0x20] sm:%s377]
                %391 = vst [vmem:[%s385 + $0x10] sm:%s377] %v390
                %v392 = vld [vmem:[%s384 + $0x30] sm:%s377]
                %393 = vst [vmem:[%s385 + $0x18] sm:%s377] %v392
                %v394 = vld [vmem:[%s384 + $0x40] sm:%s377]
                %395 = vst [vmem:[%s385 + $0x20] sm:%s377] %v394
                %v396 = vld [vmem:[%s384 + $0x50] sm:%s377]
                %397 = vst [vmem:[%s385 + $0x28] sm:%s377] %v396
                %v398 = vld [vmem:[%s384 + $0x60] sm:%s377]
                %399 = vst [vmem:[%s385 + $0x30] sm:%s377] %v398
                %v400 = vld [vmem:[%s384 + $0x70] sm:%s377]
                %401 = vst [vmem:[%s385 + $0x38] sm:%s377] %v400
              $region87: #{base_model_forward.9} parent=81 // loop_footer
                %s383 = sadd.s32 1, %s379
              $region88: #{base_model_forward.9} parent=81 // loop_footer_branch
                %378 = sbr.rel target = $region84
              $region89: #{base_model_forward.9} parent=81 // loop_exit
                _
            $region82: #{base_model_forward.9} parent=73 // pred_fallthru
              _
          $region74: #{base_model_forward.9} parent=69 // pred_fallthru
            _
          %430 = vnop
        $region70: #{base_model_forward.9} parent=27 // pred_fallthru
          _
        // Predicated region
        $region105: #{base_model_forward.9} parent=27 // pred_check
          %p431 = pneg %p88
        $region106: #{base_model_forward.9} parent=27 // pred_check_branch
          %433 = sbr.rel (%p431) target = $region108
        $region107: #{base_model_forward.9} parent=27 // pred_region
          %s434 = sand.u32 %s78, 1
          %s435 = sand.u32 %s78, 1
          %s436 = smul.addr %s435, 64
          %s437 = scalar_lea.vmem [#allocation4], %s436
          %s438 = smul.u32 2, %s16
          %s439 = smul.addr %s438, 4
          %s440 = scalar_lea.vmem %s2, %s439
          // Predicated region
          $region109: #{base_model_forward.9} parent=107 // pred_check
            _
          $region110: #{base_model_forward.9} parent=107 // pred_check_branch
            %442 = sbr.rel (0) target = $region112
          $region111: #{base_model_forward.9} parent=107 // pred_region
            // Predicated region
            $region113: #{base_model_forward.9} parent=111 // pred_check
              _
            $region114: #{base_model_forward.9} parent=111 // pred_check_branch
              %444 = sbr.rel (0) target = $region116
            $region115: #{base_model_forward.9} parent=111 // pred_region
              // Predicated region
              $region128: #{base_model_forward.9} parent=115 // pred_check
                _
              $region129: #{base_model_forward.9} parent=115 // pred_check_branch
                %474 = sbr.rel (0) target = $region131
              $region130: #{base_model_forward.9} parent=115 // pred_region
                loop: start=0, step=1, limit=1
                $region132: #{base_model_forward.9} parent=130 // loop_pre_header
                  _
                $region133: #{base_model_forward.9} parent=130 // loop_header
                  %s476 = sphi 0, %s480
                  %p477 = scmp.ge.s32.totalorder %s476, 1
                  %s481 = sphi %s440, %s440
                  %s482 = sphi %s437, %s437
                $region134: #{base_model_forward.9} parent=130 // loop_header_branch
                  %479 = sbr.rel (%p477) target = $region138
                $region135: #{base_model_forward.9} parent=130 // loop_body
                  %v483 = vld [vmem:[%s481] sm:$0xff]
                  %484 = vst [vmem:[%s482] sm:$0xff] %v483
                  %v485 = vld [vmem:[%s481 + $0x10] sm:$0xff]
                  %486 = vst [vmem:[%s482 + $0x8] sm:$0xff] %v485
                  %v487 = vld [vmem:[%s481 + $0x20] sm:$0xff]
                  %488 = vst [vmem:[%s482 + $0x10] sm:$0xff] %v487
                  %v489 = vld [vmem:[%s481 + $0x30] sm:$0xff]
                  %490 = vst [vmem:[%s482 + $0x18] sm:$0xff] %v489
                  %v491 = vld [vmem:[%s481 + $0x40] sm:$0xff]
                  %492 = vst [vmem:[%s482 + $0x20] sm:$0xff] %v491
                  %v493 = vld [vmem:[%s481 + $0x50] sm:$0xff]
                  %494 = vst [vmem:[%s482 + $0x28] sm:$0xff] %v493
                  %v495 = vld [vmem:[%s481 + $0x60] sm:$0xff]
                  %496 = vst [vmem:[%s482 + $0x30] sm:$0xff] %v495
                  %v497 = vld [vmem:[%s481 + $0x70] sm:$0xff]
                  %498 = vst [vmem:[%s482 + $0x38] sm:$0xff] %v497
                $region136: #{base_model_forward.9} parent=130 // loop_footer
                  %s480 = sadd.s32 1, %s476
                $region137: #{base_model_forward.9} parent=130 // loop_footer_branch
                  %475 = sbr.rel target = $region133
                $region138: #{base_model_forward.9} parent=130 // loop_exit
                  _
              $region131: #{base_model_forward.9} parent=115 // pred_fallthru
                _
              // Predicated region
              $region139: #{base_model_forward.9} parent=115 // pred_check
                _
              $region140: #{base_model_forward.9} parent=115 // pred_check_branch
                %500 = sbr.rel target = $region142
              $region141: #{base_model_forward.9} parent=115 // pred_region
                _
              $region142: #{base_model_forward.9} parent=115 // pred_fallthru
                _
            $region116: #{base_model_forward.9} parent=111 // pred_fallthru
              _
            // Predicated region
            $region117: #{base_model_forward.9} parent=111 // pred_check
              _
            $region118: #{base_model_forward.9} parent=111 // pred_check_branch
              %446 = sbr.rel target = $region120
            $region119: #{base_model_forward.9} parent=111 // pred_region
              %s448 = ssub.s32 256, 1
              loop: start=0, step=1, limit=1
              $region121: #{base_model_forward.9} parent=119 // loop_pre_header
                _
              $region122: #{base_model_forward.9} parent=119 // loop_header
                %s450 = sphi 0, %s454
                %p451 = scmp.ge.s32.totalorder %s450, 1
                %s455 = sphi %s440, %s440
                %s456 = sphi %s437, %s437
              $region123: #{base_model_forward.9} parent=119 // loop_header_branch
                %453 = sbr.rel (%p451) target = $region127
              $region124: #{base_model_forward.9} parent=119 // loop_body
                %v457 = vld [vmem:[%s455] sm:%s448]
                %458 = vst [vmem:[%s456] sm:%s448] %v457
                %v459 = vld [vmem:[%s455 + $0x10] sm:%s448]
                %460 = vst [vmem:[%s456 + $0x8] sm:%s448] %v459
                %v461 = vld [vmem:[%s455 + $0x20] sm:%s448]
                %462 = vst [vmem:[%s456 + $0x10] sm:%s448] %v461
                %v463 = vld [vmem:[%s455 + $0x30] sm:%s448]
                %464 = vst [vmem:[%s456 + $0x18] sm:%s448] %v463
                %v465 = vld [vmem:[%s455 + $0x40] sm:%s448]
                %466 = vst [vmem:[%s456 + $0x20] sm:%s448] %v465
                %v467 = vld [vmem:[%s455 + $0x50] sm:%s448]
                %468 = vst [vmem:[%s456 + $0x28] sm:%s448] %v467
                %v469 = vld [vmem:[%s455 + $0x60] sm:%s448]
                %470 = vst [vmem:[%s456 + $0x30] sm:%s448] %v469
                %v471 = vld [vmem:[%s455 + $0x70] sm:%s448]
                %472 = vst [vmem:[%s456 + $0x38] sm:%s448] %v471
              $region125: #{base_model_forward.9} parent=119 // loop_footer
                %s454 = sadd.s32 1, %s450
              $region126: #{base_model_forward.9} parent=119 // loop_footer_branch
                %449 = sbr.rel target = $region122
              $region127: #{base_model_forward.9} parent=119 // loop_exit
                _
            $region120: #{base_model_forward.9} parent=111 // pred_fallthru
              _
          $region112: #{base_model_forward.9} parent=107 // pred_fallthru
            _
          %501 = vnop
        $region108: #{base_model_forward.9} parent=27 // pred_fallthru
          _
        // Predicated region
        $region143: #{base_model_forward.9} parent=27 // pred_check
          %p502 = pneg %p114
        $region144: #{base_model_forward.9} parent=27 // pred_check_branch
          %504 = sbr.rel (%p502) target = $region146
        $region145: #{base_model_forward.9} parent=27 // pred_region
          %s505 = sand.u32 %s104, 1
          %s506 = sand.u32 %s104, 1
          %s507 = smul.addr %s506, 64
          %s508 = scalar_lea.vmem [#allocation5], %s507
          %s509 = smul.u32 2, %s16
          %s510 = smul.addr %s509, 4
          %s511 = scalar_lea.vmem %s3, %s510
          // Predicated region
          $region147: #{base_model_forward.9} parent=145 // pred_check
            _
          $region148: #{base_model_forward.9} parent=145 // pred_check_branch
            %513 = sbr.rel (0) target = $region150
          $region149: #{base_model_forward.9} parent=145 // pred_region
            // Predicated region
            $region151: #{base_model_forward.9} parent=149 // pred_check
              _
            $region152: #{base_model_forward.9} parent=149 // pred_check_branch
              %515 = sbr.rel (0) target = $region154
            $region153: #{base_model_forward.9} parent=149 // pred_region
              // Predicated region
              $region166: #{base_model_forward.9} parent=153 // pred_check
                _
              $region167: #{base_model_forward.9} parent=153 // pred_check_branch
                %545 = sbr.rel (0) target = $region169
              $region168: #{base_model_forward.9} parent=153 // pred_region
                loop: start=0, step=1, limit=1
                $region170: #{base_model_forward.9} parent=168 // loop_pre_header
                  _
                $region171: #{base_model_forward.9} parent=168 // loop_header
                  %s547 = sphi 0, %s551
                  %p548 = scmp.ge.s32.totalorder %s547, 1
                  %s552 = sphi %s511, %s511
                  %s553 = sphi %s508, %s508
                $region172: #{base_model_forward.9} parent=168 // loop_header_branch
                  %550 = sbr.rel (%p548) target = $region176
                $region173: #{base_model_forward.9} parent=168 // loop_body
                  %v554 = vld [vmem:[%s552] sm:$0xff]
                  %555 = vst [vmem:[%s553] sm:$0xff] %v554
                  %v556 = vld [vmem:[%s552 + $0x10] sm:$0xff]
                  %557 = vst [vmem:[%s553 + $0x8] sm:$0xff] %v556
                  %v558 = vld [vmem:[%s552 + $0x20] sm:$0xff]
                  %559 = vst [vmem:[%s553 + $0x10] sm:$0xff] %v558
                  %v560 = vld [vmem:[%s552 + $0x30] sm:$0xff]
                  %561 = vst [vmem:[%s553 + $0x18] sm:$0xff] %v560
                  %v562 = vld [vmem:[%s552 + $0x40] sm:$0xff]
                  %563 = vst [vmem:[%s553 + $0x20] sm:$0xff] %v562
                  %v564 = vld [vmem:[%s552 + $0x50] sm:$0xff]
                  %565 = vst [vmem:[%s553 + $0x28] sm:$0xff] %v564
                  %v566 = vld [vmem:[%s552 + $0x60] sm:$0xff]
                  %567 = vst [vmem:[%s553 + $0x30] sm:$0xff] %v566
                  %v568 = vld [vmem:[%s552 + $0x70] sm:$0xff]
                  %569 = vst [vmem:[%s553 + $0x38] sm:$0xff] %v568
                $region174: #{base_model_forward.9} parent=168 // loop_footer
                  %s551 = sadd.s32 1, %s547
                $region175: #{base_model_forward.9} parent=168 // loop_footer_branch
                  %546 = sbr.rel target = $region171
                $region176: #{base_model_forward.9} parent=168 // loop_exit
                  _
              $region169: #{base_model_forward.9} parent=153 // pred_fallthru
                _
              // Predicated region
              $region177: #{base_model_forward.9} parent=153 // pred_check
                _
              $region178: #{base_model_forward.9} parent=153 // pred_check_branch
                %571 = sbr.rel target = $region180
              $region179: #{base_model_forward.9} parent=153 // pred_region
                _
              $region180: #{base_model_forward.9} parent=153 // pred_fallthru
                _
            $region154: #{base_model_forward.9} parent=149 // pred_fallthru
              _
            // Predicated region
            $region155: #{base_model_forward.9} parent=149 // pred_check
              _
            $region156: #{base_model_forward.9} parent=149 // pred_check_branch
              %517 = sbr.rel target = $region158
            $region157: #{base_model_forward.9} parent=149 // pred_region
              %s519 = ssub.s32 256, 1
              loop: start=0, step=1, limit=1
              $region159: #{base_model_forward.9} parent=157 // loop_pre_header
                _
              $region160: #{base_model_forward.9} parent=157 // loop_header
                %s521 = sphi 0, %s525
                %p522 = scmp.ge.s32.totalorder %s521, 1
                %s526 = sphi %s511, %s511
                %s527 = sphi %s508, %s508
              $region161: #{base_model_forward.9} parent=157 // loop_header_branch
                %524 = sbr.rel (%p522) target = $region165
              $region162: #{base_model_forward.9} parent=157 // loop_body
                %v528 = vld [vmem:[%s526] sm:%s519]
                %529 = vst [vmem:[%s527] sm:%s519] %v528
                %v530 = vld [vmem:[%s526 + $0x10] sm:%s519]
                %531 = vst [vmem:[%s527 + $0x8] sm:%s519] %v530
                %v532 = vld [vmem:[%s526 + $0x20] sm:%s519]
                %533 = vst [vmem:[%s527 + $0x10] sm:%s519] %v532
                %v534 = vld [vmem:[%s526 + $0x30] sm:%s519]
                %535 = vst [vmem:[%s527 + $0x18] sm:%s519] %v534
                %v536 = vld [vmem:[%s526 + $0x40] sm:%s519]
                %537 = vst [vmem:[%s527 + $0x20] sm:%s519] %v536
                %v538 = vld [vmem:[%s526 + $0x50] sm:%s519]
                %539 = vst [vmem:[%s527 + $0x28] sm:%s519] %v538
                %v540 = vld [vmem:[%s526 + $0x60] sm:%s519]
                %541 = vst [vmem:[%s527 + $0x30] sm:%s519] %v540
                %v542 = vld [vmem:[%s526 + $0x70] sm:%s519]
                %543 = vst [vmem:[%s527 + $0x38] sm:%s519] %v542
              $region163: #{base_model_forward.9} parent=157 // loop_footer
                %s525 = sadd.s32 1, %s521
              $region164: #{base_model_forward.9} parent=157 // loop_footer_branch
                %520 = sbr.rel target = $region160
              $region165: #{base_model_forward.9} parent=157 // loop_exit
                _
            $region158: #{base_model_forward.9} parent=149 // pred_fallthru
              _
          $region150: #{base_model_forward.9} parent=145 // pred_fallthru
            _
          %572 = vnop
        $region146: #{base_model_forward.9} parent=27 // pred_fallthru
          _
      $region28: #{base_model_forward.9} parent=5 // pred_fallthru
        _
      %p573 = scmp.le.s32.totalorder 1, %s16
      %p574 = scmp.lt.s32.totalorder %s16, 3
      %p575 = pnand %p573, %p574
      %p576 = pneg %p575
      // Predicated region
      $region181: #{base_model_forward.9} parent=5 // pred_check
        _
      $region182: #{base_model_forward.9} parent=5 // pred_check_branch
        %578 = sbr.rel (%p575) target = $region184
      $region183: #{base_model_forward.9} parent=5 // pred_region
        %s579 = ssub.s32 %s16, 1
        %s580 = sand.u32 %s29, 1
        %s581 = sand.u32 %s29, 1
        %s582 = smul.addr %s581, 64
        %s583 = scalar_lea.vmem [#allocation2], %s582
        // Predicated region
        $region185: #{base_model_forward.9} parent=183 // pred_check
          %p584 = pneg %p42
        $region186: #{base_model_forward.9} parent=183 // pred_check_branch
          %586 = sbr.rel (%p584) target = $region188
        $region187: #{base_model_forward.9} parent=183 // pred_region
          _
        $region188: #{base_model_forward.9} parent=183 // pred_fallthru
          _
        %s587 = sand.u32 %s55, 1
        %s588 = sand.u32 %s55, 1
        %s589 = smul.addr %s588, 64
        %s590 = scalar_lea.vmem [#allocation3], %s589
        // Predicated region
        $region189: #{base_model_forward.9} parent=183 // pred_check
          %p591 = pneg %p68
        $region190: #{base_model_forward.9} parent=183 // pred_check_branch
          %593 = sbr.rel (%p591) target = $region192
        $region191: #{base_model_forward.9} parent=183 // pred_region
          _
        $region192: #{base_model_forward.9} parent=183 // pred_fallthru
          _
        %s594 = sand.u32 %s81, 1
        %s595 = sand.u32 %s81, 1
        %s596 = smul.addr %s595, 64
        %s597 = scalar_lea.vmem [#allocation4], %s596
        // Predicated region
        $region193: #{base_model_forward.9} parent=183 // pred_check
          %p598 = pneg %p94
        $region194: #{base_model_forward.9} parent=183 // pred_check_branch
          %600 = sbr.rel (%p598) target = $region196
        $region195: #{base_model_forward.9} parent=183 // pred_region
          _
        $region196: #{base_model_forward.9} parent=183 // pred_fallthru
          _
        %s601 = sand.u32 %s107, 1
        %s602 = sand.u32 %s107, 1
        %s603 = smul.addr %s602, 64
        %s604 = scalar_lea.vmem [#allocation5], %s603
        // Predicated region
        $region197: #{base_model_forward.9} parent=183 // pred_check
          %p605 = pneg %p120
        $region198: #{base_model_forward.9} parent=183 // pred_check_branch
          %607 = sbr.rel (%p605) target = $region200
        $region199: #{base_model_forward.9} parent=183 // pred_region
          _
        $region200: #{base_model_forward.9} parent=183 // pred_fallthru
          _
        %s608 = sand.u32 %s29, 1
        %s609 = sand.u32 %s29, 1
        %s610 = smul.addr %s609, 64
        %s611 = scalar_lea.vmem [#allocation2], %s610
        %p612 = pneg %p42
        %p613 = pneg %p39
        %s614 = sand.u32 %s55, 1
        %s615 = sand.u32 %s55, 1
        %s616 = smul.addr %s615, 64
        %s617 = scalar_lea.vmem [#allocation3], %s616
        %p618 = pneg %p68
        %p619 = pneg %p65
        %s620 = sand.u32 %s81, 1
        %s621 = sand.u32 %s81, 1
        %s622 = smul.addr %s621, 64
        %s623 = scalar_lea.vmem [#allocation4], %s622
        %p624 = pneg %p94
        %p625 = pneg %p91
        %s626 = sand.u32 %s107, 1
        %s627 = sand.u32 %s107, 1
        %s628 = smul.addr %s627, 64
        %s629 = scalar_lea.vmem [#allocation5], %s628
        %p630 = pneg %p120
        %p631 = pneg %p117
        %p632 = pneg %p141
        %p633 = pneg %p138
        %p634 = pneg %p162
        %p635 = pneg %p159
        %p636 = pneg %p183
        %p637 = pneg %p180
        %p638 = pneg %p209
        %p639 = pneg %p206
        %s640 = smul.u32 2, %s21
        %p641 = scmp.lt.s32.totalorder %s640, 3
        %s642 = scalar_select %p641, %s640, 3
        %s643 = smul.addr %s642, 8
        %s644 = scalar_lea.vmem %s7, %s643
        %p645 = pneg %p235
        %p646 = pneg %p232
        %s647 = smul.u32 2, %s21
        %p648 = scmp.lt.s32.totalorder %s647, 3
        %s649 = scalar_select %p648, %s647, 3
        %s650 = scalar_lea.vmem %s8, %s649
        %p651 = pneg %p261
        %p652 = pneg %p258
        %s653 = smul.u32 2, %s21
        %p654 = scmp.lt.s32.totalorder %s653, 3
        %s655 = scalar_select %p654, %s653, 3
        %s656 = scalar_lea.vmem %s9, %s655
        %s657 = smul.u32 2, %s21
        %s658 = smul.u32 2, %s21
        %s659 = smul.u32 2, %s21
        %s660 = smul.u32 2, %s21
        %s661 = smul.u32 2, %s21
        %p662 = scmp.lt.s32.totalorder %s661, 3
        %s663 = scalar_select %p662, %s661, 3
        %s664 = smul.addr %s663, 8
        %s665 = scalar_lea.vmem %s7, %s664
        %s666 = smul.u32 2, %s21
        %s667 = smul.u32 2, %s21
        %p668 = scmp.lt.s32.totalorder %s667, 3
        %s669 = scalar_select %p668, %s667, 3
        %s670 = scalar_lea.vmem %s8, %s669
        %s671 = smul.u32 2, %s21
        %s672 = smul.u32 2, %s21
        %p673 = scmp.lt.s32.totalorder %s672, 3
        %s674 = scalar_select %p673, %s672, 3
        %s675 = scalar_lea.vmem %s9, %s674
        %s676 = smul.u32 2, %s21
        %v678 = vld [vmem:[%s583] sm:$0xff]
        %v679 = vld [vmem:[%s583 + $0x8] sm:$0xff]
        %v680 = vld [vmem:[%s583 + $0x10] sm:$0xff]
        %v681 = vld [vmem:[%s583 + $0x18] sm:$0xff]
        %v682 = vld [vmem:[%s583 + $0x20] sm:$0xff]
        %v683 = vld [vmem:[%s583 + $0x28] sm:$0xff]
        %v684 = vld [vmem:[%s583 + $0x30] sm:$0xff]
        %v685 = vld [vmem:[%s583 + $0x38] sm:$0xff]
        %v686 = vunpack.c.l.bf16 %v678
        %v687 = vunpack.c.h.bf16 %v678
        %v688 = vunpack.c.l.bf16 %v679
        %v689 = vunpack.c.h.bf16 %v679
        %v690 = vunpack.c.l.bf16 %v680
        %v691 = vunpack.c.h.bf16 %v680
        %v692 = vunpack.c.l.bf16 %v681
        %v693 = vunpack.c.h.bf16 %v681
        %v694 = vunpack.c.l.bf16 %v682
        %v695 = vunpack.c.h.bf16 %v682
        %v696 = vunpack.c.l.bf16 %v683
        %v697 = vunpack.c.h.bf16 %v683
        %v698 = vunpack.c.l.bf16 %v684
        %v699 = vunpack.c.h.bf16 %v684
        %v700 = vunpack.c.l.bf16 %v685
        %v701 = vunpack.c.h.bf16 %v685
        %v702 = vld [vmem:[%s590] sm:$0xff]
        %v703 = vld [vmem:[%s590 + $0x8] sm:$0xff]
        %v704 = vld [vmem:[%s590 + $0x10] sm:$0xff]
        %v705 = vld [vmem:[%s590 + $0x18] sm:$0xff]
        %v706 = vld [vmem:[%s590 + $0x20] sm:$0xff]
        %v707 = vld [vmem:[%s590 + $0x28] sm:$0xff]
        %v708 = vld [vmem:[%s590 + $0x30] sm:$0xff]
        %v709 = vld [vmem:[%s590 + $0x38] sm:$0xff]
        %v710 = vunpack.c.l.bf16 %v702
        %v711 = vunpack.c.h.bf16 %v702
        %v712 = vunpack.c.l.bf16 %v703
        %v713 = vunpack.c.h.bf16 %v703
        %v714 = vunpack.c.l.bf16 %v704
        %v715 = vunpack.c.h.bf16 %v704
        %v716 = vunpack.c.l.bf16 %v705
        %v717 = vunpack.c.h.bf16 %v705
        %v718 = vunpack.c.l.bf16 %v706
        %v719 = vunpack.c.h.bf16 %v706
        %v720 = vunpack.c.l.bf16 %v707
        %v721 = vunpack.c.h.bf16 %v707
        %v722 = vunpack.c.l.bf16 %v708
        %v723 = vunpack.c.h.bf16 %v708
        %v724 = vunpack.c.l.bf16 %v709
        %v725 = vunpack.c.h.bf16 %v709
        %v726 = vadd.f32 %v686, %v710
        %v727 = vadd.f32 %v687, %v711
        %v728 = vadd.f32 %v688, %v712
        %v729 = vadd.f32 %v689, %v713
        %v730 = vadd.f32 %v690, %v714
        %v731 = vadd.f32 %v691, %v715
        %v732 = vadd.f32 %v692, %v716
        %v733 = vadd.f32 %v693, %v717
        %v734 = vadd.f32 %v694, %v718
        %v735 = vadd.f32 %v695, %v719
        %v736 = vadd.f32 %v696, %v720
        %v737 = vadd.f32 %v697, %v721
        %v738 = vadd.f32 %v698, %v722
        %v739 = vadd.f32 %v699, %v723
        %v740 = vadd.f32 %v700, %v724
        %v741 = vadd.f32 %v701, %v725
        %v742 = vld [vmem:[%s597] sm:$0xff]
        %v743 = vld [vmem:[%s597 + $0x8] sm:$0xff]
        %v744 = vld [vmem:[%s597 + $0x10] sm:$0xff]
        %v745 = vld [vmem:[%s597 + $0x18] sm:$0xff]
        %v746 = vld [vmem:[%s597 + $0x20] sm:$0xff]
        %v747 = vld [vmem:[%s597 + $0x28] sm:$0xff]
        %v748 = vld [vmem:[%s597 + $0x30] sm:$0xff]
        %v749 = vld [vmem:[%s597 + $0x38] sm:$0xff]
        %v750 = vunpack.c.l.bf16 %v742
        %v751 = vunpack.c.h.bf16 %v742
        %v752 = vunpack.c.l.bf16 %v743
        %v753 = vunpack.c.h.bf16 %v743
        %v754 = vunpack.c.l.bf16 %v744
        %v755 = vunpack.c.h.bf16 %v744
        %v756 = vunpack.c.l.bf16 %v745
        %v757 = vunpack.c.h.bf16 %v745
        %v758 = vunpack.c.l.bf16 %v746
        %v759 = vunpack.c.h.bf16 %v746
        %v760 = vunpack.c.l.bf16 %v747
        %v761 = vunpack.c.h.bf16 %v747
        %v762 = vunpack.c.l.bf16 %v748
        %v763 = vunpack.c.h.bf16 %v748
        %v764 = vunpack.c.l.bf16 %v749
        %v765 = vunpack.c.h.bf16 %v749
        %v766 = vadd.f32 %v726, %v750
        %v767 = vadd.f32 %v727, %v751
        %v768 = vadd.f32 %v728, %v752
        %v769 = vadd.f32 %v729, %v753
        %v770 = vadd.f32 %v730, %v754
        %v771 = vadd.f32 %v731, %v755
        %v772 = vadd.f32 %v732, %v756
        %v773 = vadd.f32 %v733, %v757
        %v774 = vadd.f32 %v734, %v758
        %v775 = vadd.f32 %v735, %v759
        %v776 = vadd.f32 %v736, %v760
        %v777 = vadd.f32 %v737, %v761
        %v778 = vadd.f32 %v738, %v762
        %v779 = vadd.f32 %v739, %v763
        %v780 = vadd.f32 %v740, %v764
        %v781 = vadd.f32 %v741, %v765
        %v782 = vld [vmem:[%s604] sm:$0xff]
        %v783 = vld [vmem:[%s604 + $0x8] sm:$0xff]
        %v784 = vld [vmem:[%s604 + $0x10] sm:$0xff]
        %v785 = vld [vmem:[%s604 + $0x18] sm:$0xff]
        %v786 = vld [vmem:[%s604 + $0x20] sm:$0xff]
        %v787 = vld [vmem:[%s604 + $0x28] sm:$0xff]
        %v788 = vld [vmem:[%s604 + $0x30] sm:$0xff]
        %v789 = vld [vmem:[%s604 + $0x38] sm:$0xff]
        %v790 = vunpack.c.l.bf16 %v782
        %v791 = vunpack.c.h.bf16 %v782
        %v792 = vunpack.c.l.bf16 %v783
        %v793 = vunpack.c.h.bf16 %v783
        %v794 = vunpack.c.l.bf16 %v784
        %v795 = vunpack.c.h.bf16 %v784
        %v796 = vunpack.c.l.bf16 %v785
        %v797 = vunpack.c.h.bf16 %v785
        %v798 = vunpack.c.l.bf16 %v786
        %v799 = vunpack.c.h.bf16 %v786
        %v800 = vunpack.c.l.bf16 %v787
        %v801 = vunpack.c.h.bf16 %v787
        %v802 = vunpack.c.l.bf16 %v788
        %v803 = vunpack.c.h.bf16 %v788
        %v804 = vunpack.c.l.bf16 %v789
        %v805 = vunpack.c.h.bf16 %v789
        %v806 = vadd.f32 %v766, %v790
        %v807 = vadd.f32 %v767, %v791
        %v808 = vadd.f32 %v768, %v792
        %v809 = vadd.f32 %v769, %v793
        %v810 = vadd.f32 %v770, %v794
        %v811 = vadd.f32 %v771, %v795
        %v812 = vadd.f32 %v772, %v796
        %v813 = vadd.f32 %v773, %v797
        %v814 = vadd.f32 %v774, %v798
        %v815 = vadd.f32 %v775, %v799
        %v816 = vadd.f32 %v776, %v800
        %v817 = vadd.f32 %v777, %v801
        %v818 = vadd.f32 %v778, %v802
        %v819 = vadd.f32 %v779, %v803
        %v820 = vadd.f32 %v780, %v804
        %v821 = vadd.f32 %v781, %v805
        %v822 = vld [vmem:[%s4] sm:$0xff]
        %v823 = vld [vmem:[%s4 + $0x8] sm:$0xff]
        %v824 = vld [vmem:[%s4 + $0x10] sm:$0xff]
        %v825 = vld [vmem:[%s4 + $0x18] sm:$0xff]
        %v826 = vld [vmem:[%s4 + $0x20] sm:$0xff]
        %v827 = vld [vmem:[%s4 + $0x28] sm:$0xff]
        %v828 = vld [vmem:[%s4 + $0x30] sm:$0xff]
        %v829 = vld [vmem:[%s4 + $0x38] sm:$0xff]
        %831 = vset.pattern.permute.xlu0 0
        %832 = vperm.xlu0 %831, %v822
        %v833 = vpop.permute.xlu0 %832
        %836 = vset.pattern.permute.xlu0 0
        %837 = vperm.xlu0 %836, %v823
        %v838 = vpop.permute.xlu0 %837
        %841 = vset.pattern.permute.xlu0 0
        %842 = vperm.xlu0 %841, %v824
        %v843 = vpop.permute.xlu0 %842
        %846 = vset.pattern.permute.xlu0 0
        %847 = vperm.xlu0 %846, %v825
        %v848 = vpop.permute.xlu0 %847
        %851 = vset.pattern.permute.xlu0 0
        %852 = vperm.xlu0 %851, %v826
        %v853 = vpop.permute.xlu0 %852
        %856 = vset.pattern.permute.xlu0 0
        %857 = vperm.xlu0 %856, %v827
        %v858 = vpop.permute.xlu0 %857
        %861 = vset.pattern.permute.xlu0 0
        %862 = vperm.xlu0 %861, %v828
        %v863 = vpop.permute.xlu0 %862
        %866 = vset.pattern.permute.xlu0 0
        %867 = vperm.xlu0 %866, %v829
        %v868 = vpop.permute.xlu0 %867
        %v870 = vadd.f32 %v806, %v833
        %v871 = vadd.f32 %v807, %v833
        %v872 = vadd.f32 %v808, %v838
        %v873 = vadd.f32 %v809, %v838
        %v874 = vadd.f32 %v810, %v843
        %v875 = vadd.f32 %v811, %v843
        %v876 = vadd.f32 %v812, %v848
        %v877 = vadd.f32 %v813, %v848
        %v878 = vadd.f32 %v814, %v853
        %v879 = vadd.f32 %v815, %v853
        %v880 = vadd.f32 %v816, %v858
        %v881 = vadd.f32 %v817, %v858
        %v882 = vadd.f32 %v818, %v863
        %v883 = vadd.f32 %v819, %v863
        %v884 = vadd.f32 %v820, %v868
        %v885 = vadd.f32 %v821, %v868
        %v886 = vmax.f32 %v870, 0.0
        %v887 = vmax.f32 %v871, 0.0
        %v888 = vmax.f32 %v872, 0.0
        %v889 = vmax.f32 %v873, 0.0
        %v890 = vmax.f32 %v874, 0.0
        %v891 = vmax.f32 %v875, 0.0
        %v892 = vmax.f32 %v876, 0.0
        %v893 = vmax.f32 %v877, 0.0
        %v894 = vmax.f32 %v878, 0.0
        %v895 = vmax.f32 %v879, 0.0
        %v896 = vmax.f32 %v880, 0.0
        %v897 = vmax.f32 %v881, 0.0
        %v898 = vmax.f32 %v882, 0.0
        %v899 = vmax.f32 %v883, 0.0
        %v900 = vmax.f32 %v884, 0.0
        %v901 = vmax.f32 %v885, 0.0
        %v902 = vpack.c.bf16 %v888, %v886
        %v903 = vpack.c.bf16 %v889, %v887
        %v904 = vpack.c.bf16 %v892, %v890
        %v905 = vpack.c.bf16 %v893, %v891
        %v906 = vpack.c.bf16 %v896, %v894
        %v907 = vpack.c.bf16 %v897, %v895
        %v908 = vpack.c.bf16 %v900, %v898
        %v909 = vpack.c.bf16 %v901, %v899
        %v910 = vld [vmem:[%s5] sm:$0xf]
        %v911 = vld [vmem:[%s5 + $0x4] sm:$0xf]
        %v912 = vld [vmem:[%s6] sm:$0xff]
        %v913 = vld [vmem:[%s6 + $0x8] sm:$0xff]
        %915 = vset.pattern.permute.xlu0 0
        %916 = vperm.xlu0 %915, %v912
        %v917 = vpop.permute.xlu0 %916
        %920 = vset.pattern.permute.xlu0 0
        %921 = vperm.xlu0 %920, %v913
        %v922 = vpop.permute.xlu0 %921
        %v926 = vunpack.c.l.b16 %v910
        %v927 = vunpack.c.l.b16 %v911
        %v928 = vpack.c.b16 %v927, %v926
        %vm929 = vcmask 523264
        %v931 = vsel %vm929, %v928, 0
        %933 = vmatpush.bf16.msra.mxu0 0
        %934 = vmatpush.bf16.msra.mxu0 0
        %935 = vmatpush.bf16.msra.mxu0 0
        %936 = vmatpush.bf16.msra.mxu0 0
        %937 = vmatpush.bf16.msra.mxu0 %v908
        %938 = vmatpush.bf16.msra.mxu0 %v906
        %939 = vmatpush.bf16.msra.mxu0 %v904
        %940 = vmatpush.bf16.msra.mxu0 %v902
        %941 = vmatmul.bf16.gmra.mxu0 %v931
        %v942 = vpop.f32.mrf.mxu0
        %v943 = vadd.f32 %v917, %v942
        %v944 = vpop.f32.mrf.mxu0
        %v945 = vadd.f32 %v922, %v944
        %946 = vdwg.mxu0
        %947 = vmatpush.bf16.msra.mxu0 0
        %948 = vmatpush.bf16.msra.mxu0 0
        %949 = vmatpush.bf16.msra.mxu0 0
        %950 = vmatpush.bf16.msra.mxu0 0
        %951 = vmatpush.bf16.msra.mxu0 %v909
        %952 = vmatpush.bf16.msra.mxu0 %v907
        %953 = vmatpush.bf16.msra.mxu0 %v905
        %954 = vmatpush.bf16.msra.mxu0 %v903
        %955 = vmatmul.bf16.gmra.mxu0 %v931
        %v956 = vpop.f32.mrf.mxu0
        %v957 = vadd.f32 %v917, %v956
        %v958 = vpop.f32.mrf.mxu0
        %v959 = vadd.f32 %v922, %v958
        %960 = vdwg.mxu0
        %v961 = vsub.f32 %v945, %v943
        %v962 = vsub.f32 %v959, %v957
        %v963 = vand.u32 2147483647, %v961
        %v964 = vand.u32 2147483647, %v962
        %v965 = vsub.f32 0.0, %v963
        %v966 = vsub.f32 0.0, %v964
        %v967 = vmul.f32 %v965, 1.442695
        %v968 = vpow.pop %v967
        %v969 = vmul.f32 %v966, 1.442695
        %v970 = vpow.pop %v969
        %v971 = vadd.f32 %v968, 1.0
        %v972 = vadd.f32 %v970, 1.0
        %v973 = vrcp.pop %v971
        %v974 = vrcp.pop %v972
        %vm975 = vcmp.ge.f32.partialorder %v961, 0.0
        %vm976 = vcmp.ge.f32.partialorder %v962, 0.0
        %v977 = vmul.f32 %v968, %v973
        %v978 = vmul.f32 %v970, %v974
        %v979 = vsel %vm975, %v973, %v977
        %v980 = vsel %vm976, %v974, %v978
        %v981 = vmin.f32 %v979, 1.0
        %v982 = vmin.f32 %v980, 1.0
        %983 = vst [vmem:[%s665] sm:$0xff] %v981
        %984 = vst [vmem:[%s665 + $0x8] sm:$0xff] %v982
        %vm985 = vcmp.gt.f32.partialorder %v961, 0.0
        %vm986 = vcmp.gt.f32.partialorder %v962, 0.0
        %v987 = vsel %vm985, 1.0, 0.0
        %v988 = vsel %vm986, 1.0, 0.0
        %v989 = vrot.slane %v987, 4
        %v990 = vadd.f32 %v987, %v989
        %v991 = vrot.slane %v990, 2
        %v992 = vadd.f32 %v990, %v991
        %v993 = vrot.slane %v992, 1
        %v994 = vadd.f32 %v992, %v993
        %v995 = vrot.slane %v988, 4
        %v996 = vadd.f32 %v988, %v995
        %v997 = vrot.slane %v996, 2
        %v998 = vadd.f32 %v996, %v997
        %v999 = vrot.slane %v998, 1
        %v1000 = vadd.f32 %v998, %v999
        %v1001 = vcvt.f32.s32.to.zero.pseudo %v994
        %v1002 = vcvt.f32.s32.to.zero.pseudo %v1000
        %v1003 = vrot.slane %v1002, 7
        %vm1004 = vcmask 1040384
        %v1005 = vsel %vm1004, %v1001, %v1003
        %v1006 = vlaneseq
        %vm1007 = vcmp.ge.s32.totalorder %v1006, 0
        %vm1008 = vcmp.lt.s32.totalorder %v1006, 256
        %vm1009 = vmand %vm1007, %vm1008
        %1010 = vst.msk [vmem:[%s670] sm:$0x3] %vm1009, %v1005
        %v1011 = vmul.f32 %v994, 4.3820267
        %v1012 = vmul.f32 %v1000, 4.3820267
        %v1013 = vrcp.pop 8.0
        %v1014 = vmul.f32 8.0, %v1013
        %v1015 = vsub.f32 1.0, %v1014
        %v1016 = vmul.f32 %v1013, %v1015
        %v1017 = vadd.f32 %v1013, %v1016
        %vm1018 = vweird.f32 %v1013
        %v1019 = vsel %vm1018, %v1013, %v1017
        %v1020 = vmul.f32 %v1011, %v1019
        %v1021 = vmul.f32 %v1012, %v1019
        %v1022 = vmul.f32 %v1020, 1.442695
        %v1023 = vpow.pop %v1022
        %v1024 = vmul.f32 %v1021, 1.442695
        %v1025 = vpow.pop %v1024
        %v1026 = vadd.f32 %v994, 1.0
        %v1027 = vadd.f32 %v1000, 1.0
        %v1028 = vmul.f32 %v1026, 4.3820267
        %v1029 = vmul.f32 %v1027, 4.3820267
        %v1030 = vmul.f32 %v1028, %v1019
        %v1031 = vmul.f32 %v1029, %v1019
        %v1032 = vmul.f32 %v1030, 1.442695
        %v1033 = vpow.pop %v1032
        %v1034 = vmul.f32 %v1031, 1.442695
        %v1035 = vpow.pop %v1034
        %v1036 = vadd.f32 %v1023, %v1033
        %v1037 = vadd.f32 %v1025, %v1035
        %v1038 = vmul.f32 %v1036, 0.5
        %v1039 = vmul.f32 %v1037, 0.5
        %v1040 = vsub.f32 %v1038, 1.0
        %v1041 = vsub.f32 %v1039, 1.0
        %v1044 = vrot.slane %v1041, 7
        %v1045 = vsel %vm1004, %v1040, %v1044
        %1047 = vst.msk [vmem:[%s675] sm:$0x3] %vm1009, %v1045
        %s1048 = smul.u32 2, %s21
        %p1049 = scmp.lt.s32.totalorder %s1048, 3
        %s1050 = scalar_select %p1049, %s1048, 3
        %s1051 = smul.addr %s1050, 8
        %s1052 = scalar_lea.vmem %s7, %s1051
        %s1053 = smul.u32 2, %s21
        %p1054 = scmp.lt.s32.totalorder %s1053, 3
        %s1055 = scalar_select %p1054, %s1053, 3
        %s1056 = scalar_lea.vmem %s8, %s1055
        %s1057 = smul.u32 2, %s21
        %p1058 = scmp.lt.s32.totalorder %s1057, 3
        %s1059 = scalar_select %p1058, %s1057, 3
        %s1060 = scalar_lea.vmem %s9, %s1059
        // Predicated region
        $region201: #{base_model_forward.9} parent=183 // pred_check
          %p1061 = pneg %p206
        $region202: #{base_model_forward.9} parent=183 // pred_check_branch
          %1063 = sbr.rel (%p1061) target = $region204
        $region203: #{base_model_forward.9} parent=183 // pred_region
          %s1064 = smul.u32 2, %s21
        $region204: #{base_model_forward.9} parent=183 // pred_fallthru
          _
        // Predicated region
        $region205: #{base_model_forward.9} parent=183 // pred_check
          %p1065 = pneg %p232
        $region206: #{base_model_forward.9} parent=183 // pred_check_branch
          %1067 = sbr.rel (%p1065) target = $region208
        $region207: #{base_model_forward.9} parent=183 // pred_region
          %s1068 = smul.u32 2, %s21
        $region208: #{base_model_forward.9} parent=183 // pred_fallthru
          _
        // Predicated region
        $region209: #{base_model_forward.9} parent=183 // pred_check
          %p1069 = pneg %p258
        $region210: #{base_model_forward.9} parent=183 // pred_check_branch
          %1071 = sbr.rel (%p1069) target = $region212
        $region211: #{base_model_forward.9} parent=183 // pred_region
          %s1072 = smul.u32 2, %s21
        $region212: #{base_model_forward.9} parent=183 // pred_fallthru
          _
      $region184: #{base_model_forward.9} parent=5 // pred_fallthru
        _
      %p1073 = scmp.le.s32.totalorder 2, %s16
      // Predicated region
      $region213: #{base_model_forward.9} parent=5 // pred_check
        %p1074 = pneg %p1073
      $region214: #{base_model_forward.9} parent=5 // pred_check_branch
        %1076 = sbr.rel (%p1074) target = $region216
      $region215: #{base_model_forward.9} parent=5 // pred_region
        %s1077 = ssub.s32 %s16, 2
        // Predicated region
        $region217: #{base_model_forward.9} parent=215 // pred_check
          %p1078 = pneg %p212
        $region218: #{base_model_forward.9} parent=215 // pred_check_branch
          %1080 = sbr.rel (%p1078) target = $region220
        $region219: #{base_model_forward.9} parent=215 // pred_region
          %s1081 = smul.u32 2, %s22
          %p1082 = scmp.lt.s32.totalorder %s1081, 3
          %s1083 = scalar_select %p1082, %s1081, 3
          %s1084 = smul.addr %s1083, 8
          %s1085 = scalar_lea.vmem %s7, %s1084
        $region220: #{base_model_forward.9} parent=215 // pred_fallthru
          _
        // Predicated region
        $region221: #{base_model_forward.9} parent=215 // pred_check
          %p1086 = pneg %p238
        $region222: #{base_model_forward.9} parent=215 // pred_check_branch
          %1088 = sbr.rel (%p1086) target = $region224
        $region223: #{base_model_forward.9} parent=215 // pred_region
          %s1089 = smul.u32 2, %s22
          %p1090 = scmp.lt.s32.totalorder %s1089, 3
          %s1091 = scalar_select %p1090, %s1089, 3
          %s1092 = scalar_lea.vmem %s8, %s1091
        $region224: #{base_model_forward.9} parent=215 // pred_fallthru
          _
        // Predicated region
        $region225: #{base_model_forward.9} parent=215 // pred_check
          %p1093 = pneg %p264
        $region226: #{base_model_forward.9} parent=215 // pred_check_branch
          %1095 = sbr.rel (%p1093) target = $region228
        $region227: #{base_model_forward.9} parent=215 // pred_region
          %s1096 = smul.u32 2, %s22
          %p1097 = scmp.lt.s32.totalorder %s1096, 3
          %s1098 = scalar_select %p1097, %s1096, 3
          %s1099 = scalar_lea.vmem %s9, %s1098
        $region228: #{base_model_forward.9} parent=215 // pred_fallthru
          _
      $region216: #{base_model_forward.9} parent=5 // pred_fallthru
        _
    $region6: #{base_model_forward.9} parent=1 // loop_footer
      %s20 = sadd.s32 1, %s16
    $region7: #{base_model_forward.9} parent=1 // loop_footer_branch
      %15 = sbr.rel target = $region3
    $region8: #{base_model_forward.9} parent=1 // loop_exit
      _

</llo_original>
